<compile_context>
chip_gen: v5e
topology: v5e:2x2
jax: 0.10.0
libtpu: 0.0.40
codegen_flags: <defaults>
</compile_context>

<pallas_src>
import numpy as np
import jax
import jax.numpy as jnp
from jax.experimental import pallas as pl
from jax.experimental.pallas import tpu as pltpu

# ----------------------- configuration (small, consistent shapes) ------------
DIM = 16                    # embedding dim
NUM_HEADS = 2
HEAD_DIM = DIM // NUM_HEADS
WINDOW = 4                  # window_size
SHIFT = 2                   # shift_size (SW-MSA)
H = W = 8                   # input_resolution
B = 2
L = H * W
MLP_RATIO = 2.0
HIDDEN = int(DIM * MLP_RATIO)
N = WINDOW * WINDOW         # tokens per window
NW = (H // WINDOW) * (W // WINDOW)   # windows per image
SCALE = HEAD_DIM ** -0.5
LN_EPS = 1e-5
KSZ = 5                     # depthwise conv kernel size, padding = 2
PAD = KSZ // 2
NEG = -1e9                  # off-window fill for the block-diagonal bias
HP = jax.lax.Precision.HIGHEST


# ----------------------------- helpers (host-side / reference) ---------------
def _gelu(x):
    # exact (erf-based) GELU, matching torch.nn.GELU() default
    return 0.5 * x * (1.0 + jax.lax.erf(x * (1.0 / np.sqrt(2.0))))


def window_partition_j(x, ws):
    b, h, w, c = x.shape
    x = x.reshape(b, h // ws, ws, w // ws, ws, c)
    return x.transpose(0, 1, 3, 2, 4, 5).reshape(-1, ws, ws, c)


def window_reverse_j(windows, ws, h, w):
    b = windows.shape[0] // (h * w // ws // ws)
    x = windows.reshape(b, h // ws, w // ws, ws, ws, -1)
    return x.transpose(0, 1, 3, 2, 4, 5).reshape(b, h, w, -1)


def relative_position_index(ws):
    coords = np.stack(np.meshgrid(np.arange(ws), np.arange(ws), indexing="ij"))
    coords_flat = coords.reshape(2, -1)
    rel = coords_flat[:, :, None] - coords_flat[:, None, :]
    rel = rel.transpose(1, 2, 0).astype(np.int64)
    rel[:, :, 0] += ws - 1
    rel[:, :, 1] += ws - 1
    rel[:, :, 0] *= 2 * ws - 1
    return rel.sum(-1)  # (N, N)


def calculate_mask(h, w, ws, shift):
    img_mask = np.zeros((1, h, w, 1), np.float32)
    h_slices = (slice(0, -ws), slice(-ws, -shift), slice(-shift, None))
    w_slices = (slice(0, -ws), slice(-ws, -shift), slice(-shift, None))
    cnt = 0
    for hs in h_slices:
        for wsl in w_slices:
            img_mask[:, hs, wsl, :] = cnt
            cnt += 1
    mw = img_mask.reshape(1, h // ws, ws, w // ws, ws, 1)
    mw = mw.transpose(0, 1, 3, 2, 4, 5).reshape(-1, ws * ws)
    attn_mask = mw[:, None, :] - mw[:, :, None]
    attn_mask = np.where(attn_mask != 0, -100.0, 0.0).astype(np.float32)
    return attn_mask  # (NW, N, N)


def build_shift_window_perm():
    """0/1 matrix P with xw = P @ x  ==  window_partition(roll(x, -shift))."""
    tok = np.arange(L).reshape(H, W)
    tok_shift = np.roll(tok, (-SHIFT, -SHIFT), axis=(0, 1))
    tw = tok_shift.reshape(H // WINDOW, WINDOW, W // WINDOW, WINDOW)
    tw = tw.transpose(0, 2, 1, 3).reshape(-1)          # window-ordered source ids
    P = np.zeros((L, L), np.float32)
    P[np.arange(L), tw] = 1.0
    return P


def build_full_attn_bias(rel_bias_np, mask_np):
    """(heads, L, L) additive bias so that plain full-sequence attention over
    the ORIGINAL token order equals shifted-window attention:
        P^T softmax(P S P^T + B_win) P v  ==  softmax(S + P^T B_win P) v."""
    P = build_shift_window_perm()
    big = np.full((NUM_HEADS, L, L), NEG, np.float32)   # block-diag, window order
    for h in range(NUM_HEADS):
        for w in range(NW):
            big[h, w * N:(w + 1) * N, w * N:(w + 1) * N] = rel_bias_np[h] + mask_np[w]
    return np.stack([P.T @ big[h] @ P for h in range(NUM_HEADS)]).astype(np.float32)


def build_col_shift_mats():
    """Stacked (KSZ*L, L) 0/1 mats: row block b gives the j -> j+b-2 column
    shift (zero at the W boundary) of the flattened (H*W) token grid."""
    C = np.zeros((KSZ, L, L), np.float32)
    for b in range(KSZ):
        db = b - PAD
        for i in range(H):
            for j in range(W):
                sj = j + db
                if 0 <= sj < W:
                    C[b, i * W + j, i * W + sj] = 1.0
    return C.reshape(KSZ * L, L)


# --------------------------------- fused Pallas kernel -----------------------
def symwb_kernel(x_ref, n1g_ref, n1b_ref, wqkv_ref, bqkv_ref, bias_ref,
                 wproj_ref, bproj_ref, n2g_ref, n2b_ref,
                 fc1w_ref, fc1b_ref, colsh_ref, dww_ref, dwb_ref,
                 fc2w_ref, fc2b_ref, o_ref):
    f32 = jnp.float32
    x = x_ref[0].astype(f32)                                   # (L, C)

    def _ln(t, g, b_):
        m = jnp.mean(t, axis=-1, keepdims=True)
        v = jnp.mean(jnp.square(t - m), axis=-1, keepdims=True)
        return (t - m) * jax.lax.rsqrt(v + LN_EPS) * g + b_

    # ---------------- attention branch ----------------
    # shift + window partition/reverse are folded into bias_ref (host-side
    # conjugation), so this is plain full-sequence attention over L tokens.
    xn = _ln(x, n1g_ref[...], n1b_ref[...])                    # LN1
    qkv = jnp.dot(xn, wqkv_ref[...], preferred_element_type=f32) + bqkv_ref[...]
    wproj = wproj_ref[...]

    attn_out = jnp.zeros((L, DIM), f32)
    for h in range(NUM_HEADS):
        q = qkv[:, h * HEAD_DIM:(h + 1) * HEAD_DIM] * SCALE
        k = qkv[:, DIM + h * HEAD_DIM:DIM + (h + 1) * HEAD_DIM]
        v = qkv[:, 2 * DIM + h * HEAD_DIM:2 * DIM + (h + 1) * HEAD_DIM]
        s = jax.lax.dot_general(q, k, (((1,), (1,)), ((), ())),
                                preferred_element_type=f32) + bias_ref[h]  # (L, L)
        a = jax.nn.softmax(s, axis=-1)
        oh = jnp.dot(a, v, preferred_element_type=f32)          # (L, HD)
        # fold head concat into the output projection
        attn_out = attn_out + jnp.dot(oh, wproj[h * HEAD_DIM:(h + 1) * HEAD_DIM, :],
                                      preferred_element_type=f32)

    x1 = x + attn_out + bproj_ref[...]        # residual (drop_path = identity)

    # ---------------- DCFF MLP branch ----------------
    xn2 = _ln(x1, n2g_ref[...], n2b_ref[...])
    y = _gelu(jnp.dot(xn2, fc1w_ref[...], preferred_element_type=f32)
              + fc1b_ref[...])                                  # (L, HIDDEN)

    # 5x5 depthwise conv (pad=2), separably:
    #  * 5 column shifts (j±2, lane-unaligned)  -> ONE stacked constant matmul
    #  * per-tap channel weights                -> VPU FMAs
    #  * 5 row shifts (multiples of W=8 rows)   -> tile-aligned slice + concat
    u = jnp.dot(colsh_ref[...], y, preferred_element_type=f32)  # (KSZ*L, HIDDEN)
    dww = dww_ref[...]                                          # (25, HIDDEN)
    z = jnp.zeros((L, HIDDEN), f32)
    for a in range(KSZ):
        g = jnp.zeros((L, HIDDEN), f32)
        for b in range(KSZ):
            t = a * KSZ + b
            g = g + u[b * L:(b + 1) * L, :] * dww[t:t + 1, :]
        r = (a - PAD) * W                                       # multiple of 8
        if r == 0:
            z = z + g
        elif r > 0:
            z = z + jnp.concatenate(
                [g[r:, :], jnp.zeros((r, HIDDEN), f32)], axis=0)
        else:
            z = z + jnp.concatenate(
                [jnp.zeros((-r, HIDDEN), f32), g[:L + r, :]], axis=0)
    z = _gelu(z + dwb_ref[...])

    mlp = jnp.dot(y + z, fc2w_ref[...], preferred_element_type=f32) + fc2b_ref[...]
    o_ref[0] = (x1 + mlp).astype(o_ref.dtype)


def symwb_forward(x, params):
    """x: (B, L, C) tokens for an (H, W) grid; returns (B, L, C)."""
    b, l, c = x.shape

    def rep(shape):  # replicated (non-batch) operand, block == full array
        nd = len(shape)
        return pl.BlockSpec(shape, lambda i, _nd=nd: (0,) * _nd)

    in_specs = [
        pl.BlockSpec((1, l, c), lambda i: (i, 0, 0)),           # x
        rep((1, c)), rep((1, c)),                               # norm1 gamma/beta
        rep((c, 3 * c)), rep((1, 3 * c)),                       # qkv W, b
        rep((NUM_HEADS, l, l)),                                 # folded attn bias
        rep((c, c)), rep((1, c)),                               # proj W, b
        rep((1, c)), rep((1, c)),                               # norm2 gamma/beta
        rep((c, HIDDEN)), rep((1, HIDDEN)),                     # fc1 W, b
        rep((KSZ * l, l)),                                      # stacked col-shift mats
        rep((KSZ * KSZ, HIDDEN)), rep((1, HIDDEN)),             # dwconv W, b
        rep((HIDDEN, c)), rep((1, c)),                          # fc2 W, b
    ]
    return pl.pallas_call(
        symwb_kernel,
        out_shape=jax.ShapeDtypeStruct((b, l, c), x.dtype),
        grid=(b,),
        in_specs=in_specs,
        out_specs=pl.BlockSpec((1, l, c), lambda i: (i, 0, 0)),
        compiler_params=pltpu.CompilerParams(
            dimension_semantics=("parallel",)),                 # v7x: 2 TCs
    )(x, params["norm1_g"], params["norm1_b"],
      params["wqkv"], params["bqkv"], params["attn_bias"],
      params["wproj"], params["bproj"], params["norm2_g"], params["norm2_b"],
      params["fc1_w"], params["fc1_b"], params["col_shift"],
      params["dw_w"], params["dw_b"], params["fc2_w"], params["fc2_b"])


# --------------------------------- params ------------------------------------
def init_params(key):
    ks = jax.random.split(key, 10)
    nrm = lambda k, s: (0.02 * jax.random.normal(k, s)).astype(jnp.float32)

    table = nrm(ks[0], ((2 * WINDOW - 1) * (2 * WINDOW - 1), NUM_HEADS))
    rel_idx = relative_position_index(WINDOW)                  # (N, N) numpy
    rel_bias = table[rel_idx.reshape(-1)].reshape(N, N, NUM_HEADS)
    rel_bias = jnp.transpose(rel_bias, (2, 0, 1))              # (heads, N, N)
    mask = jnp.asarray(calculate_mask(H, W, WINDOW, SHIFT))    # (NW, N, N)
    attn_bias = build_full_attn_bias(np.asarray(rel_bias), np.asarray(mask))

    return {
        "norm1_g": jnp.ones((1, DIM), jnp.float32),
        "norm1_b": jnp.zeros((1, DIM), jnp.float32),
        "norm2_g": jnp.ones((1, DIM), jnp.float32),
        "norm2_b": jnp.zeros((1, DIM), jnp.float32),
        # linear weights stored as (in, out); kernels compute x @ W + b
        "wqkv": nrm(ks[1], (DIM, 3 * DIM)),
        "bqkv": nrm(ks[2], (1, 3 * DIM)),
        "wproj": nrm(ks[3], (DIM, DIM)),
        "bproj": nrm(ks[4], (1, DIM)),
        "rel_bias": rel_bias,                  # used by pure-JAX reference
        "attn_mask": mask,                     # used by pure-JAX reference
        "attn_bias": jnp.asarray(attn_bias),   # used by the fused kernel
        "col_shift": jnp.asarray(build_col_shift_mats()),
        "fc1_w": nrm(ks[5], (DIM, HIDDEN)),
        "fc1_b": nrm(ks[6], (1, HIDDEN)),
        # depthwise 5x5 taps flattened to (25, HIDDEN)  (== torch (HIDDEN,1,5,5))
        "dw_w": nrm(ks[7], (KSZ * KSZ, HIDDEN)),
        "dw_b": nrm(ks[8], (1, HIDDEN)),
        "fc2_w": nrm(ks[9], (HIDDEN, DIM)),
        "fc2_b": jnp.zeros((1, DIM), jnp.float32),
    }


# ------------------------- pure-JAX reference (correctness) -------------------
def symwb_reference(x, params):
    b, l, c = x.shape

    def ln(t, g, bt):
        m = jnp.mean(t, -1, keepdims=True)
        v = jnp.mean(jnp.square(t - m), -1, keepdims=True)
        return (t - m) * jax.lax.rsqrt(v + LN_EPS) * g + bt

    shortcut = x
    xn = ln(x, params["norm1_g"], params["norm1_b"])
    xi = jnp.roll(xn.reshape(b, H, W, c), (-SHIFT, -SHIFT), axis=(1, 2))
    xw = window_partition_j(xi, WINDOW).reshape(-1, N, c)
    qkv = jnp.einsum("bnc,cd->bnd", xw, params["wqkv"], precision=HP) + params["bqkv"]
    mask = jnp.tile(params["attn_mask"], (b, 1, 1))
    heads = []
    for h in range(NUM_HEADS):
        q = qkv[..., h * HEAD_DIM:(h + 1) * HEAD_DIM] * SCALE
        k = qkv[..., DIM + h * HEAD_DIM:DIM + (h + 1) * HEAD_DIM]
        v = qkv[..., 2 * DIM + h * HEAD_DIM:2 * DIM + (h + 1) * HEAD_DIM]
        attn = jnp.einsum("bnd,bmd->bnm", q, k, precision=HP)
        attn = jax.nn.softmax(attn + params["rel_bias"][h][None] + mask, axis=-1)
        heads.append(jnp.einsum("bnm,bmd->bnd", attn, v, precision=HP))
    aw = jnp.concatenate(heads, axis=-1)
    aw = jnp.einsum("bnc,cd->bnd", aw, params["wproj"], precision=HP) + params["bproj"]
    xi = window_reverse_j(aw.reshape(-1, WINDOW, WINDOW, c), WINDOW, H, W)
    xi = jnp.roll(xi, (SHIFT, SHIFT), axis=(1, 2))
    x1 = shortcut + xi.reshape(b, l, c)

    xn2 = ln(x1, params["norm2_g"], params["norm2_b"])
    y = _gelu(jnp.einsum("blc,ch->blh", xn2, params["fc1_w"], precision=HP)
              + params["fc1_b"])
    yp = jnp.pad(y.reshape(b, H, W, HIDDEN), ((0, 0), (2, 2), (2, 2), (0, 0)))
    acc = jnp.zeros((b, H, W, HIDDEN), jnp.float32)
    for a in range(KSZ):
        for bb in range(KSZ):
            acc = acc + yp[:, a:a + H, bb:bb + W, :] * params["dw_w"][a * KSZ + bb]
    z = _gelu(acc + params["dw_b"]).reshape(b, l, HIDDEN)
    mlp = jnp.einsum("blh,hc->blc", y + z, params["fc2_w"], precision=HP) + params["fc2_b"]
    return x1 + mlp


# ----------------------------------- main -------------------------------------
if __name__ == "__main__":
    key = jax.random.PRNGKey(0)
    kx, kp = jax.random.split(key)
    x = jax.random.normal(kx, (B, L, DIM), dtype=jnp.float32)
    params = init_params(kp)

    out = jax.jit(symwb_forward)(x, params)
    out = jax.block_until_ready(out)
    assert out.shape == (B, L, DIM)
    assert bool(jnp.all(jnp.isfinite(out)))

    ref = jax.block_until_ready(jax.jit(symwb_reference)(x, params))
    np.testing.assert_allclose(np.asarray(out), np.asarray(ref),
                               rtol=1e-3, atol=1e-3)
    print("KERNEL_OK")
</pallas_src>

<mosaic_0001>
module attributes {stable_mosaic.version = 11 : i64} {
  func.func @symwb_kernel(%arg0: i32, %arg1: memref<1x64x16xf32, #tpu.memory_space<vmem>>, %arg2: memref<1x16xf32, #tpu.memory_space<vmem>>, %arg3: memref<1x16xf32, #tpu.memory_space<vmem>>, %arg4: memref<16x48xf32, #tpu.memory_space<vmem>>, %arg5: memref<1x48xf32, #tpu.memory_space<vmem>>, %arg6: memref<2x64x64xf32, #tpu.memory_space<vmem>>, %arg7: memref<16x16xf32, #tpu.memory_space<vmem>>, %arg8: memref<1x16xf32, #tpu.memory_space<vmem>>, %arg9: memref<1x16xf32, #tpu.memory_space<vmem>>, %arg10: memref<1x16xf32, #tpu.memory_space<vmem>>, %arg11: memref<16x32xf32, #tpu.memory_space<vmem>>, %arg12: memref<1x32xf32, #tpu.memory_space<vmem>>, %arg13: memref<320x64xf32, #tpu.memory_space<vmem>>, %arg14: memref<25x32xf32, #tpu.memory_space<vmem>>, %arg15: memref<1x32xf32, #tpu.memory_space<vmem>>, %arg16: memref<32x16xf32, #tpu.memory_space<vmem>>, %arg17: memref<1x16xf32, #tpu.memory_space<vmem>>, %arg18: memref<1x64x16xf32, #tpu.memory_space<vmem>>) attributes {dimension_semantics = [#tpu.dimension_semantics<parallel>], iteration_bounds = array<i64: 2>, scalar_prefetch = 0 : i64, scratch_operands = 0 : i64, tpu.core_type = #tpu.core_type<tc>, window_params = [{transform_indices = @transform_0, window_bounds = array<i64: 1, 64, 16>}, {pipeline_mode = #tpu.pipeline_mode<synchronous>, transform_indices = @transform_1, window_bounds = array<i64: 1, 16>}, {pipeline_mode = #tpu.pipeline_mode<synchronous>, transform_indices = @transform_2, window_bounds = array<i64: 1, 16>}, {pipeline_mode = #tpu.pipeline_mode<synchronous>, transform_indices = @transform_3, window_bounds = array<i64: 16, 48>}, {pipeline_mode = #tpu.pipeline_mode<synchronous>, transform_indices = @transform_4, window_bounds = array<i64: 1, 48>}, {pipeline_mode = #tpu.pipeline_mode<synchronous>, transform_indices = @transform_5, window_bounds = array<i64: 2, 64, 64>}, {pipeline_mode = #tpu.pipeline_mode<synchronous>, transform_indices = @transform_6, window_bounds = array<i64: 16, 16>}, {pipeline_mode = #tpu.pipeline_mode<synchronous>, transform_indices = @transform_7, window_bounds = array<i64: 1, 16>}, {pipeline_mode = #tpu.pipeline_mode<synchronous>, transform_indices = @transform_8, window_bounds = array<i64: 1, 16>}, {pipeline_mode = #tpu.pipeline_mode<synchronous>, transform_indices = @transform_9, window_bounds = array<i64: 1, 16>}, {pipeline_mode = #tpu.pipeline_mode<synchronous>, transform_indices = @transform_10, window_bounds = array<i64: 16, 32>}, {pipeline_mode = #tpu.pipeline_mode<synchronous>, transform_indices = @transform_11, window_bounds = array<i64: 1, 32>}, {pipeline_mode = #tpu.pipeline_mode<synchronous>, transform_indices = @transform_12, window_bounds = array<i64: 320, 64>}, {pipeline_mode = #tpu.pipeline_mode<synchronous>, transform_indices = @transform_13, window_bounds = array<i64: 25, 32>}, {pipeline_mode = #tpu.pipeline_mode<synchronous>, transform_indices = @transform_14, window_bounds = array<i64: 1, 32>}, {pipeline_mode = #tpu.pipeline_mode<synchronous>, transform_indices = @transform_15, window_bounds = array<i64: 32, 16>}, {pipeline_mode = #tpu.pipeline_mode<synchronous>, transform_indices = @transform_16, window_bounds = array<i64: 1, 16>}, {transform_indices = @transform_17, window_bounds = array<i64: 1, 64, 16>}]} {
    %c0 = arith.constant 0 : index
    %c0_0 = arith.constant 0 : index
    %c0_1 = arith.constant 0 : index
    %0 = vector.load %arg1[%c0, %c0_0, %c0_1] : memref<1x64x16xf32, #tpu.memory_space<vmem>>, vector<1x64x16xf32>
    %1 = vector.shape_cast %0 : vector<1x64x16xf32> to vector<64x16xf32>
    %c0_2 = arith.constant 0 : index
    %c0_3 = arith.constant 0 : index
    %2 = vector.load %arg2[%c0_2, %c0_3] : memref<1x16xf32, #tpu.memory_space<vmem>>, vector<1x16xf32>
    %c0_4 = arith.constant 0 : index
    %c0_5 = arith.constant 0 : index
    %3 = vector.load %arg3[%c0_4, %c0_5] : memref<1x16xf32, #tpu.memory_space<vmem>>, vector<1x16xf32>
    %cst = arith.constant dense<0.000000e+00> : vector<64xf32>
    %4 = vector.multi_reduction <add>, %1, %cst [1] : vector<64x16xf32> to vector<64xf32>
    %5 = vector.shape_cast %4 : vector<64xf32> to vector<64x1xf32>
    %cst_6 = arith.constant 1.600000e+01 : f32
    %6 = vector.broadcast %cst_6 : f32 to vector<64x1xf32>
    %7 = arith.divf %5, %6 : vector<64x1xf32>
    %8 = vector.broadcast %7 : vector<64x1xf32> to vector<64x16xf32>
    %9 = arith.subf %1, %8 : vector<64x16xf32>
    %10 = arith.mulf %9, %9 : vector<64x16xf32>
    %cst_7 = arith.constant dense<0.000000e+00> : vector<64xf32>
    %11 = vector.multi_reduction <add>, %10, %cst_7 [1] : vector<64x16xf32> to vector<64xf32>
    %12 = vector.shape_cast %11 : vector<64xf32> to vector<64x1xf32>
    %cst_8 = arith.constant 1.600000e+01 : f32
    %13 = vector.broadcast %cst_8 : f32 to vector<64x1xf32>
    %14 = arith.divf %12, %13 : vector<64x1xf32>
    %15 = vector.broadcast %7 : vector<64x1xf32> to vector<64x16xf32>
    %16 = arith.subf %1, %15 : vector<64x16xf32>
    %cst_9 = arith.constant 9.99999974E-6 : f32
    %17 = vector.broadcast %cst_9 : f32 to vector<64x1xf32>
    %18 = arith.addf %14, %17 : vector<64x1xf32>
    %19 = math.rsqrt %18 : vector<64x1xf32>
    %20 = vector.broadcast %19 : vector<64x1xf32> to vector<64x16xf32>
    %21 = arith.mulf %16, %20 : vector<64x16xf32>
    %22 = vector.broadcast %2 : vector<1x16xf32> to vector<64x16xf32>
    %23 = arith.mulf %21, %22 : vector<64x16xf32>
    %24 = vector.broadcast %3 : vector<1x16xf32> to vector<64x16xf32>
    %25 = arith.addf %23, %24 : vector<64x16xf32>
    %c0_10 = arith.constant 0 : index
    %c0_11 = arith.constant 0 : index
    %26 = vector.load %arg4[%c0_10, %c0_11] : memref<16x48xf32, #tpu.memory_space<vmem>>, vector<16x48xf32>
    %cst_12 = arith.constant dense<0.000000e+00> : vector<64x48xf32>
    %27 = tpu.matmul %25, %26, %cst_12 {dimension_numbers = #tpu.dot_dimension_numbers<[1], [0], [0], [1], [0, 0, 1, 1], [], []>} : vector<64x16xf32>, vector<16x48xf32>, vector<64x48xf32> -> vector<64x48xf32>
    %c0_13 = arith.constant 0 : index
    %c0_14 = arith.constant 0 : index
    %28 = vector.load %arg5[%c0_13, %c0_14] : memref<1x48xf32, #tpu.memory_space<vmem>>, vector<1x48xf32>
    %29 = vector.broadcast %28 : vector<1x48xf32> to vector<64x48xf32>
    %30 = arith.addf %27, %29 : vector<64x48xf32>
    %c0_15 = arith.constant 0 : index
    %c0_16 = arith.constant 0 : index
    %31 = vector.load %arg7[%c0_15, %c0_16] : memref<16x16xf32, #tpu.memory_space<vmem>>, vector<16x16xf32>
    %cst_17 = arith.constant 0.000000e+00 : f32
    %32 = vector.broadcast %cst_17 : f32 to vector<64x16xf32>
    %33 = vector.extract_strided_slice %30 {offsets = [0, 0], sizes = [64, 8], strides = [1, 1]} : vector<64x48xf32> to vector<64x8xf32>
    %cst_18 = arith.constant 0.353553385 : f32
    %34 = vector.broadcast %cst_18 : f32 to vector<64x8xf32>
    %35 = arith.mulf %33, %34 : vector<64x8xf32>
    %36 = vector.extract_strided_slice %30 {offsets = [0, 16], sizes = [64, 8], strides = [1, 1]} : vector<64x48xf32> to vector<64x8xf32>
    %37 = vector.extract_strided_slice %30 {offsets = [0, 32], sizes = [64, 8], strides = [1, 1]} : vector<64x48xf32> to vector<64x8xf32>
    %cst_19 = arith.constant dense<0.000000e+00> : vector<64x64xf32>
    %38 = tpu.matmul %35, %36, %cst_19 {dimension_numbers = #tpu.dot_dimension_numbers<[1], [1], [0], [0], [0, 0, 1, 0], [], []>} : vector<64x8xf32>, vector<64x8xf32>, vector<64x64xf32> -> vector<64x64xf32>
    %c0_20 = arith.constant 0 : index
    %c0_21 = arith.constant 0 : index
    %c0_22 = arith.constant 0 : index
    %39 = vector.load %arg6[%c0_20, %c0_21, %c0_22] : memref<2x64x64xf32, #tpu.memory_space<vmem>>, vector<1x64x64xf32>
    %40 = vector.shape_cast %39 : vector<1x64x64xf32> to vector<64x64xf32>
    %41 = arith.addf %38, %40 : vector<64x64xf32>
    %cst_23 = arith.constant dense<0xFF800000> : vector<64xf32>
    %42 = vector.multi_reduction <maximumf>, %41, %cst_23 [1] : vector<64x64xf32> to vector<64xf32>
    %cst_24 = arith.constant 0xFF800000 : f32
    %43 = vector.broadcast %cst_24 : f32 to vector<64xf32>
    %44 = arith.maximumf %43, %42 : vector<64xf32>
    %45 = vector.shape_cast %44 : vector<64xf32> to vector<64x1xf32>
    %46 = vector.broadcast %45 : vector<64x1xf32> to vector<64x64xf32>
    %47 = arith.subf %41, %46 : vector<64x64xf32>
    %48 = math.exp %47 : vector<64x64xf32>
    %cst_25 = arith.constant dense<0.000000e+00> : vector<64xf32>
    %49 = vector.multi_reduction <add>, %48, %cst_25 [1] : vector<64x64xf32> to vector<64xf32>
    %50 = vector.shape_cast %49 : vector<64xf32> to vector<64x1xf32>
    %51 = vector.broadcast %50 : vector<64x1xf32> to vector<64x64xf32>
    %52 = arith.divf %48, %51 : vector<64x64xf32>
    %cst_26 = arith.constant dense<0.000000e+00> : vector<64x8xf32>
    %53 = tpu.matmul %52, %37, %cst_26 {dimension_numbers = #tpu.dot_dimension_numbers<[1], [0], [0], [1], [0, 0, 1, 1], [], []>} : vector<64x64xf32>, vector<64x8xf32>, vector<64x8xf32> -> vector<64x8xf32>
    %54 = vector.extract_strided_slice %31 {offsets = [0, 0], sizes = [8, 16], strides = [1, 1]} : vector<16x16xf32> to vector<8x16xf32>
    %cst_27 = arith.constant dense<0.000000e+00> : vector<64x16xf32>
    %55 = tpu.matmul %53, %54, %cst_27 {dimension_numbers = #tpu.dot_dimension_numbers<[1], [0], [0], [1], [0, 0, 1, 1], [], []>} : vector<64x8xf32>, vector<8x16xf32>, vector<64x16xf32> -> vector<64x16xf32>
    %56 = arith.addf %32, %55 : vector<64x16xf32>
    %57 = vector.extract_strided_slice %30 {offsets = [0, 8], sizes = [64, 8], strides = [1, 1]} : vector<64x48xf32> to vector<64x8xf32>
    %cst_28 = arith.constant 0.353553385 : f32
    %58 = vector.broadcast %cst_28 : f32 to vector<64x8xf32>
    %59 = arith.mulf %57, %58 : vector<64x8xf32>
    %60 = vector.extract_strided_slice %30 {offsets = [0, 24], sizes = [64, 8], strides = [1, 1]} : vector<64x48xf32> to vector<64x8xf32>
    %61 = vector.extract_strided_slice %30 {offsets = [0, 40], sizes = [64, 8], strides = [1, 1]} : vector<64x48xf32> to vector<64x8xf32>
    %cst_29 = arith.constant dense<0.000000e+00> : vector<64x64xf32>
    %62 = tpu.matmul %59, %60, %cst_29 {dimension_numbers = #tpu.dot_dimension_numbers<[1], [1], [0], [0], [0, 0, 1, 0], [], []>} : vector<64x8xf32>, vector<64x8xf32>, vector<64x64xf32> -> vector<64x64xf32>
    %c1 = arith.constant 1 : index
    %c0_30 = arith.constant 0 : index
    %c0_31 = arith.constant 0 : index
    %63 = vector.load %arg6[%c1, %c0_30, %c0_31] : memref<2x64x64xf32, #tpu.memory_space<vmem>>, vector<1x64x64xf32>
    %64 = vector.shape_cast %63 : vector<1x64x64xf32> to vector<64x64xf32>
    %65 = arith.addf %62, %64 : vector<64x64xf32>
    %cst_32 = arith.constant dense<0xFF800000> : vector<64xf32>
    %66 = vector.multi_reduction <maximumf>, %65, %cst_32 [1] : vector<64x64xf32> to vector<64xf32>
    %cst_33 = arith.constant 0xFF800000 : f32
    %67 = vector.broadcast %cst_33 : f32 to vector<64xf32>
    %68 = arith.maximumf %67, %66 : vector<64xf32>
    %69 = vector.shape_cast %68 : vector<64xf32> to vector<64x1xf32>
    %70 = vector.broadcast %69 : vector<64x1xf32> to vector<64x64xf32>
    %71 = arith.subf %65, %70 : vector<64x64xf32>
    %72 = math.exp %71 : vector<64x64xf32>
    %cst_34 = arith.constant dense<0.000000e+00> : vector<64xf32>
    %73 = vector.multi_reduction <add>, %72, %cst_34 [1] : vector<64x64xf32> to vector<64xf32>
    %74 = vector.shape_cast %73 : vector<64xf32> to vector<64x1xf32>
    %75 = vector.broadcast %74 : vector<64x1xf32> to vector<64x64xf32>
    %76 = arith.divf %72, %75 : vector<64x64xf32>
    %cst_35 = arith.constant dense<0.000000e+00> : vector<64x8xf32>
    %77 = tpu.matmul %76, %61, %cst_35 {dimension_numbers = #tpu.dot_dimension_numbers<[1], [0], [0], [1], [0, 0, 1, 1], [], []>} : vector<64x64xf32>, vector<64x8xf32>, vector<64x8xf32> -> vector<64x8xf32>
    %78 = vector.extract_strided_slice %31 {offsets = [8, 0], sizes = [8, 16], strides = [1, 1]} : vector<16x16xf32> to vector<8x16xf32>
    %cst_36 = arith.constant dense<0.000000e+00> : vector<64x16xf32>
    %79 = tpu.matmul %77, %78, %cst_36 {dimension_numbers = #tpu.dot_dimension_numbers<[1], [0], [0], [1], [0, 0, 1, 1], [], []>} : vector<64x8xf32>, vector<8x16xf32>, vector<64x16xf32> -> vector<64x16xf32>
    %80 = arith.addf %56, %79 : vector<64x16xf32>
    %81 = arith.addf %1, %80 : vector<64x16xf32>
    %c0_37 = arith.constant 0 : index
    %c0_38 = arith.constant 0 : index
    %82 = vector.load %arg8[%c0_37, %c0_38] : memref<1x16xf32, #tpu.memory_space<vmem>>, vector<1x16xf32>
    %83 = vector.broadcast %82 : vector<1x16xf32> to vector<64x16xf32>
    %84 = arith.addf %81, %83 : vector<64x16xf32>
    %c0_39 = arith.constant 0 : index
    %c0_40 = arith.constant 0 : index
    %85 = vector.load %arg9[%c0_39, %c0_40] : memref<1x16xf32, #tpu.memory_space<vmem>>, vector<1x16xf32>
    %c0_41 = arith.constant 0 : index
    %c0_42 = arith.constant 0 : index
    %86 = vector.load %arg10[%c0_41, %c0_42] : memref<1x16xf32, #tpu.memory_space<vmem>>, vector<1x16xf32>
    %cst_43 = arith.constant dense<0.000000e+00> : vector<64xf32>
    %87 = vector.multi_reduction <add>, %84, %cst_43 [1] : vector<64x16xf32> to vector<64xf32>
    %88 = vector.shape_cast %87 : vector<64xf32> to vector<64x1xf32>
    %cst_44 = arith.constant 1.600000e+01 : f32
    %89 = vector.broadcast %cst_44 : f32 to vector<64x1xf32>
    %90 = arith.divf %88, %89 : vector<64x1xf32>
    %91 = vector.broadcast %90 : vector<64x1xf32> to vector<64x16xf32>
    %92 = arith.subf %84, %91 : vector<64x16xf32>
    %93 = arith.mulf %92, %92 : vector<64x16xf32>
    %cst_45 = arith.constant dense<0.000000e+00> : vector<64xf32>
    %94 = vector.multi_reduction <add>, %93, %cst_45 [1] : vector<64x16xf32> to vector<64xf32>
    %95 = vector.shape_cast %94 : vector<64xf32> to vector<64x1xf32>
    %cst_46 = arith.constant 1.600000e+01 : f32
    %96 = vector.broadcast %cst_46 : f32 to vector<64x1xf32>
    %97 = arith.divf %95, %96 : vector<64x1xf32>
    %98 = vector.broadcast %90 : vector<64x1xf32> to vector<64x16xf32>
    %99 = arith.subf %84, %98 : vector<64x16xf32>
    %cst_47 = arith.constant 9.99999974E-6 : f32
    %100 = vector.broadcast %cst_47 : f32 to vector<64x1xf32>
    %101 = arith.addf %97, %100 : vector<64x1xf32>
    %102 = math.rsqrt %101 : vector<64x1xf32>
    %103 = vector.broadcast %102 : vector<64x1xf32> to vector<64x16xf32>
    %104 = arith.mulf %99, %103 : vector<64x16xf32>
    %105 = vector.broadcast %85 : vector<1x16xf32> to vector<64x16xf32>
    %106 = arith.mulf %104, %105 : vector<64x16xf32>
    %107 = vector.broadcast %86 : vector<1x16xf32> to vector<64x16xf32>
    %108 = arith.addf %106, %107 : vector<64x16xf32>
    %c0_48 = arith.constant 0 : index
    %c0_49 = arith.constant 0 : index
    %109 = vector.load %arg11[%c0_48, %c0_49] : memref<16x32xf32, #tpu.memory_space<vmem>>, vector<16x32xf32>
    %cst_50 = arith.constant dense<0.000000e+00> : vector<64x32xf32>
    %110 = tpu.matmul %108, %109, %cst_50 {dimension_numbers = #tpu.dot_dimension_numbers<[1], [0], [0], [1], [0, 0, 1, 1], [], []>} : vector<64x16xf32>, vector<16x32xf32>, vector<64x32xf32> -> vector<64x32xf32>
    %c0_51 = arith.constant 0 : index
    %c0_52 = arith.constant 0 : index
    %111 = vector.load %arg12[%c0_51, %c0_52] : memref<1x32xf32, #tpu.memory_space<vmem>>, vector<1x32xf32>
    %112 = vector.broadcast %111 : vector<1x32xf32> to vector<64x32xf32>
    %113 = arith.addf %110, %112 : vector<64x32xf32>
    %cst_53 = arith.constant 5.000000e-01 : f32
    %114 = vector.broadcast %cst_53 : f32 to vector<64x32xf32>
    %115 = arith.mulf %114, %113 : vector<64x32xf32>
    %cst_54 = arith.constant 0.707106769 : f32
    %116 = vector.broadcast %cst_54 : f32 to vector<64x32xf32>
    %117 = arith.mulf %113, %116 : vector<64x32xf32>
    %118 = math.erf %117 : vector<64x32xf32>
    %cst_55 = arith.constant 1.000000e+00 : f32
    %119 = vector.broadcast %cst_55 : f32 to vector<64x32xf32>
    %120 = arith.addf %119, %118 : vector<64x32xf32>
    %121 = arith.mulf %115, %120 : vector<64x32xf32>
    %c0_56 = arith.constant 0 : index
    %c0_57 = arith.constant 0 : index
    %122 = vector.load %arg13[%c0_56, %c0_57] : memref<320x64xf32, #tpu.memory_space<vmem>>, vector<320x64xf32>
    %cst_58 = arith.constant dense<0.000000e+00> : vector<320x32xf32>
    %123 = tpu.matmul %122, %121, %cst_58 {dimension_numbers = #tpu.dot_dimension_numbers<[1], [0], [0], [1], [0, 0, 1, 1], [], []>} : vector<320x64xf32>, vector<64x32xf32>, vector<320x32xf32> -> vector<320x32xf32>
    %c0_59 = arith.constant 0 : index
    %c0_60 = arith.constant 0 : index
    %124 = vector.load %arg14[%c0_59, %c0_60] : memref<25x32xf32, #tpu.memory_space<vmem>>, vector<25x32xf32>
    %cst_61 = arith.constant 0.000000e+00 : f32
    %125 = vector.broadcast %cst_61 : f32 to vector<64x32xf32>
    %cst_62 = arith.constant 0.000000e+00 : f32
    %126 = vector.broadcast %cst_62 : f32 to vector<64x32xf32>
    %127 = vector.extract_strided_slice %123 {offsets = [0, 0], sizes = [64, 32], strides = [1, 1]} : vector<320x32xf32> to vector<64x32xf32>
    %128 = vector.extract_strided_slice %124 {offsets = [0, 0], sizes = [1, 32], strides = [1, 1]} : vector<25x32xf32> to vector<1x32xf32>
    %129 = vector.broadcast %128 : vector<1x32xf32> to vector<64x32xf32>
    %130 = arith.mulf %127, %129 : vector<64x32xf32>
    %131 = arith.addf %126, %130 : vector<64x32xf32>
    %132 = vector.extract_strided_slice %123 {offsets = [64, 0], sizes = [64, 32], strides = [1, 1]} : vector<320x32xf32> to vector<64x32xf32>
    %133 = vector.extract_strided_slice %124 {offsets = [1, 0], sizes = [1, 32], strides = [1, 1]} : vector<25x32xf32> to vector<1x32xf32>
    %134 = vector.broadcast %133 : vector<1x32xf32> to vector<64x32xf32>
    %135 = arith.mulf %132, %134 : vector<64x32xf32>
    %136 = arith.addf %131, %135 : vector<64x32xf32>
    %137 = vector.extract_strided_slice %123 {offsets = [128, 0], sizes = [64, 32], strides = [1, 1]} : vector<320x32xf32> to vector<64x32xf32>
    %138 = vector.extract_strided_slice %124 {offsets = [2, 0], sizes = [1, 32], strides = [1, 1]} : vector<25x32xf32> to vector<1x32xf32>
    %139 = vector.broadcast %138 : vector<1x32xf32> to vector<64x32xf32>
    %140 = arith.mulf %137, %139 : vector<64x32xf32>
    %141 = arith.addf %136, %140 : vector<64x32xf32>
    %142 = vector.extract_strided_slice %123 {offsets = [192, 0], sizes = [64, 32], strides = [1, 1]} : vector<320x32xf32> to vector<64x32xf32>
    %143 = vector.extract_strided_slice %124 {offsets = [3, 0], sizes = [1, 32], strides = [1, 1]} : vector<25x32xf32> to vector<1x32xf32>
    %144 = vector.broadcast %143 : vector<1x32xf32> to vector<64x32xf32>
    %145 = arith.mulf %142, %144 : vector<64x32xf32>
    %146 = arith.addf %141, %145 : vector<64x32xf32>
    %147 = vector.extract_strided_slice %123 {offsets = [256, 0], sizes = [64, 32], strides = [1, 1]} : vector<320x32xf32> to vector<64x32xf32>
    %148 = vector.extract_strided_slice %124 {offsets = [4, 0], sizes = [1, 32], strides = [1, 1]} : vector<25x32xf32> to vector<1x32xf32>
    %149 = vector.broadcast %148 : vector<1x32xf32> to vector<64x32xf32>
    %150 = arith.mulf %147, %149 : vector<64x32xf32>
    %151 = arith.addf %146, %150 : vector<64x32xf32>
    %cst_63 = arith.constant 0.000000e+00 : f32
    %152 = vector.broadcast %cst_63 : f32 to vector<16x32xf32>
    %153 = vector.extract_strided_slice %151 {offsets = [0, 0], sizes = [48, 32], strides = [1, 1]} : vector<64x32xf32> to vector<48x32xf32>
    %154 = tpu.concatenate %152, %153 in 0 : vector<16x32xf32>, vector<48x32xf32> -> vector<64x32xf32>
    %155 = arith.addf %125, %154 : vector<64x32xf32>
    %cst_64 = arith.constant 0.000000e+00 : f32
    %156 = vector.broadcast %cst_64 : f32 to vector<64x32xf32>
    %157 = vector.extract_strided_slice %123 {offsets = [0, 0], sizes = [64, 32], strides = [1, 1]} : vector<320x32xf32> to vector<64x32xf32>
    %158 = vector.extract_strided_slice %124 {offsets = [5, 0], sizes = [1, 32], strides = [1, 1]} : vector<25x32xf32> to vector<1x32xf32>
    %159 = vector.broadcast %158 : vector<1x32xf32> to vector<64x32xf32>
    %160 = arith.mulf %157, %159 : vector<64x32xf32>
    %161 = arith.addf %156, %160 : vector<64x32xf32>
    %162 = vector.extract_strided_slice %123 {offsets = [64, 0], sizes = [64, 32], strides = [1, 1]} : vector<320x32xf32> to vector<64x32xf32>
    %163 = vector.extract_strided_slice %124 {offsets = [6, 0], sizes = [1, 32], strides = [1, 1]} : vector<25x32xf32> to vector<1x32xf32>
    %164 = vector.broadcast %163 : vector<1x32xf32> to vector<64x32xf32>
    %165 = arith.mulf %162, %164 : vector<64x32xf32>
    %166 = arith.addf %161, %165 : vector<64x32xf32>
    %167 = vector.extract_strided_slice %123 {offsets = [128, 0], sizes = [64, 32], strides = [1, 1]} : vector<320x32xf32> to vector<64x32xf32>
    %168 = vector.extract_strided_slice %124 {offsets = [7, 0], sizes = [1, 32], strides = [1, 1]} : vector<25x32xf32> to vector<1x32xf32>
    %169 = vector.broadcast %168 : vector<1x32xf32> to vector<64x32xf32>
    %170 = arith.mulf %167, %169 : vector<64x32xf32>
    %171 = arith.addf %166, %170 : vector<64x32xf32>
    %172 = vector.extract_strided_slice %123 {offsets = [192, 0], sizes = [64, 32], strides = [1, 1]} : vector<320x32xf32> to vector<64x32xf32>
    %173 = vector.extract_strided_slice %124 {offsets = [8, 0], sizes = [1, 32], strides = [1, 1]} : vector<25x32xf32> to vector<1x32xf32>
    %174 = vector.broadcast %173 : vector<1x32xf32> to vector<64x32xf32>
    %175 = arith.mulf %172, %174 : vector<64x32xf32>
    %176 = arith.addf %171, %175 : vector<64x32xf32>
    %177 = vector.extract_strided_slice %123 {offsets = [256, 0], sizes = [64, 32], strides = [1, 1]} : vector<320x32xf32> to vector<64x32xf32>
    %178 = vector.extract_strided_slice %124 {offsets = [9, 0], sizes = [1, 32], strides = [1, 1]} : vector<25x32xf32> to vector<1x32xf32>
    %179 = vector.broadcast %178 : vector<1x32xf32> to vector<64x32xf32>
    %180 = arith.mulf %177, %179 : vector<64x32xf32>
    %181 = arith.addf %176, %180 : vector<64x32xf32>
    %cst_65 = arith.constant 0.000000e+00 : f32
    %182 = vector.broadcast %cst_65 : f32 to vector<8x32xf32>
    %183 = vector.extract_strided_slice %181 {offsets = [0, 0], sizes = [56, 32], strides = [1, 1]} : vector<64x32xf32> to vector<56x32xf32>
    %184 = tpu.concatenate %182, %183 in 0 : vector<8x32xf32>, vector<56x32xf32> -> vector<64x32xf32>
    %185 = arith.addf %155, %184 : vector<64x32xf32>
    %cst_66 = arith.constant 0.000000e+00 : f32
    %186 = vector.broadcast %cst_66 : f32 to vector<64x32xf32>
    %187 = vector.extract_strided_slice %123 {offsets = [0, 0], sizes = [64, 32], strides = [1, 1]} : vector<320x32xf32> to vector<64x32xf32>
    %188 = vector.extract_strided_slice %124 {offsets = [10, 0], sizes = [1, 32], strides = [1, 1]} : vector<25x32xf32> to vector<1x32xf32>
    %189 = vector.broadcast %188 : vector<1x32xf32> to vector<64x32xf32>
    %190 = arith.mulf %187, %189 : vector<64x32xf32>
    %191 = arith.addf %186, %190 : vector<64x32xf32>
    %192 = vector.extract_strided_slice %123 {offsets = [64, 0], sizes = [64, 32], strides = [1, 1]} : vector<320x32xf32> to vector<64x32xf32>
    %193 = vector.extract_strided_slice %124 {offsets = [11, 0], sizes = [1, 32], strides = [1, 1]} : vector<25x32xf32> to vector<1x32xf32>
    %194 = vector.broadcast %193 : vector<1x32xf32> to vector<64x32xf32>
    %195 = arith.mulf %192, %194 : vector<64x32xf32>
    %196 = arith.addf %191, %195 : vector<64x32xf32>
    %197 = vector.extract_strided_slice %123 {offsets = [128, 0], sizes = [64, 32], strides = [1, 1]} : vector<320x32xf32> to vector<64x32xf32>
    %198 = vector.extract_strided_slice %124 {offsets = [12, 0], sizes = [1, 32], strides = [1, 1]} : vector<25x32xf32> to vector<1x32xf32>
    %199 = vector.broadcast %198 : vector<1x32xf32> to vector<64x32xf32>
    %200 = arith.mulf %197, %199 : vector<64x32xf32>
    %201 = arith.addf %196, %200 : vector<64x32xf32>
    %202 = vector.extract_strided_slice %123 {offsets = [192, 0], sizes = [64, 32], strides = [1, 1]} : vector<320x32xf32> to vector<64x32xf32>
    %203 = vector.extract_strided_slice %124 {offsets = [13, 0], sizes = [1, 32], strides = [1, 1]} : vector<25x32xf32> to vector<1x32xf32>
    %204 = vector.broadcast %203 : vector<1x32xf32> to vector<64x32xf32>
    %205 = arith.mulf %202, %204 : vector<64x32xf32>
    %206 = arith.addf %201, %205 : vector<64x32xf32>
    %207 = vector.extract_strided_slice %123 {offsets = [256, 0], sizes = [64, 32], strides = [1, 1]} : vector<320x32xf32> to vector<64x32xf32>
    %208 = vector.extract_strided_slice %124 {offsets = [14, 0], sizes = [1, 32], strides = [1, 1]} : vector<25x32xf32> to vector<1x32xf32>
    %209 = vector.broadcast %208 : vector<1x32xf32> to vector<64x32xf32>
    %210 = arith.mulf %207, %209 : vector<64x32xf32>
    %211 = arith.addf %206, %210 : vector<64x32xf32>
    %212 = arith.addf %185, %211 : vector<64x32xf32>
    %cst_67 = arith.constant 0.000000e+00 : f32
    %213 = vector.broadcast %cst_67 : f32 to vector<64x32xf32>
    %214 = vector.extract_strided_slice %123 {offsets = [0, 0], sizes = [64, 32], strides = [1, 1]} : vector<320x32xf32> to vector<64x32xf32>
    %215 = vector.extract_strided_slice %124 {offsets = [15, 0], sizes = [1, 32], strides = [1, 1]} : vector<25x32xf32> to vector<1x32xf32>
    %216 = vector.broadcast %215 : vector<1x32xf32> to vector<64x32xf32>
    %217 = arith.mulf %214, %216 : vector<64x32xf32>
    %218 = arith.addf %213, %217 : vector<64x32xf32>
    %219 = vector.extract_strided_slice %123 {offsets = [64, 0], sizes = [64, 32], strides = [1, 1]} : vector<320x32xf32> to vector<64x32xf32>
    %220 = vector.extract_strided_slice %124 {offsets = [16, 0], sizes = [1, 32], strides = [1, 1]} : vector<25x32xf32> to vector<1x32xf32>
    %221 = vector.broadcast %220 : vector<1x32xf32> to vector<64x32xf32>
    %222 = arith.mulf %219, %221 : vector<64x32xf32>
    %223 = arith.addf %218, %222 : vector<64x32xf32>
    %224 = vector.extract_strided_slice %123 {offsets = [128, 0], sizes = [64, 32], strides = [1, 1]} : vector<320x32xf32> to vector<64x32xf32>
    %225 = vector.extract_strided_slice %124 {offsets = [17, 0], sizes = [1, 32], strides = [1, 1]} : vector<25x32xf32> to vector<1x32xf32>
    %226 = vector.broadcast %225 : vector<1x32xf32> to vector<64x32xf32>
    %227 = arith.mulf %224, %226 : vector<64x32xf32>
    %228 = arith.addf %223, %227 : vector<64x32xf32>
    %229 = vector.extract_strided_slice %123 {offsets = [192, 0], sizes = [64, 32], strides = [1, 1]} : vector<320x32xf32> to vector<64x32xf32>
    %230 = vector.extract_strided_slice %124 {offsets = [18, 0], sizes = [1, 32], strides = [1, 1]} : vector<25x32xf32> to vector<1x32xf32>
    %231 = vector.broadcast %230 : vector<1x32xf32> to vector<64x32xf32>
    %232 = arith.mulf %229, %231 : vector<64x32xf32>
    %233 = arith.addf %228, %232 : vector<64x32xf32>
    %234 = vector.extract_strided_slice %123 {offsets = [256, 0], sizes = [64, 32], strides = [1, 1]} : vector<320x32xf32> to vector<64x32xf32>
    %235 = vector.extract_strided_slice %124 {offsets = [19, 0], sizes = [1, 32], strides = [1, 1]} : vector<25x32xf32> to vector<1x32xf32>
    %236 = vector.broadcast %235 : vector<1x32xf32> to vector<64x32xf32>
    %237 = arith.mulf %234, %236 : vector<64x32xf32>
    %238 = arith.addf %233, %237 : vector<64x32xf32>
    %239 = vector.extract_strided_slice %238 {offsets = [8, 0], sizes = [56, 32], strides = [1, 1]} : vector<64x32xf32> to vector<56x32xf32>
    %cst_68 = arith.constant 0.000000e+00 : f32
    %240 = vector.broadcast %cst_68 : f32 to vector<8x32xf32>
    %241 = tpu.concatenate %239, %240 in 0 : vector<56x32xf32>, vector<8x32xf32> -> vector<64x32xf32>
    %242 = arith.addf %212, %241 : vector<64x32xf32>
    %cst_69 = arith.constant 0.000000e+00 : f32
    %243 = vector.broadcast %cst_69 : f32 to vector<64x32xf32>
    %244 = vector.extract_strided_slice %123 {offsets = [0, 0], sizes = [64, 32], strides = [1, 1]} : vector<320x32xf32> to vector<64x32xf32>
    %245 = vector.extract_strided_slice %124 {offsets = [20, 0], sizes = [1, 32], strides = [1, 1]} : vector<25x32xf32> to vector<1x32xf32>
    %246 = vector.broadcast %245 : vector<1x32xf32> to vector<64x32xf32>
    %247 = arith.mulf %244, %246 : vector<64x32xf32>
    %248 = arith.addf %243, %247 : vector<64x32xf32>
    %249 = vector.extract_strided_slice %123 {offsets = [64, 0], sizes = [64, 32], strides = [1, 1]} : vector<320x32xf32> to vector<64x32xf32>
    %250 = vector.extract_strided_slice %124 {offsets = [21, 0], sizes = [1, 32], strides = [1, 1]} : vector<25x32xf32> to vector<1x32xf32>
    %251 = vector.broadcast %250 : vector<1x32xf32> to vector<64x32xf32>
    %252 = arith.mulf %249, %251 : vector<64x32xf32>
    %253 = arith.addf %248, %252 : vector<64x32xf32>
    %254 = vector.extract_strided_slice %123 {offsets = [128, 0], sizes = [64, 32], strides = [1, 1]} : vector<320x32xf32> to vector<64x32xf32>
    %255 = vector.extract_strided_slice %124 {offsets = [22, 0], sizes = [1, 32], strides = [1, 1]} : vector<25x32xf32> to vector<1x32xf32>
    %256 = vector.broadcast %255 : vector<1x32xf32> to vector<64x32xf32>
    %257 = arith.mulf %254, %256 : vector<64x32xf32>
    %258 = arith.addf %253, %257 : vector<64x32xf32>
    %259 = vector.extract_strided_slice %123 {offsets = [192, 0], sizes = [64, 32], strides = [1, 1]} : vector<320x32xf32> to vector<64x32xf32>
    %260 = vector.extract_strided_slice %124 {offsets = [23, 0], sizes = [1, 32], strides = [1, 1]} : vector<25x32xf32> to vector<1x32xf32>
    %261 = vector.broadcast %260 : vector<1x32xf32> to vector<64x32xf32>
    %262 = arith.mulf %259, %261 : vector<64x32xf32>
    %263 = arith.addf %258, %262 : vector<64x32xf32>
    %264 = vector.extract_strided_slice %123 {offsets = [256, 0], sizes = [64, 32], strides = [1, 1]} : vector<320x32xf32> to vector<64x32xf32>
    %265 = vector.extract_strided_slice %124 {offsets = [24, 0], sizes = [1, 32], strides = [1, 1]} : vector<25x32xf32> to vector<1x32xf32>
    %266 = vector.broadcast %265 : vector<1x32xf32> to vector<64x32xf32>
    %267 = arith.mulf %264, %266 : vector<64x32xf32>
    %268 = arith.addf %263, %267 : vector<64x32xf32>
    %269 = vector.extract_strided_slice %268 {offsets = [16, 0], sizes = [48, 32], strides = [1, 1]} : vector<64x32xf32> to vector<48x32xf32>
    %cst_70 = arith.constant 0.000000e+00 : f32
    %270 = vector.broadcast %cst_70 : f32 to vector<16x32xf32>
    %271 = tpu.concatenate %269, %270 in 0 : vector<48x32xf32>, vector<16x32xf32> -> vector<64x32xf32>
    %272 = arith.addf %242, %271 : vector<64x32xf32>
    %c0_71 = arith.constant 0 : index
    %c0_72 = arith.constant 0 : index
    %273 = vector.load %arg15[%c0_71, %c0_72] : memref<1x32xf32, #tpu.memory_space<vmem>>, vector<1x32xf32>
    %274 = vector.broadcast %273 : vector<1x32xf32> to vector<64x32xf32>
    %275 = arith.addf %272, %274 : vector<64x32xf32>
    %cst_73 = arith.constant 5.000000e-01 : f32
    %276 = vector.broadcast %cst_73 : f32 to vector<64x32xf32>
    %277 = arith.mulf %276, %275 : vector<64x32xf32>
    %cst_74 = arith.constant 0.707106769 : f32
    %278 = vector.broadcast %cst_74 : f32 to vector<64x32xf32>
    %279 = arith.mulf %275, %278 : vector<64x32xf32>
    %280 = math.erf %279 : vector<64x32xf32>
    %cst_75 = arith.constant 1.000000e+00 : f32
    %281 = vector.broadcast %cst_75 : f32 to vector<64x32xf32>
    %282 = arith.addf %281, %280 : vector<64x32xf32>
    %283 = arith.mulf %277, %282 : vector<64x32xf32>
    %284 = arith.addf %121, %283 : vector<64x32xf32>
    %c0_76 = arith.constant 0 : index
    %c0_77 = arith.constant 0 : index
    %285 = vector.load %arg16[%c0_76, %c0_77] : memref<32x16xf32, #tpu.memory_space<vmem>>, vector<32x16xf32>
    %cst_78 = arith.constant dense<0.000000e+00> : vector<64x16xf32>
    %286 = tpu.matmul %284, %285, %cst_78 {dimension_numbers = #tpu.dot_dimension_numbers<[1], [0], [0], [1], [0, 0, 1, 1], [], []>} : vector<64x32xf32>, vector<32x16xf32>, vector<64x16xf32> -> vector<64x16xf32>
    %c0_79 = arith.constant 0 : index
    %c0_80 = arith.constant 0 : index
    %287 = vector.load %arg17[%c0_79, %c0_80] : memref<1x16xf32, #tpu.memory_space<vmem>>, vector<1x16xf32>
    %288 = vector.broadcast %287 : vector<1x16xf32> to vector<64x16xf32>
    %289 = arith.addf %286, %288 : vector<64x16xf32>
    %290 = arith.addf %84, %289 : vector<64x16xf32>
    %c0_81 = arith.constant 0 : index
    %c0_82 = arith.constant 0 : index
    %c0_83 = arith.constant 0 : index
    %291 = vector.load %arg18[%c0_81, %c0_82, %c0_83] : memref<1x64x16xf32, #tpu.memory_space<vmem>>, vector<1x64x16xf32>
    %292 = vector.shape_cast %291 : vector<1x64x16xf32> to vector<64x16xf32>
    %293 = vector.shape_cast %290 : vector<64x16xf32> to vector<1x64x16xf32>
    tpu.vector_store %arg18[%c0_81, %c0_82, %c0_83], %293 {strides = array<i32>} : memref<1x64x16xf32, #tpu.memory_space<vmem>>, vector<1x64x16xf32>,
    return
  }
  func.func @transform_0(%arg0: i32) -> (i32, i32, i32) {
    %c0_i32 = arith.constant 0 : i32
    %c0_i32_0 = arith.constant 0 : i32
    %c0_i32_1 = arith.constant 0 : i32
    return %arg0, %c0_i32, %c0_i32_0 : i32, i32, i32
  }
  func.func @transform_1(%arg0: i32) -> (i32, i32) {
    %c0_i32 = arith.constant 0 : i32
    %c0_i32_0 = arith.constant 0 : i32
    %c0_i32_1 = arith.constant 0 : i32
    return %c0_i32, %c0_i32_0 : i32, i32
  }
  func.func @transform_2(%arg0: i32) -> (i32, i32) {
    %c0_i32 = arith.constant 0 : i32
    %c0_i32_0 = arith.constant 0 : i32
    %c0_i32_1 = arith.constant 0 : i32
    return %c0_i32, %c0_i32_0 : i32, i32
  }
  func.func @transform_3(%arg0: i32) -> (i32, i32) {
    %c0_i32 = arith.constant 0 : i32
    %c0_i32_0 = arith.constant 0 : i32
    %c0_i32_1 = arith.constant 0 : i32
    return %c0_i32, %c0_i32_0 : i32, i32
  }
  func.func @transform_4(%arg0: i32) -> (i32, i32) {
    %c0_i32 = arith.constant 0 : i32
    %c0_i32_0 = arith.constant 0 : i32
    %c0_i32_1 = arith.constant 0 : i32
    return %c0_i32, %c0_i32_0 : i32, i32
  }
  func.func @transform_5(%arg0: i32) -> (i32, i32, i32) {
    %c0_i32 = arith.constant 0 : i32
    %c0_i32_0 = arith.constant 0 : i32
    %c0_i32_1 = arith.constant 0 : i32
    %c0_i32_2 = arith.constant 0 : i32
    return %c0_i32, %c0_i32_0, %c0_i32_1 : i32, i32, i32
  }
  func.func @transform_6(%arg0: i32) -> (i32, i32) {
    %c0_i32 = arith.constant 0 : i32
    %c0_i32_0 = arith.constant 0 : i32
    %c0_i32_1 = arith.constant 0 : i32
    return %c0_i32, %c0_i32_0 : i32, i32
  }
  func.func @transform_7(%arg0: i32) -> (i32, i32) {
    %c0_i32 = arith.constant 0 : i32
    %c0_i32_0 = arith.constant 0 : i32
    %c0_i32_1 = arith.constant 0 : i32
    return %c0_i32, %c0_i32_0 : i32, i32
  }
  func.func @transform_8(%arg0: i32) -> (i32, i32) {
    %c0_i32 = arith.constant 0 : i32
    %c0_i32_0 = arith.constant 0 : i32
    %c0_i32_1 = arith.constant 0 : i32
    return %c0_i32, %c0_i32_0 : i32, i32
  }
  func.func @transform_9(%arg0: i32) -> (i32, i32) {
    %c0_i32 = arith.constant 0 : i32
    %c0_i32_0 = arith.constant 0 : i32
    %c0_i32_1 = arith.constant 0 : i32
    return %c0_i32, %c0_i32_0 : i32, i32
  }
  func.func @transform_10(%arg0: i32) -> (i32, i32) {
    %c0_i32 = arith.constant 0 : i32
    %c0_i32_0 = arith.constant 0 : i32
    %c0_i32_1 = arith.constant 0 : i32
    return %c0_i32, %c0_i32_0 : i32, i32
  }
  func.func @transform_11(%arg0: i32) -> (i32, i32) {
    %c0_i32 = arith.constant 0 : i32
    %c0_i32_0 = arith.constant 0 : i32
    %c0_i32_1 = arith.constant 0 : i32
    return %c0_i32, %c0_i32_0 : i32, i32
  }
  func.func @transform_12(%arg0: i32) -> (i32, i32) {
    %c0_i32 = arith.constant 0 : i32
    %c0_i32_0 = arith.constant 0 : i32
    %c0_i32_1 = arith.constant 0 : i32
    return %c0_i32, %c0_i32_0 : i32, i32
  }
  func.func @transform_13(%arg0: i32) -> (i32, i32) {
    %c0_i32 = arith.constant 0 : i32
    %c0_i32_0 = arith.constant 0 : i32
    %c0_i32_1 = arith.constant 0 : i32
    return %c0_i32, %c0_i32_0 : i32, i32
  }
  func.func @transform_14(%arg0: i32) -> (i32, i32) {
    %c0_i32 = arith.constant 0 : i32
    %c0_i32_0 = arith.constant 0 : i32
    %c0_i32_1 = arith.constant 0 : i32
    return %c0_i32, %c0_i32_0 : i32, i32
  }
  func.func @transform_15(%arg0: i32) -> (i32, i32) {
    %c0_i32 = arith.constant 0 : i32
    %c0_i32_0 = arith.constant 0 : i32
    %c0_i32_1 = arith.constant 0 : i32
    return %c0_i32, %c0_i32_0 : i32, i32
  }
  func.func @transform_16(%arg0: i32) -> (i32, i32) {
    %c0_i32 = arith.constant 0 : i32
    %c0_i32_0 = arith.constant 0 : i32
    %c0_i32_1 = arith.constant 0 : i32
    return %c0_i32, %c0_i32_0 : i32, i32
  }
  func.func @transform_17(%arg0: i32) -> (i32, i32, i32) {
    %c0_i32 = arith.constant 0 : i32
    %c0_i32_0 = arith.constant 0 : i32
    %c0_i32_1 = arith.constant 0 : i32
    return %arg0, %c0_i32, %c0_i32_0 : i32, i32, i32
  }
}

</mosaic_0001>

<llo_original>
// kernel: symwb_forward.1
$region0: #{symwb_forward.1}
  #allocation0 [shape = 'u32[]', space=smem, size = 0x4, offset = 0x4, fixed_abs, tag = 'smem constant byte address 0x4 - core index']
  #allocation1 [shape = 'u32[72,128]{1,0:T(1,128)}', space=vmem, size = 0x9000, scoped, tag = 'internal scratch']
  %s0 = inlined_call_operand.vmem [shape: f32[2,64,16], index: 0, kind: input, shape index: {}]
  %s1 = inlined_call_operand.vmem [shape: f32[1,16], index: 1, kind: input, shape index: {}]
  %s2 = inlined_call_operand.vmem [shape: f32[1,16], index: 2, kind: input, shape index: {}]
  %s3 = inlined_call_operand.vmem [shape: f32[16,48], index: 3, kind: input, shape index: {}]
  %s4 = inlined_call_operand.vmem [shape: f32[1,48], index: 4, kind: input, shape index: {}]
  %s5 = inlined_call_operand.vmem [shape: f32[2,64,64], index: 5, kind: input, shape index: {}]
  %s6 = inlined_call_operand.vmem [shape: f32[16,16], index: 6, kind: input, shape index: {}]
  %s7 = inlined_call_operand.vmem [shape: f32[1,16], index: 7, kind: input, shape index: {}]
  %s8 = inlined_call_operand.vmem [shape: f32[1,16], index: 8, kind: input, shape index: {}]
  %s9 = inlined_call_operand.vmem [shape: f32[1,16], index: 9, kind: input, shape index: {}]
  %s10 = inlined_call_operand.vmem [shape: f32[16,32], index: 10, kind: input, shape index: {}]
  %s11 = inlined_call_operand.vmem [shape: f32[1,32], index: 11, kind: input, shape index: {}]
  %s12 = inlined_call_operand.vmem [shape: f32[320,64], index: 12, kind: input, shape index: {}]
  %s13 = inlined_call_operand.vmem [shape: f32[25,32], index: 13, kind: input, shape index: {}]
  %s14 = inlined_call_operand.vmem [shape: f32[1,32], index: 14, kind: input, shape index: {}]
  %s15 = inlined_call_operand.vmem [shape: f32[32,16], index: 15, kind: input, shape index: {}]
  %s16 = inlined_call_operand.vmem [shape: f32[1,16], index: 16, kind: input, shape index: {}]
  %s17 = inlined_call_operand.vmem [shape: f32[2,64,16], index: 17, kind: output, shape index: {}]
  %s18 = sld [smem:[#allocation0]]
  $region101: #{symwb_forward.1} parent=0
    _
  %s20 = ssub.s32 1, %s18
  %s21 = scalar_select 0, %s20, %s18
  loop: start=0, step=1, limit=4
  $region2: #{symwb_forward.1} parent=0 // loop_pre_header
    _
  $region3: #{symwb_forward.1} parent=0 // loop_header
    %s23 = sphi 0, %s27
    %p24 = scmp.ge.s32.totalorder %s23, 4
    %s33 = sphi 0, %s35
    %s36 = sphi 0, %s33
    %s37 = sphi 0, %s36
    %s53 = sphi 0, %s37
    %s57 = sphi 0, %s57
    %s59 = sphi 0, %s57
    %s60 = sphi 0, %s59
    %s74 = sphi 0, %s60
    %s78 = sphi 0, %s78
    %s80 = sphi 0, %s78
    %s81 = sphi 0, %s80
    %s95 = sphi 0, %s81
    %s99 = sphi 0, %s99
    %s101 = sphi 0, %s99
    %s102 = sphi 0, %s101
    %s116 = sphi 0, %s102
    %s120 = sphi 0, %s120
    %s122 = sphi 0, %s120
    %s123 = sphi 0, %s122
    %s137 = sphi 0, %s123
    %s141 = sphi 0, %s141
    %s143 = sphi 0, %s141
    %s144 = sphi 0, %s143
    %s158 = sphi 0, %s144
    %s162 = sphi 0, %s162
    %s164 = sphi 0, %s162
    %s165 = sphi 0, %s164
    %s179 = sphi 0, %s165
    %s183 = sphi 0, %s183
    %s185 = sphi 0, %s183
    %s186 = sphi 0, %s185
    %s200 = sphi 0, %s186
    %s204 = sphi 0, %s204
    %s206 = sphi 0, %s204
    %s207 = sphi 0, %s206
    %s221 = sphi 0, %s207
    %s225 = sphi 0, %s225
    %s227 = sphi 0, %s225
    %s228 = sphi 0, %s227
    %s242 = sphi 0, %s228
    %s246 = sphi 0, %s246
    %s248 = sphi 0, %s246
    %s249 = sphi 0, %s248
    %s263 = sphi 0, %s249
    %s267 = sphi 0, %s267
    %s269 = sphi 0, %s267
    %s270 = sphi 0, %s269
    %s284 = sphi 0, %s270
    %s288 = sphi 0, %s288
    %s290 = sphi 0, %s288
    %s291 = sphi 0, %s290
    %s305 = sphi 0, %s291
    %s309 = sphi 0, %s309
    %s311 = sphi 0, %s309
    %s312 = sphi 0, %s311
    %s326 = sphi 0, %s312
    %s330 = sphi 0, %s330
    %s332 = sphi 0, %s330
    %s333 = sphi 0, %s332
    %s347 = sphi 0, %s333
    %s351 = sphi 0, %s351
    %s353 = sphi 0, %s351
    %s354 = sphi 0, %s353
    %s368 = sphi 0, %s354
    %s372 = sphi 0, %s372
    %s374 = sphi 0, %s372
    %s375 = sphi 0, %s374
    %s389 = sphi 0, %s375
    %s395 = sphi 0, %s397
    %s398 = sphi 0, %s395
    %s399 = sphi 0, %s398
    %s415 = sphi 0, %s399
  $region4: #{symwb_forward.1} parent=0 // loop_header_branch
    %26 = sbr.rel (%p24) target = $region8
  $region5: #{symwb_forward.1} parent=0 // loop_body
    %s28 = ssub.s32 %s23, 1
    %s29 = ssub.s32 %s23, 2
    %s30 = sadd.s32 %s23, 1
    %s31 = ssub.s32 %s23, %s30
    %p32 = scmp.eq.s32.totalorder %s31, 0
    %s34 = sadd.s32 %s33, 1
    %s35 = scalar_select %p32, %s33, %s34
    %p38 = pneg %p32
    %p39 = scmp.eq.s32.totalorder %s23, 1
    %p40 = por %p38, %p39
    %p41 = scmp.ne.s32.totalorder %s33, %s36
    %p42 = scmp.eq.s32.totalorder %s23, 0
    %p43 = por %p41, %p42
    %p44 = scmp.ne.s32.totalorder %s33, %s36
    %p45 = scmp.eq.s32.totalorder %s28, 1
    %p46 = por %p44, %p45
    %p47 = scmp.ne.s32.totalorder %s36, %s37
    %p48 = scmp.eq.s32.totalorder %s28, 0
    %p49 = por %p47, %p48
    %p50 = scmp.ne.s32.totalorder %s36, %s37
    %p51 = scmp.eq.s32.totalorder %s29, 1
    %p52 = por %p50, %p51
    %p54 = scmp.ne.s32.totalorder %s37, %s53
    %p55 = scmp.eq.s32.totalorder %s29, 0
    %p56 = por %p54, %p55
    %s58 = sadd.s32 %s57, 1
    %p61 = scmp.eq.s32.totalorder %s23, 1
    %p62 = scmp.ne.s32.totalorder %s57, %s59
    %p63 = scmp.eq.s32.totalorder %s23, 0
    %p64 = por %p62, %p63
    %p65 = scmp.ne.s32.totalorder %s57, %s59
    %p66 = scmp.eq.s32.totalorder %s28, 1
    %p67 = por %p65, %p66
    %p68 = scmp.ne.s32.totalorder %s59, %s60
    %p69 = scmp.eq.s32.totalorder %s28, 0
    %p70 = por %p68, %p69
    %p71 = scmp.ne.s32.totalorder %s59, %s60
    %p72 = scmp.eq.s32.totalorder %s29, 1
    %p73 = por %p71, %p72
    %p75 = scmp.ne.s32.totalorder %s60, %s74
    %p76 = scmp.eq.s32.totalorder %s29, 0
    %p77 = por %p75, %p76
    %s79 = sadd.s32 %s78, 1
    %p82 = scmp.eq.s32.totalorder %s23, 1
    %p83 = scmp.ne.s32.totalorder %s78, %s80
    %p84 = scmp.eq.s32.totalorder %s23, 0
    %p85 = por %p83, %p84
    %p86 = scmp.ne.s32.totalorder %s78, %s80
    %p87 = scmp.eq.s32.totalorder %s28, 1
    %p88 = por %p86, %p87
    %p89 = scmp.ne.s32.totalorder %s80, %s81
    %p90 = scmp.eq.s32.totalorder %s28, 0
    %p91 = por %p89, %p90
    %p92 = scmp.ne.s32.totalorder %s80, %s81
    %p93 = scmp.eq.s32.totalorder %s29, 1
    %p94 = por %p92, %p93
    %p96 = scmp.ne.s32.totalorder %s81, %s95
    %p97 = scmp.eq.s32.totalorder %s29, 0
    %p98 = por %p96, %p97
    %s100 = sadd.s32 %s99, 1
    %p103 = scmp.eq.s32.totalorder %s23, 1
    %p104 = scmp.ne.s32.totalorder %s99, %s101
    %p105 = scmp.eq.s32.totalorder %s23, 0
    %p106 = por %p104, %p105
    %p107 = scmp.ne.s32.totalorder %s99, %s101
    %p108 = scmp.eq.s32.totalorder %s28, 1
    %p109 = por %p107, %p108
    %p110 = scmp.ne.s32.totalorder %s101, %s102
    %p111 = scmp.eq.s32.totalorder %s28, 0
    %p112 = por %p110, %p111
    %p113 = scmp.ne.s32.totalorder %s101, %s102
    %p114 = scmp.eq.s32.totalorder %s29, 1
    %p115 = por %p113, %p114
    %p117 = scmp.ne.s32.totalorder %s102, %s116
    %p118 = scmp.eq.s32.totalorder %s29, 0
    %p119 = por %p117, %p118
    %s121 = sadd.s32 %s120, 1
    %p124 = scmp.eq.s32.totalorder %s23, 1
    %p125 = scmp.ne.s32.totalorder %s120, %s122
    %p126 = scmp.eq.s32.totalorder %s23, 0
    %p127 = por %p125, %p126
    %p128 = scmp.ne.s32.totalorder %s120, %s122
    %p129 = scmp.eq.s32.totalorder %s28, 1
    %p130 = por %p128, %p129
    %p131 = scmp.ne.s32.totalorder %s122, %s123
    %p132 = scmp.eq.s32.totalorder %s28, 0
    %p133 = por %p131, %p132
    %p134 = scmp.ne.s32.totalorder %s122, %s123
    %p135 = scmp.eq.s32.totalorder %s29, 1
    %p136 = por %p134, %p135
    %p138 = scmp.ne.s32.totalorder %s123, %s137
    %p139 = scmp.eq.s32.totalorder %s29, 0
    %p140 = por %p138, %p139
    %s142 = sadd.s32 %s141, 1
    %p145 = scmp.eq.s32.totalorder %s23, 1
    %p146 = scmp.ne.s32.totalorder %s141, %s143
    %p147 = scmp.eq.s32.totalorder %s23, 0
    %p148 = por %p146, %p147
    %p149 = scmp.ne.s32.totalorder %s141, %s143
    %p150 = scmp.eq.s32.totalorder %s28, 1
    %p151 = por %p149, %p150
    %p152 = scmp.ne.s32.totalorder %s143, %s144
    %p153 = scmp.eq.s32.totalorder %s28, 0
    %p154 = por %p152, %p153
    %p155 = scmp.ne.s32.totalorder %s143, %s144
    %p156 = scmp.eq.s32.totalorder %s29, 1
    %p157 = por %p155, %p156
    %p159 = scmp.ne.s32.totalorder %s144, %s158
    %p160 = scmp.eq.s32.totalorder %s29, 0
    %p161 = por %p159, %p160
    %s163 = sadd.s32 %s162, 1
    %p166 = scmp.eq.s32.totalorder %s23, 1
    %p167 = scmp.ne.s32.totalorder %s162, %s164
    %p168 = scmp.eq.s32.totalorder %s23, 0
    %p169 = por %p167, %p168
    %p170 = scmp.ne.s32.totalorder %s162, %s164
    %p171 = scmp.eq.s32.totalorder %s28, 1
    %p172 = por %p170, %p171
    %p173 = scmp.ne.s32.totalorder %s164, %s165
    %p174 = scmp.eq.s32.totalorder %s28, 0
    %p175 = por %p173, %p174
    %p176 = scmp.ne.s32.totalorder %s164, %s165
    %p177 = scmp.eq.s32.totalorder %s29, 1
    %p178 = por %p176, %p177
    %p180 = scmp.ne.s32.totalorder %s165, %s179
    %p181 = scmp.eq.s32.totalorder %s29, 0
    %p182 = por %p180, %p181
    %s184 = sadd.s32 %s183, 1
    %p187 = scmp.eq.s32.totalorder %s23, 1
    %p188 = scmp.ne.s32.totalorder %s183, %s185
    %p189 = scmp.eq.s32.totalorder %s23, 0
    %p190 = por %p188, %p189
    %p191 = scmp.ne.s32.totalorder %s183, %s185
    %p192 = scmp.eq.s32.totalorder %s28, 1
    %p193 = por %p191, %p192
    %p194 = scmp.ne.s32.totalorder %s185, %s186
    %p195 = scmp.eq.s32.totalorder %s28, 0
    %p196 = por %p194, %p195
    %p197 = scmp.ne.s32.totalorder %s185, %s186
    %p198 = scmp.eq.s32.totalorder %s29, 1
    %p199 = por %p197, %p198
    %p201 = scmp.ne.s32.totalorder %s186, %s200
    %p202 = scmp.eq.s32.totalorder %s29, 0
    %p203 = por %p201, %p202
    %s205 = sadd.s32 %s204, 1
    %p208 = scmp.eq.s32.totalorder %s23, 1
    %p209 = scmp.ne.s32.totalorder %s204, %s206
    %p210 = scmp.eq.s32.totalorder %s23, 0
    %p211 = por %p209, %p210
    %p212 = scmp.ne.s32.totalorder %s204, %s206
    %p213 = scmp.eq.s32.totalorder %s28, 1
    %p214 = por %p212, %p213
    %p215 = scmp.ne.s32.totalorder %s206, %s207
    %p216 = scmp.eq.s32.totalorder %s28, 0
    %p217 = por %p215, %p216
    %p218 = scmp.ne.s32.totalorder %s206, %s207
    %p219 = scmp.eq.s32.totalorder %s29, 1
    %p220 = por %p218, %p219
    %p222 = scmp.ne.s32.totalorder %s207, %s221
    %p223 = scmp.eq.s32.totalorder %s29, 0
    %p224 = por %p222, %p223
    %s226 = sadd.s32 %s225, 1
    %p229 = scmp.eq.s32.totalorder %s23, 1
    %p230 = scmp.ne.s32.totalorder %s225, %s227
    %p231 = scmp.eq.s32.totalorder %s23, 0
    %p232 = por %p230, %p231
    %p233 = scmp.ne.s32.totalorder %s225, %s227
    %p234 = scmp.eq.s32.totalorder %s28, 1
    %p235 = por %p233, %p234
    %p236 = scmp.ne.s32.totalorder %s227, %s228
    %p237 = scmp.eq.s32.totalorder %s28, 0
    %p238 = por %p236, %p237
    %p239 = scmp.ne.s32.totalorder %s227, %s228
    %p240 = scmp.eq.s32.totalorder %s29, 1
    %p241 = por %p239, %p240
    %p243 = scmp.ne.s32.totalorder %s228, %s242
    %p244 = scmp.eq.s32.totalorder %s29, 0
    %p245 = por %p243, %p244
    %s247 = sadd.s32 %s246, 1
    %p250 = scmp.eq.s32.totalorder %s23, 1
    %p251 = scmp.ne.s32.totalorder %s246, %s248
    %p252 = scmp.eq.s32.totalorder %s23, 0
    %p253 = por %p251, %p252
    %p254 = scmp.ne.s32.totalorder %s246, %s248
    %p255 = scmp.eq.s32.totalorder %s28, 1
    %p256 = por %p254, %p255
    %p257 = scmp.ne.s32.totalorder %s248, %s249
    %p258 = scmp.eq.s32.totalorder %s28, 0
    %p259 = por %p257, %p258
    %p260 = scmp.ne.s32.totalorder %s248, %s249
    %p261 = scmp.eq.s32.totalorder %s29, 1
    %p262 = por %p260, %p261
    %p264 = scmp.ne.s32.totalorder %s249, %s263
    %p265 = scmp.eq.s32.totalorder %s29, 0
    %p266 = por %p264, %p265
    %s268 = sadd.s32 %s267, 1
    %p271 = scmp.eq.s32.totalorder %s23, 1
    %p272 = scmp.ne.s32.totalorder %s267, %s269
    %p273 = scmp.eq.s32.totalorder %s23, 0
    %p274 = por %p272, %p273
    %p275 = scmp.ne.s32.totalorder %s267, %s269
    %p276 = scmp.eq.s32.totalorder %s28, 1
    %p277 = por %p275, %p276
    %p278 = scmp.ne.s32.totalorder %s269, %s270
    %p279 = scmp.eq.s32.totalorder %s28, 0
    %p280 = por %p278, %p279
    %p281 = scmp.ne.s32.totalorder %s269, %s270
    %p282 = scmp.eq.s32.totalorder %s29, 1
    %p283 = por %p281, %p282
    %p285 = scmp.ne.s32.totalorder %s270, %s284
    %p286 = scmp.eq.s32.totalorder %s29, 0
    %p287 = por %p285, %p286
    %s289 = sadd.s32 %s288, 1
    %p292 = scmp.eq.s32.totalorder %s23, 1
    %p293 = scmp.ne.s32.totalorder %s288, %s290
    %p294 = scmp.eq.s32.totalorder %s23, 0
    %p295 = por %p293, %p294
    %p296 = scmp.ne.s32.totalorder %s288, %s290
    %p297 = scmp.eq.s32.totalorder %s28, 1
    %p298 = por %p296, %p297
    %p299 = scmp.ne.s32.totalorder %s290, %s291
    %p300 = scmp.eq.s32.totalorder %s28, 0
    %p301 = por %p299, %p300
    %p302 = scmp.ne.s32.totalorder %s290, %s291
    %p303 = scmp.eq.s32.totalorder %s29, 1
    %p304 = por %p302, %p303
    %p306 = scmp.ne.s32.totalorder %s291, %s305
    %p307 = scmp.eq.s32.totalorder %s29, 0
    %p308 = por %p306, %p307
    %s310 = sadd.s32 %s309, 1
    %p313 = scmp.eq.s32.totalorder %s23, 1
    %p314 = scmp.ne.s32.totalorder %s309, %s311
    %p315 = scmp.eq.s32.totalorder %s23, 0
    %p316 = por %p314, %p315
    %p317 = scmp.ne.s32.totalorder %s309, %s311
    %p318 = scmp.eq.s32.totalorder %s28, 1
    %p319 = por %p317, %p318
    %p320 = scmp.ne.s32.totalorder %s311, %s312
    %p321 = scmp.eq.s32.totalorder %s28, 0
    %p322 = por %p320, %p321
    %p323 = scmp.ne.s32.totalorder %s311, %s312
    %p324 = scmp.eq.s32.totalorder %s29, 1
    %p325 = por %p323, %p324
    %p327 = scmp.ne.s32.totalorder %s312, %s326
    %p328 = scmp.eq.s32.totalorder %s29, 0
    %p329 = por %p327, %p328
    %s331 = sadd.s32 %s330, 1
    %p334 = scmp.eq.s32.totalorder %s23, 1
    %p335 = scmp.ne.s32.totalorder %s330, %s332
    %p336 = scmp.eq.s32.totalorder %s23, 0
    %p337 = por %p335, %p336
    %p338 = scmp.ne.s32.totalorder %s330, %s332
    %p339 = scmp.eq.s32.totalorder %s28, 1
    %p340 = por %p338, %p339
    %p341 = scmp.ne.s32.totalorder %s332, %s333
    %p342 = scmp.eq.s32.totalorder %s28, 0
    %p343 = por %p341, %p342
    %p344 = scmp.ne.s32.totalorder %s332, %s333
    %p345 = scmp.eq.s32.totalorder %s29, 1
    %p346 = por %p344, %p345
    %p348 = scmp.ne.s32.totalorder %s333, %s347
    %p349 = scmp.eq.s32.totalorder %s29, 0
    %p350 = por %p348, %p349
    %s352 = sadd.s32 %s351, 1
    %p355 = scmp.eq.s32.totalorder %s23, 1
    %p356 = scmp.ne.s32.totalorder %s351, %s353
    %p357 = scmp.eq.s32.totalorder %s23, 0
    %p358 = por %p356, %p357
    %p359 = scmp.ne.s32.totalorder %s351, %s353
    %p360 = scmp.eq.s32.totalorder %s28, 1
    %p361 = por %p359, %p360
    %p362 = scmp.ne.s32.totalorder %s353, %s354
    %p363 = scmp.eq.s32.totalorder %s28, 0
    %p364 = por %p362, %p363
    %p365 = scmp.ne.s32.totalorder %s353, %s354
    %p366 = scmp.eq.s32.totalorder %s29, 1
    %p367 = por %p365, %p366
    %p369 = scmp.ne.s32.totalorder %s354, %s368
    %p370 = scmp.eq.s32.totalorder %s29, 0
    %p371 = por %p369, %p370
    %s373 = sadd.s32 %s372, 1
    %p376 = scmp.eq.s32.totalorder %s23, 1
    %p377 = scmp.ne.s32.totalorder %s372, %s374
    %p378 = scmp.eq.s32.totalorder %s23, 0
    %p379 = por %p377, %p378
    %p380 = scmp.ne.s32.totalorder %s372, %s374
    %p381 = scmp.eq.s32.totalorder %s28, 1
    %p382 = por %p380, %p381
    %p383 = scmp.ne.s32.totalorder %s374, %s375
    %p384 = scmp.eq.s32.totalorder %s28, 0
    %p385 = por %p383, %p384
    %p386 = scmp.ne.s32.totalorder %s374, %s375
    %p387 = scmp.eq.s32.totalorder %s29, 1
    %p388 = por %p386, %p387
    %p390 = scmp.ne.s32.totalorder %s375, %s389
    %p391 = scmp.eq.s32.totalorder %s29, 0
    %p392 = por %p390, %p391
    %s393 = ssub.s32 %s23, %s30
    %p394 = scmp.eq.s32.totalorder %s393, 0
    %s396 = sadd.s32 %s395, 1
    %s397 = scalar_select %p394, %s395, %s396
    %p400 = pneg %p394
    %p401 = scmp.eq.s32.totalorder %s23, 1
    %p402 = por %p400, %p401
    %p403 = scmp.ne.s32.totalorder %s395, %s398
    %p404 = scmp.eq.s32.totalorder %s23, 0
    %p405 = por %p403, %p404
    %p406 = scmp.ne.s32.totalorder %s395, %s398
    %p407 = scmp.eq.s32.totalorder %s28, 1
    %p408 = por %p406, %p407
    %p409 = scmp.ne.s32.totalorder %s398, %s399
    %p410 = scmp.eq.s32.totalorder %s28, 0
    %p411 = por %p409, %p410
    %p412 = scmp.ne.s32.totalorder %s398, %s399
    %p413 = scmp.eq.s32.totalorder %s29, 1
    %p414 = por %p412, %p413
    %p416 = scmp.ne.s32.totalorder %s399, %s415
    %p417 = scmp.eq.s32.totalorder %s29, 0
    %p418 = por %p416, %p417
    %p419 = scmp.le.s32.totalorder 1, %s23
    %p420 = scmp.lt.s32.totalorder %s23, 3
    %p421 = pnand %p419, %p420
    %p422 = pneg %p421
    // Predicated region
    $region9: #{symwb_forward.1} parent=5 // pred_check
      _
    $region10: #{symwb_forward.1} parent=5 // pred_check_branch
      %424 = sbr.rel (%p421) target = $region12
    $region11: #{symwb_forward.1} parent=5 // pred_region
      %s425 = ssub.s32 %s23, 1
      // Predicated region
      $region13: #{symwb_forward.1} parent=11 // pred_check
        %p426 = pneg %p70
      $region14: #{symwb_forward.1} parent=11 // pred_check_branch
        %428 = sbr.rel (%p426) target = $region16
      $region15: #{symwb_forward.1} parent=11 // pred_region
        _
      $region16: #{symwb_forward.1} parent=11 // pred_fallthru
        _
      // Predicated region
      $region17: #{symwb_forward.1} parent=11 // pred_check
        %p429 = pneg %p91
      $region18: #{symwb_forward.1} parent=11 // pred_check_branch
        %431 = sbr.rel (%p429) target = $region20
      $region19: #{symwb_forward.1} parent=11 // pred_region
        _
      $region20: #{symwb_forward.1} parent=11 // pred_fallthru
        _
      // Predicated region
      $region21: #{symwb_forward.1} parent=11 // pred_check
        %p432 = pneg %p112
      $region22: #{symwb_forward.1} parent=11 // pred_check_branch
        %434 = sbr.rel (%p432) target = $region24
      $region23: #{symwb_forward.1} parent=11 // pred_region
        _
      $region24: #{symwb_forward.1} parent=11 // pred_fallthru
        _
      // Predicated region
      $region25: #{symwb_forward.1} parent=11 // pred_check
        %p435 = pneg %p133
      $region26: #{symwb_forward.1} parent=11 // pred_check_branch
        %437 = sbr.rel (%p435) target = $region28
      $region27: #{symwb_forward.1} parent=11 // pred_region
        _
      $region28: #{symwb_forward.1} parent=11 // pred_fallthru
        _
      // Predicated region
      $region29: #{symwb_forward.1} parent=11 // pred_check
        %p438 = pneg %p154
      $region30: #{symwb_forward.1} parent=11 // pred_check_branch
        %440 = sbr.rel (%p438) target = $region32
      $region31: #{symwb_forward.1} parent=11 // pred_region
        _
      $region32: #{symwb_forward.1} parent=11 // pred_fallthru
        _
      // Predicated region
      $region33: #{symwb_forward.1} parent=11 // pred_check
        %p441 = pneg %p175
      $region34: #{symwb_forward.1} parent=11 // pred_check_branch
        %443 = sbr.rel (%p441) target = $region36
      $region35: #{symwb_forward.1} parent=11 // pred_region
        _
      $region36: #{symwb_forward.1} parent=11 // pred_fallthru
        _
      // Predicated region
      $region37: #{symwb_forward.1} parent=11 // pred_check
        %p444 = pneg %p196
      $region38: #{symwb_forward.1} parent=11 // pred_check_branch
        %446 = sbr.rel (%p444) target = $region40
      $region39: #{symwb_forward.1} parent=11 // pred_region
        _
      $region40: #{symwb_forward.1} parent=11 // pred_fallthru
        _
      // Predicated region
      $region41: #{symwb_forward.1} parent=11 // pred_check
        %p447 = pneg %p217
      $region42: #{symwb_forward.1} parent=11 // pred_check_branch
        %449 = sbr.rel (%p447) target = $region44
      $region43: #{symwb_forward.1} parent=11 // pred_region
        _
      $region44: #{symwb_forward.1} parent=11 // pred_fallthru
        _
      // Predicated region
      $region45: #{symwb_forward.1} parent=11 // pred_check
        %p450 = pneg %p238
      $region46: #{symwb_forward.1} parent=11 // pred_check_branch
        %452 = sbr.rel (%p450) target = $region48
      $region47: #{symwb_forward.1} parent=11 // pred_region
        _
      $region48: #{symwb_forward.1} parent=11 // pred_fallthru
        _
      // Predicated region
      $region49: #{symwb_forward.1} parent=11 // pred_check
        %p453 = pneg %p259
      $region50: #{symwb_forward.1} parent=11 // pred_check_branch
        %455 = sbr.rel (%p453) target = $region52
      $region51: #{symwb_forward.1} parent=11 // pred_region
        _
      $region52: #{symwb_forward.1} parent=11 // pred_fallthru
        _
      // Predicated region
      $region53: #{symwb_forward.1} parent=11 // pred_check
        %p456 = pneg %p280
      $region54: #{symwb_forward.1} parent=11 // pred_check_branch
        %458 = sbr.rel (%p456) target = $region56
      $region55: #{symwb_forward.1} parent=11 // pred_region
        _
      $region56: #{symwb_forward.1} parent=11 // pred_fallthru
        _
      // Predicated region
      $region57: #{symwb_forward.1} parent=11 // pred_check
        %p459 = pneg %p301
      $region58: #{symwb_forward.1} parent=11 // pred_check_branch
        %461 = sbr.rel (%p459) target = $region60
      $region59: #{symwb_forward.1} parent=11 // pred_region
        _
      $region60: #{symwb_forward.1} parent=11 // pred_fallthru
        _
      // Predicated region
      $region61: #{symwb_forward.1} parent=11 // pred_check
        %p462 = pneg %p322
      $region62: #{symwb_forward.1} parent=11 // pred_check_branch
        %464 = sbr.rel (%p462) target = $region64
      $region63: #{symwb_forward.1} parent=11 // pred_region
        _
      $region64: #{symwb_forward.1} parent=11 // pred_fallthru
        _
      // Predicated region
      $region65: #{symwb_forward.1} parent=11 // pred_check
        %p465 = pneg %p343
      $region66: #{symwb_forward.1} parent=11 // pred_check_branch
        %467 = sbr.rel (%p465) target = $region68
      $region67: #{symwb_forward.1} parent=11 // pred_region
        _
      $region68: #{symwb_forward.1} parent=11 // pred_fallthru
        _
      // Predicated region
      $region69: #{symwb_forward.1} parent=11 // pred_check
        %p468 = pneg %p364
      $region70: #{symwb_forward.1} parent=11 // pred_check_branch
        %470 = sbr.rel (%p468) target = $region72
      $region71: #{symwb_forward.1} parent=11 // pred_region
        _
      $region72: #{symwb_forward.1} parent=11 // pred_fallthru
        _
      // Predicated region
      $region73: #{symwb_forward.1} parent=11 // pred_check
        %p471 = pneg %p385
      $region74: #{symwb_forward.1} parent=11 // pred_check_branch
        %473 = sbr.rel (%p471) target = $region76
      $region75: #{symwb_forward.1} parent=11 // pred_region
        _
      $region76: #{symwb_forward.1} parent=11 // pred_fallthru
        _
    $region12: #{symwb_forward.1} parent=5 // pred_fallthru
      _
    %p474 = scmp.lt.s32.totalorder %s23, 2
    // Predicated region
    $region77: #{symwb_forward.1} parent=5 // pred_check
      %p475 = pneg %p474
    $region78: #{symwb_forward.1} parent=5 // pred_check_branch
      %477 = sbr.rel (%p475) target = $region80
    $region79: #{symwb_forward.1} parent=5 // pred_region
      // Predicated region
      $region81: #{symwb_forward.1} parent=79 // pred_check
        %p478 = pneg %p43
      $region82: #{symwb_forward.1} parent=79 // pred_check_branch
        %480 = sbr.rel (%p478) target = $region84
      $region83: #{symwb_forward.1} parent=79 // pred_region
        %p481 = scmp.lt.s32.totalorder %s23, 1
        %s482 = scalar_select %p481, %s23, 1
        %s483 = smul.addr %s482, 8
        %s484 = smul.addr %s483, 8
        %s485 = scalar_lea.vmem %s0, %s484
      $region84: #{symwb_forward.1} parent=79 // pred_fallthru
        _
    $region80: #{symwb_forward.1} parent=5 // pred_fallthru
      _
    %p486 = scmp.le.s32.totalorder 1, %s23
    %p487 = scmp.lt.s32.totalorder %s23, 3
    %p488 = pnand %p486, %p487
    %p489 = pneg %p488
    // Predicated region
    $region85: #{symwb_forward.1} parent=5 // pred_check
      _
    $region86: #{symwb_forward.1} parent=5 // pred_check_branch
      %491 = sbr.rel (%p488) target = $region88
    $region87: #{symwb_forward.1} parent=5 // pred_region
      %s492 = ssub.s32 %s23, 1
      %p493 = scmp.lt.s32.totalorder %s28, 1
      %s494 = scalar_select %p493, %s28, 1
      %s495 = smul.addr %s494, 8
      %s496 = smul.addr %s495, 8
      %s497 = scalar_lea.vmem %s0, %s496
      %p498 = pneg %p49
      %p499 = pneg %p46
      %p500 = pneg %p70
      %p501 = pneg %p67
      %p502 = pneg %p91
      %p503 = pneg %p88
      %p504 = pneg %p112
      %p505 = pneg %p109
      %p506 = pneg %p133
      %p507 = pneg %p130
      %p508 = pneg %p154
      %p509 = pneg %p151
      %p510 = pneg %p175
      %p511 = pneg %p172
      %p512 = pneg %p196
      %p513 = pneg %p193
      %p514 = pneg %p217
      %p515 = pneg %p214
      %p516 = pneg %p238
      %p517 = pneg %p235
      %p518 = pneg %p259
      %p519 = pneg %p256
      %p520 = pneg %p280
      %p521 = pneg %p277
      %p522 = pneg %p301
      %p523 = pneg %p298
      %p524 = pneg %p322
      %p525 = pneg %p319
      %p526 = pneg %p343
      %p527 = pneg %p340
      %p528 = pneg %p364
      %p529 = pneg %p361
      %p530 = pneg %p385
      %p531 = pneg %p382
      %p532 = pneg %p411
      %p533 = pneg %p408
      %p534 = scmp.lt.s32.totalorder %s28, 1
      %s535 = scalar_select %p534, %s28, 1
      %s536 = smul.addr %s535, 8
      %s537 = smul.addr %s536, 8
      %s538 = scalar_lea.vmem %s17, %s537
      %p539 = scmp.lt.s32.totalorder %s28, 1
      %s540 = scalar_select %p539, %s28, 1
      %s541 = smul.addr %s540, 8
      %s542 = smul.addr %s541, 8
      %s543 = scalar_lea.vmem %s0, %s542
      %p544 = scmp.lt.s32.totalorder %s28, 1
      %s545 = scalar_select %p544, %s28, 1
      %s546 = smul.addr %s545, 8
      %s547 = smul.addr %s546, 8
      %s548 = scalar_lea.vmem %s17, %s547
      %v549 = vld [vmem:[%s543] sm:$0xff]
      %v550 = vld [vmem:[%s543 + $0x8] sm:$0xff]
      %v551 = vld [vmem:[%s543 + $0x10] sm:$0xff]
      %v552 = vld [vmem:[%s543 + $0x18] sm:$0xff]
      %v553 = vld [vmem:[%s543 + $0x20] sm:$0xff]
      %v554 = vld [vmem:[%s543 + $0x28] sm:$0xff]
      %v555 = vld [vmem:[%s543 + $0x30] sm:$0xff]
      %v556 = vld [vmem:[%s543 + $0x38] sm:$0xff]
      %v557 = vld [vmem:[%s1] sm:$0x1]
      %v558 = vld [vmem:[%s2] sm:$0x1]
      %vm559 = vcmask 130048
      %v560 = vsel %vm559, %v549, 0.0
      %561 = vadd.xlane.f32.xlu0 %v560
      %v562 = vpop.xlane.xlu0 %561
      %v563 = vsel %vm559, %v550, 0.0
      %564 = vadd.xlane.f32.xlu0 %v563
      %v565 = vpop.xlane.xlu0 %564
      %v566 = vsel %vm559, %v551, 0.0
      %567 = vadd.xlane.f32.xlu0 %v566
      %v568 = vpop.xlane.xlu0 %567
      %v569 = vsel %vm559, %v552, 0.0
      %570 = vadd.xlane.f32.xlu0 %v569
      %v571 = vpop.xlane.xlu0 %570
      %v572 = vsel %vm559, %v553, 0.0
      %573 = vadd.xlane.f32.xlu0 %v572
      %v574 = vpop.xlane.xlu0 %573
      %v575 = vsel %vm559, %v554, 0.0
      %576 = vadd.xlane.f32.xlu0 %v575
      %v577 = vpop.xlane.xlu0 %576
      %v578 = vsel %vm559, %v555, 0.0
      %579 = vadd.xlane.f32.xlu0 %v578
      %v580 = vpop.xlane.xlu0 %579
      %v581 = vsel %vm559, %v556, 0.0
      %582 = vadd.xlane.f32.xlu0 %v581
      %v583 = vpop.xlane.xlu0 %582
      %v584 = vrcp.pop 16.0
      %v585 = vmul.f32 16.0, %v584
      %v586 = vsub.f32 1.0, %v585
      %v587 = vmul.f32 %v584, %v586
      %v588 = vadd.f32 %v584, %v587
      %vm589 = vweird.f32 %v584
      %v590 = vsel %vm589, %v584, %v588
      %v591 = vmul.f32 %v562, %v590
      %v592 = vmul.f32 %v565, %v590
      %v593 = vmul.f32 %v568, %v590
      %v594 = vmul.f32 %v571, %v590
      %v595 = vmul.f32 %v574, %v590
      %v596 = vmul.f32 %v577, %v590
      %v597 = vmul.f32 %v580, %v590
      %v598 = vmul.f32 %v583, %v590
      %v599 = vsub.f32 %v549, %v591
      %v600 = vsub.f32 %v550, %v592
      %v601 = vsub.f32 %v551, %v593
      %v602 = vsub.f32 %v552, %v594
      %v603 = vsub.f32 %v553, %v595
      %v604 = vsub.f32 %v554, %v596
      %v605 = vsub.f32 %v555, %v597
      %v606 = vsub.f32 %v556, %v598
      %v607 = vmul.f32 %v599, %v599
      %v608 = vmul.f32 %v600, %v600
      %v609 = vmul.f32 %v601, %v601
      %v610 = vmul.f32 %v602, %v602
      %v611 = vmul.f32 %v603, %v603
      %v612 = vmul.f32 %v604, %v604
      %v613 = vmul.f32 %v605, %v605
      %v614 = vmul.f32 %v606, %v606
      %v615 = vsel %vm559, %v607, 0.0
      %616 = vadd.xlane.f32.xlu0 %v615
      %v617 = vpop.xlane.xlu0 %616
      %v618 = vsel %vm559, %v608, 0.0
      %619 = vadd.xlane.f32.xlu0 %v618
      %v620 = vpop.xlane.xlu0 %619
      %v621 = vsel %vm559, %v609, 0.0
      %622 = vadd.xlane.f32.xlu0 %v621
      %v623 = vpop.xlane.xlu0 %622
      %v624 = vsel %vm559, %v610, 0.0
      %625 = vadd.xlane.f32.xlu0 %v624
      %v626 = vpop.xlane.xlu0 %625
      %v627 = vsel %vm559, %v611, 0.0
      %628 = vadd.xlane.f32.xlu0 %v627
      %v629 = vpop.xlane.xlu0 %628
      %v630 = vsel %vm559, %v612, 0.0
      %631 = vadd.xlane.f32.xlu0 %v630
      %v632 = vpop.xlane.xlu0 %631
      %v633 = vsel %vm559, %v613, 0.0
      %634 = vadd.xlane.f32.xlu0 %v633
      %v635 = vpop.xlane.xlu0 %634
      %v636 = vsel %vm559, %v614, 0.0
      %637 = vadd.xlane.f32.xlu0 %v636
      %v638 = vpop.xlane.xlu0 %637
      %v639 = vmul.f32 %v617, %v590
      %v640 = vmul.f32 %v620, %v590
      %v641 = vmul.f32 %v623, %v590
      %v642 = vmul.f32 %v626, %v590
      %v643 = vmul.f32 %v629, %v590
      %v644 = vmul.f32 %v632, %v590
      %v645 = vmul.f32 %v635, %v590
      %v646 = vmul.f32 %v638, %v590
      %v647 = vadd.f32 %v639, 1e-05
      %v648 = vadd.f32 %v640, 1e-05
      %v649 = vadd.f32 %v641, 1e-05
      %v650 = vadd.f32 %v642, 1e-05
      %v651 = vadd.f32 %v643, 1e-05
      %v652 = vadd.f32 %v644, 1e-05
      %v653 = vadd.f32 %v645, 1e-05
      %v654 = vadd.f32 %v646, 1e-05
      %v655 = vrsqrt.pop %v647
      %v656 = vmul.f32 %v655, %v647
      %v657 = vmul.f32 %v656, %v655
      %v658 = vmul.f32 0.5, %v657
      %v659 = vsub.f32 1.5, %v658
      %v660 = vmul.f32 %v655, %v659
      %vm661 = vweird.f32 %v647
      %vm662 = vweird.f32 %v655
      %vm663 = vmor %vm661, %vm662
      %v664 = vsel %vm663, %v655, %v660
      %v665 = vrsqrt.pop %v648
      %v666 = vmul.f32 %v665, %v648
      %v667 = vmul.f32 %v666, %v665
      %v668 = vmul.f32 0.5, %v667
      %v669 = vsub.f32 1.5, %v668
      %v670 = vmul.f32 %v665, %v669
      %vm671 = vweird.f32 %v648
      %vm672 = vweird.f32 %v665
      %vm673 = vmor %vm671, %vm672
      %v674 = vsel %vm673, %v665, %v670
      %v675 = vrsqrt.pop %v649
      %v676 = vmul.f32 %v675, %v649
      %v677 = vmul.f32 %v676, %v675
      %v678 = vmul.f32 0.5, %v677
      %v679 = vsub.f32 1.5, %v678
      %v680 = vmul.f32 %v675, %v679
      %vm681 = vweird.f32 %v649
      %vm682 = vweird.f32 %v675
      %vm683 = vmor %vm681, %vm682
      %v684 = vsel %vm683, %v675, %v680
      %v685 = vrsqrt.pop %v650
      %v686 = vmul.f32 %v685, %v650
      %v687 = vmul.f32 %v686, %v685
      %v688 = vmul.f32 0.5, %v687
      %v689 = vsub.f32 1.5, %v688
      %v690 = vmul.f32 %v685, %v689
      %vm691 = vweird.f32 %v650
      %vm692 = vweird.f32 %v685
      %vm693 = vmor %vm691, %vm692
      %v694 = vsel %vm693, %v685, %v690
      %v695 = vrsqrt.pop %v651
      %v696 = vmul.f32 %v695, %v651
      %v697 = vmul.f32 %v696, %v695
      %v698 = vmul.f32 0.5, %v697
      %v699 = vsub.f32 1.5, %v698
      %v700 = vmul.f32 %v695, %v699
      %vm701 = vweird.f32 %v651
      %vm702 = vweird.f32 %v695
      %vm703 = vmor %vm701, %vm702
      %v704 = vsel %vm703, %v695, %v700
      %v705 = vrsqrt.pop %v652
      %v706 = vmul.f32 %v705, %v652
      %v707 = vmul.f32 %v706, %v705
      %v708 = vmul.f32 0.5, %v707
      %v709 = vsub.f32 1.5, %v708
      %v710 = vmul.f32 %v705, %v709
      %vm711 = vweird.f32 %v652
      %vm712 = vweird.f32 %v705
      %vm713 = vmor %vm711, %vm712
      %v714 = vsel %vm713, %v705, %v710
      %v715 = vrsqrt.pop %v653
      %v716 = vmul.f32 %v715, %v653
      %v717 = vmul.f32 %v716, %v715
      %v718 = vmul.f32 0.5, %v717
      %v719 = vsub.f32 1.5, %v718
      %v720 = vmul.f32 %v715, %v719
      %vm721 = vweird.f32 %v653
      %vm722 = vweird.f32 %v715
      %vm723 = vmor %vm721, %vm722
      %v724 = vsel %vm723, %v715, %v720
      %v725 = vrsqrt.pop %v654
      %v726 = vmul.f32 %v725, %v654
      %v727 = vmul.f32 %v726, %v725
      %v728 = vmul.f32 0.5, %v727
      %v729 = vsub.f32 1.5, %v728
      %v730 = vmul.f32 %v725, %v729
      %vm731 = vweird.f32 %v654
      %vm732 = vweird.f32 %v725
      %vm733 = vmor %vm731, %vm732
      %v734 = vsel %vm733, %v725, %v730
      %v735 = vmul.f32 %v599, %v664
      %v736 = vmul.f32 %v600, %v674
      %v737 = vmul.f32 %v601, %v684
      %v738 = vmul.f32 %v602, %v694
      %v739 = vmul.f32 %v603, %v704
      %v740 = vmul.f32 %v604, %v714
      %v741 = vmul.f32 %v605, %v724
      %v742 = vmul.f32 %v606, %v734
      %v744 = vperm.slane %v557, 0
      %v746 = vmul.f32 %v735, %v744
      %v747 = vmul.f32 %v736, %v744
      %v748 = vmul.f32 %v737, %v744
      %v749 = vmul.f32 %v738, %v744
      %v750 = vmul.f32 %v739, %v744
      %v751 = vmul.f32 %v740, %v744
      %v752 = vmul.f32 %v741, %v744
      %v753 = vmul.f32 %v742, %v744
      %v755 = vperm.slane %v558, 0
      %v757 = vadd.f32 %v746, %v755
      %v758 = vadd.f32 %v747, %v755
      %v759 = vadd.f32 %v748, %v755
      %v760 = vadd.f32 %v749, %v755
      %v761 = vadd.f32 %v750, %v755
      %v762 = vadd.f32 %v751, %v755
      %v763 = vadd.f32 %v752, %v755
      %v764 = vadd.f32 %v753, %v755
      %v765 = vld [vmem:[%s3] sm:$0xff]
      %v766 = vld [vmem:[%s3 + $0x8] sm:$0xff]
      %v767 = vld [vmem:[%s4] sm:$0x1]
      %v769 = vperm.slane %v767, 0
      %v772 = vsel %vm559, %v757, 0
      %v775 = vsel %vm559, %v758, 0
      %v778 = vsel %vm559, %v759, 0
      %v781 = vsel %vm559, %v760, 0
      %v784 = vsel %vm559, %v761, 0
      %v787 = vsel %vm559, %v762, 0
      %v790 = vsel %vm559, %v763, 0
      %v793 = vsel %vm559, %v764, 0
      %795 = vmatpush.msra.mxu0 0.0
      %796 = vmatpush.msra.mxu0 0.0
      %797 = vmatpush.msra.mxu0 0.0
      %798 = vmatpush.msra.mxu0 0.0
      %799 = vmatpush.msra.mxu0 0.0
      %800 = vmatpush.msra.mxu0 0.0
      %801 = vmatpush.msra.mxu0 0.0
      %802 = vmatpush.msra.mxu0 0.0
      %803 = vmatpush.msra.mxu0 0.0
      %804 = vmatpush.msra.mxu0 0.0
      %805 = vmatpush.msra.mxu0 0.0
      %806 = vmatpush.msra.mxu0 0.0
      %807 = vmatpush.msra.mxu0 0.0
      %808 = vmatpush.msra.mxu0 0.0
      %809 = vmatpush.msra.mxu0 %v766
      %810 = vmatpush.msra.mxu0 %v765
      %811 = vmatmul.f32.gmra.mxu0 %v772
      %v812 = vpop.f32.mrf.mxu0
      %v813 = vadd.f32 %v769, %v812
      %814 = vmatmul.f32.gmra.mxu0 %v775
      %v815 = vpop.f32.mrf.mxu0
      %v816 = vadd.f32 %v769, %v815
      %817 = vmatmul.f32.gmra.mxu0 %v778
      %v818 = vpop.f32.mrf.mxu0
      %v819 = vadd.f32 %v769, %v818
      %820 = vmatmul.f32.gmra.mxu0 %v781
      %v821 = vpop.f32.mrf.mxu0
      %v822 = vadd.f32 %v769, %v821
      %823 = vmatmul.f32.gmra.mxu0 %v784
      %v824 = vpop.f32.mrf.mxu0
      %v825 = vadd.f32 %v769, %v824
      %826 = vmatmul.f32.gmra.mxu0 %v787
      %v827 = vpop.f32.mrf.mxu0
      %v828 = vadd.f32 %v769, %v827
      %829 = vmatmul.f32.gmra.mxu0 %v790
      %v830 = vpop.f32.mrf.mxu0
      %v831 = vadd.f32 %v769, %v830
      %832 = vmatmul.f32.gmra.mxu0 %v793
      %v833 = vpop.f32.mrf.mxu0
      %v834 = vadd.f32 %v769, %v833
      %835 = vdwg.mxu0
      %v836 = vld [vmem:[%s6] sm:$0xff]
      %v837 = vld [vmem:[%s6 + $0x8] sm:$0xff]
      %v838 = vmul.f32 %v813, 0.35355338
      %v839 = vmul.f32 %v816, 0.35355338
      %v840 = vmul.f32 %v819, 0.35355338
      %v841 = vmul.f32 %v822, 0.35355338
      %v842 = vmul.f32 %v825, 0.35355338
      %v843 = vmul.f32 %v828, 0.35355338
      %v844 = vmul.f32 %v831, 0.35355338
      %v845 = vmul.f32 %v834, 0.35355338
      %v846 = vld [vmem:[%s5] sm:$0xff]
      %v847 = vld [vmem:[%s5 + $0x8] sm:$0xff]
      %v848 = vld [vmem:[%s5 + $0x10] sm:$0xff]
      %v849 = vld [vmem:[%s5 + $0x18] sm:$0xff]
      %v850 = vld [vmem:[%s5 + $0x20] sm:$0xff]
      %v851 = vld [vmem:[%s5 + $0x28] sm:$0xff]
      %v852 = vld [vmem:[%s5 + $0x30] sm:$0xff]
      %v853 = vld [vmem:[%s5 + $0x38] sm:$0xff]
      %862 = vrot.lane.b32.xlu0 %v813, 112
      %v863 = vpop.permute.xlu0 %862
      %864 = vrot.lane.b32.xlu0 %v816, 112
      %v865 = vpop.permute.xlu0 %864
      %866 = vrot.lane.b32.xlu0 %v819, 112
      %v867 = vpop.permute.xlu0 %866
      %868 = vrot.lane.b32.xlu0 %v822, 112
      %v869 = vpop.permute.xlu0 %868
      %870 = vrot.lane.b32.xlu0 %v825, 112
      %v871 = vpop.permute.xlu0 %870
      %872 = vrot.lane.b32.xlu0 %v828, 112
      %v873 = vpop.permute.xlu0 %872
      %874 = vrot.lane.b32.xlu0 %v831, 112
      %v875 = vpop.permute.xlu0 %874
      %876 = vrot.lane.b32.xlu0 %v834, 112
      %v877 = vpop.permute.xlu0 %876
      %vm878 = vcmask 64512
      %v880 = vsel %vm878, %v838, 0
      %v883 = vsel %vm878, %v839, 0
      %v886 = vsel %vm878, %v840, 0
      %v889 = vsel %vm878, %v841, 0
      %v892 = vsel %vm878, %v842, 0
      %v895 = vsel %vm878, %v843, 0
      %v898 = vsel %vm878, %v844, 0
      %v901 = vsel %vm878, %v845, 0
      %v903 = vsel %vm878, %v863, 0
      %v905 = vsel %vm878, %v865, 0
      %v907 = vsel %vm878, %v867, 0
      %v909 = vsel %vm878, %v869, 0
      %v911 = vsel %vm878, %v871, 0
      %v913 = vsel %vm878, %v873, 0
      %v915 = vsel %vm878, %v875, 0
      %v917 = vsel %vm878, %v877, 0
      %919 = vmatpush.xpose.msra.mxu0 0.0
      %920 = vmatpush.xpose.msra.mxu0 0.0
      %921 = vmatpush.xpose.msra.mxu0 0.0
      %922 = vmatpush.xpose.msra.mxu0 0.0
      %923 = vmatpush.xpose.msra.mxu0 0.0
      %924 = vmatpush.xpose.msra.mxu0 0.0
      %925 = vmatpush.xpose.msra.mxu0 0.0
      %926 = vmatpush.xpose.msra.mxu0 0.0
      %927 = vmatpush.xpose.msra.mxu0 %v917
      %928 = vmatpush.xpose.msra.mxu0 %v915
      %929 = vmatpush.xpose.msra.mxu0 %v913
      %930 = vmatpush.xpose.msra.mxu0 %v911
      %931 = vmatpush.xpose.msra.mxu0 %v909
      %932 = vmatpush.xpose.msra.mxu0 %v907
      %933 = vmatpush.xpose.msra.mxu0 %v905
      %934 = vmatpush.xpose.msra.mxu0 %v903
      %935 = vmatmul.f32.gmra.mxu0 %v880
      %v936 = vpop.f32.mrf.mxu0
      %v937 = vadd.f32 %v846, %v936
      %938 = vmatmul.f32.gmra.mxu0 %v883
      %v939 = vpop.f32.mrf.mxu0
      %v940 = vadd.f32 %v847, %v939
      %941 = vmatmul.f32.gmra.mxu0 %v886
      %v942 = vpop.f32.mrf.mxu0
      %v943 = vadd.f32 %v848, %v942
      %944 = vmatmul.f32.gmra.mxu0 %v889
      %v945 = vpop.f32.mrf.mxu0
      %v946 = vadd.f32 %v849, %v945
      %947 = vmatmul.f32.gmra.mxu0 %v892
      %v948 = vpop.f32.mrf.mxu0
      %v949 = vadd.f32 %v850, %v948
      %950 = vmatmul.f32.gmra.mxu0 %v895
      %v951 = vpop.f32.mrf.mxu0
      %v952 = vadd.f32 %v851, %v951
      %953 = vmatmul.f32.gmra.mxu0 %v898
      %v954 = vpop.f32.mrf.mxu0
      %v955 = vadd.f32 %v852, %v954
      %956 = vmatmul.f32.gmra.mxu0 %v901
      %v957 = vpop.f32.mrf.mxu0
      %v958 = vadd.f32 %v853, %v957
      %959 = vdwg.mxu0
      %vm960 = vcmask 523264
      %v961 = vsel %vm960, %v937, -inf
      %962 = vmax.xlane.f32.xlu0 %v961
      %v963 = vpop.xlane.xlu0 %962
      %v964 = vsel %vm960, %v940, -inf
      %965 = vmax.xlane.f32.xlu0 %v964
      %v966 = vpop.xlane.xlu0 %965
      %v967 = vsel %vm960, %v943, -inf
      %968 = vmax.xlane.f32.xlu0 %v967
      %v969 = vpop.xlane.xlu0 %968
      %v970 = vsel %vm960, %v946, -inf
      %971 = vmax.xlane.f32.xlu0 %v970
      %v972 = vpop.xlane.xlu0 %971
      %v973 = vsel %vm960, %v949, -inf
      %974 = vmax.xlane.f32.xlu0 %v973
      %v975 = vpop.xlane.xlu0 %974
      %v976 = vsel %vm960, %v952, -inf
      %977 = vmax.xlane.f32.xlu0 %v976
      %v978 = vpop.xlane.xlu0 %977
      %v979 = vsel %vm960, %v955, -inf
      %980 = vmax.xlane.f32.xlu0 %v979
      %v981 = vpop.xlane.xlu0 %980
      %v982 = vsel %vm960, %v958, -inf
      %983 = vmax.xlane.f32.xlu0 %v982
      %v984 = vpop.xlane.xlu0 %983
      %v985 = vsub.f32 %v937, %v963
      %v986 = vsub.f32 %v940, %v966
      %v987 = vsub.f32 %v943, %v969
      %v988 = vsub.f32 %v946, %v972
      %v989 = vsub.f32 %v949, %v975
      %v990 = vsub.f32 %v952, %v978
      %v991 = vsub.f32 %v955, %v981
      %v992 = vsub.f32 %v958, %v984
      %v993 = vmul.f32 %v985, 1.442695
      %v994 = vpow.pop %v993
      %v995 = vmul.f32 %v986, 1.442695
      %v996 = vpow.pop %v995
      %v997 = vmul.f32 %v987, 1.442695
      %v998 = vpow.pop %v997
      %v999 = vmul.f32 %v988, 1.442695
      %v1000 = vpow.pop %v999
      %v1001 = vmul.f32 %v989, 1.442695
      %v1002 = vpow.pop %v1001
      %v1003 = vmul.f32 %v990, 1.442695
      %v1004 = vpow.pop %v1003
      %v1005 = vmul.f32 %v991, 1.442695
      %v1006 = vpow.pop %v1005
      %v1007 = vmul.f32 %v992, 1.442695
      %v1008 = vpow.pop %v1007
      %v1009 = vsel %vm960, %v994, 0.0
      %1010 = vadd.xlane.f32.xlu0 %v1009
      %v1011 = vpop.xlane.xlu0 %1010
      %v1012 = vsel %vm960, %v996, 0.0
      %1013 = vadd.xlane.f32.xlu0 %v1012
      %v1014 = vpop.xlane.xlu0 %1013
      %v1015 = vsel %vm960, %v998, 0.0
      %1016 = vadd.xlane.f32.xlu0 %v1015
      %v1017 = vpop.xlane.xlu0 %1016
      %v1018 = vsel %vm960, %v1000, 0.0
      %1019 = vadd.xlane.f32.xlu0 %v1018
      %v1020 = vpop.xlane.xlu0 %1019
      %v1021 = vsel %vm960, %v1002, 0.0
      %1022 = vadd.xlane.f32.xlu0 %v1021
      %v1023 = vpop.xlane.xlu0 %1022
      %v1024 = vsel %vm960, %v1004, 0.0
      %1025 = vadd.xlane.f32.xlu0 %v1024
      %v1026 = vpop.xlane.xlu0 %1025
      %v1027 = vsel %vm960, %v1006, 0.0
      %1028 = vadd.xlane.f32.xlu0 %v1027
      %v1029 = vpop.xlane.xlu0 %1028
      %v1030 = vsel %vm960, %v1008, 0.0
      %1031 = vadd.xlane.f32.xlu0 %v1030
      %v1032 = vpop.xlane.xlu0 %1031
      %v1033 = vrcp.pop %v1011
      %v1034 = vmul.f32 %v1011, %v1033
      %v1035 = vsub.f32 1.0, %v1034
      %v1036 = vmul.f32 %v1033, %v1035
      %v1037 = vadd.f32 %v1033, %v1036
      %vm1038 = vweird.f32 %v1011
      %vm1039 = vweird.f32 %v1033
      %vm1040 = vmor %vm1038, %vm1039
      %v1041 = vsel %vm1040, %v1033, %v1037
      %v1042 = vand.u32 2147483647, %v1011
      %vm1043 = vcmp.eq.f32.partialorder %v1042, 8.507059e+37
      %v1044 = vand.u32 %v1011, 2147483648
      %v1045 = vor.u32 1.1754944e-38, %v1044
      %v1046 = vsel %vm1043, %v1045, %v1041
      %v1047 = vmul.f32 %v994, %v1046
      %v1048 = vrcp.pop %v1014
      %v1049 = vmul.f32 %v1014, %v1048
      %v1050 = vsub.f32 1.0, %v1049
      %v1051 = vmul.f32 %v1048, %v1050
      %v1052 = vadd.f32 %v1048, %v1051
      %vm1053 = vweird.f32 %v1014
      %vm1054 = vweird.f32 %v1048
      %vm1055 = vmor %vm1053, %vm1054
      %v1056 = vsel %vm1055, %v1048, %v1052
      %v1057 = vand.u32 2147483647, %v1014
      %vm1058 = vcmp.eq.f32.partialorder %v1057, 8.507059e+37
      %v1059 = vand.u32 %v1014, 2147483648
      %v1060 = vor.u32 1.1754944e-38, %v1059
      %v1061 = vsel %vm1058, %v1060, %v1056
      %v1062 = vmul.f32 %v996, %v1061
      %v1063 = vrcp.pop %v1017
      %v1064 = vmul.f32 %v1017, %v1063
      %v1065 = vsub.f32 1.0, %v1064
      %v1066 = vmul.f32 %v1063, %v1065
      %v1067 = vadd.f32 %v1063, %v1066
      %vm1068 = vweird.f32 %v1017
      %vm1069 = vweird.f32 %v1063
      %vm1070 = vmor %vm1068, %vm1069
      %v1071 = vsel %vm1070, %v1063, %v1067
      %v1072 = vand.u32 2147483647, %v1017
      %vm1073 = vcmp.eq.f32.partialorder %v1072, 8.507059e+37
      %v1074 = vand.u32 %v1017, 2147483648
      %v1075 = vor.u32 1.1754944e-38, %v1074
      %v1076 = vsel %vm1073, %v1075, %v1071
      %v1077 = vmul.f32 %v998, %v1076
      %v1078 = vrcp.pop %v1020
      %v1079 = vmul.f32 %v1020, %v1078
      %v1080 = vsub.f32 1.0, %v1079
      %v1081 = vmul.f32 %v1078, %v1080
      %v1082 = vadd.f32 %v1078, %v1081
      %vm1083 = vweird.f32 %v1020
      %vm1084 = vweird.f32 %v1078
      %vm1085 = vmor %vm1083, %vm1084
      %v1086 = vsel %vm1085, %v1078, %v1082
      %v1087 = vand.u32 2147483647, %v1020
      %vm1088 = vcmp.eq.f32.partialorder %v1087, 8.507059e+37
      %v1089 = vand.u32 %v1020, 2147483648
      %v1090 = vor.u32 1.1754944e-38, %v1089
      %v1091 = vsel %vm1088, %v1090, %v1086
      %v1092 = vmul.f32 %v1000, %v1091
      %v1093 = vrcp.pop %v1023
      %v1094 = vmul.f32 %v1023, %v1093
      %v1095 = vsub.f32 1.0, %v1094
      %v1096 = vmul.f32 %v1093, %v1095
      %v1097 = vadd.f32 %v1093, %v1096
      %vm1098 = vweird.f32 %v1023
      %vm1099 = vweird.f32 %v1093
      %vm1100 = vmor %vm1098, %vm1099
      %v1101 = vsel %vm1100, %v1093, %v1097
      %v1102 = vand.u32 2147483647, %v1023
      %vm1103 = vcmp.eq.f32.partialorder %v1102, 8.507059e+37
      %v1104 = vand.u32 %v1023, 2147483648
      %v1105 = vor.u32 1.1754944e-38, %v1104
      %v1106 = vsel %vm1103, %v1105, %v1101
      %v1107 = vmul.f32 %v1002, %v1106
      %v1108 = vrcp.pop %v1026
      %v1109 = vmul.f32 %v1026, %v1108
      %v1110 = vsub.f32 1.0, %v1109
      %v1111 = vmul.f32 %v1108, %v1110
      %v1112 = vadd.f32 %v1108, %v1111
      %vm1113 = vweird.f32 %v1026
      %vm1114 = vweird.f32 %v1108
      %vm1115 = vmor %vm1113, %vm1114
      %v1116 = vsel %vm1115, %v1108, %v1112
      %v1117 = vand.u32 2147483647, %v1026
      %vm1118 = vcmp.eq.f32.partialorder %v1117, 8.507059e+37
      %v1119 = vand.u32 %v1026, 2147483648
      %v1120 = vor.u32 1.1754944e-38, %v1119
      %v1121 = vsel %vm1118, %v1120, %v1116
      %v1122 = vmul.f32 %v1004, %v1121
      %v1123 = vrcp.pop %v1029
      %v1124 = vmul.f32 %v1029, %v1123
      %v1125 = vsub.f32 1.0, %v1124
      %v1126 = vmul.f32 %v1123, %v1125
      %v1127 = vadd.f32 %v1123, %v1126
      %vm1128 = vweird.f32 %v1029
      %vm1129 = vweird.f32 %v1123
      %vm1130 = vmor %vm1128, %vm1129
      %v1131 = vsel %vm1130, %v1123, %v1127
      %v1132 = vand.u32 2147483647, %v1029
      %vm1133 = vcmp.eq.f32.partialorder %v1132, 8.507059e+37
      %v1134 = vand.u32 %v1029, 2147483648
      %v1135 = vor.u32 1.1754944e-38, %v1134
      %v1136 = vsel %vm1133, %v1135, %v1131
      %v1137 = vmul.f32 %v1006, %v1136
      %v1138 = vrcp.pop %v1032
      %v1139 = vmul.f32 %v1032, %v1138
      %v1140 = vsub.f32 1.0, %v1139
      %v1141 = vmul.f32 %v1138, %v1140
      %v1142 = vadd.f32 %v1138, %v1141
      %vm1143 = vweird.f32 %v1032
      %vm1144 = vweird.f32 %v1138
      %vm1145 = vmor %vm1143, %vm1144
      %v1146 = vsel %vm1145, %v1138, %v1142
      %v1147 = vand.u32 2147483647, %v1032
      %vm1148 = vcmp.eq.f32.partialorder %v1147, 8.507059e+37
      %v1149 = vand.u32 %v1032, 2147483648
      %v1150 = vor.u32 1.1754944e-38, %v1149
      %v1151 = vsel %vm1148, %v1150, %v1146
      %v1152 = vmul.f32 %v1008, %v1151
      %1153 = vrot.lane.b32.xlu0 %v813, 96
      %v1154 = vpop.permute.xlu0 %1153
      %1155 = vrot.lane.b32.xlu0 %v816, 96
      %v1156 = vpop.permute.xlu0 %1155
      %1157 = vrot.lane.b32.xlu0 %v819, 96
      %v1158 = vpop.permute.xlu0 %1157
      %1159 = vrot.lane.b32.xlu0 %v822, 96
      %v1160 = vpop.permute.xlu0 %1159
      %1161 = vrot.lane.b32.xlu0 %v825, 96
      %v1162 = vpop.permute.xlu0 %1161
      %1163 = vrot.lane.b32.xlu0 %v828, 96
      %v1164 = vpop.permute.xlu0 %1163
      %1165 = vrot.lane.b32.xlu0 %v831, 96
      %v1166 = vpop.permute.xlu0 %1165
      %1167 = vrot.lane.b32.xlu0 %v834, 96
      %v1168 = vpop.permute.xlu0 %1167
      %v1178 = vsel %vm960, %v1047, 0
      %v1181 = vsel %vm960, %v1062, 0
      %v1184 = vsel %vm960, %v1077, 0
      %v1187 = vsel %vm960, %v1092, 0
      %v1190 = vsel %vm960, %v1107, 0
      %v1193 = vsel %vm960, %v1122, 0
      %v1196 = vsel %vm960, %v1137, 0
      %v1199 = vsel %vm960, %v1152, 0
      %1201 = vmatpush.msra.mxu0 0.0
      %1202 = vmatpush.msra.mxu0 0.0
      %1203 = vmatpush.msra.mxu0 0.0
      %1204 = vmatpush.msra.mxu0 0.0
      %1205 = vmatpush.msra.mxu0 0.0
      %1206 = vmatpush.msra.mxu0 0.0
      %1207 = vmatpush.msra.mxu0 0.0
      %1208 = vmatpush.msra.mxu0 0.0
      %1209 = vmatpush.msra.mxu0 %v1168
      %1210 = vmatpush.msra.mxu0 %v1166
      %1211 = vmatpush.msra.mxu0 %v1164
      %1212 = vmatpush.msra.mxu0 %v1162
      %1213 = vmatpush.msra.mxu0 %v1160
      %1214 = vmatpush.msra.mxu0 %v1158
      %1215 = vmatpush.msra.mxu0 %v1156
      %1216 = vmatpush.msra.mxu0 %v1154
      %1217 = vmatmul.f32.gmra.mxu0 %v1178
      %v1218 = vpop.f32.mrf.mxu0
      %v1219 = vadd.f32 0.0, %v1218
      %1220 = vmatmul.f32.gmra.mxu0 %v1181
      %v1221 = vpop.f32.mrf.mxu0
      %v1222 = vadd.f32 0.0, %v1221
      %1223 = vmatmul.f32.gmra.mxu0 %v1184
      %v1224 = vpop.f32.mrf.mxu0
      %v1225 = vadd.f32 0.0, %v1224
      %1226 = vmatmul.f32.gmra.mxu0 %v1187
      %v1227 = vpop.f32.mrf.mxu0
      %v1228 = vadd.f32 0.0, %v1227
      %1229 = vmatmul.f32.gmra.mxu0 %v1190
      %v1230 = vpop.f32.mrf.mxu0
      %v1231 = vadd.f32 0.0, %v1230
      %1232 = vmatmul.f32.gmra.mxu0 %v1193
      %v1233 = vpop.f32.mrf.mxu0
      %v1234 = vadd.f32 0.0, %v1233
      %1235 = vmatmul.f32.gmra.mxu0 %v1196
      %v1236 = vpop.f32.mrf.mxu0
      %v1237 = vadd.f32 0.0, %v1236
      %1238 = vmatmul.f32.gmra.mxu0 %v1199
      %v1239 = vpop.f32.mrf.mxu0
      %v1240 = vadd.f32 0.0, %v1239
      %1241 = vdwg.mxu0
      %s1242 = scalar_lea.vmem %s5, 64
      %v1243 = vld [vmem:[%s1242] sm:$0xff]
      %v1244 = vld [vmem:[%s1242 + $0x8] sm:$0xff]
      %v1245 = vld [vmem:[%s1242 + $0x10] sm:$0xff]
      %v1246 = vld [vmem:[%s1242 + $0x18] sm:$0xff]
      %v1247 = vld [vmem:[%s1242 + $0x20] sm:$0xff]
      %v1248 = vld [vmem:[%s1242 + $0x28] sm:$0xff]
      %v1249 = vld [vmem:[%s1242 + $0x30] sm:$0xff]
      %v1250 = vld [vmem:[%s1242 + $0x38] sm:$0xff]
      %1251 = vrot.lane.b32.xlu0 %v838, 120
      %v1252 = vpop.permute.xlu0 %1251
      %1253 = vrot.lane.b32.xlu0 %v839, 120
      %v1254 = vpop.permute.xlu0 %1253
      %1255 = vrot.lane.b32.xlu0 %v840, 120
      %v1256 = vpop.permute.xlu0 %1255
      %1257 = vrot.lane.b32.xlu0 %v841, 120
      %v1258 = vpop.permute.xlu0 %1257
      %1259 = vrot.lane.b32.xlu0 %v842, 120
      %v1260 = vpop.permute.xlu0 %1259
      %1261 = vrot.lane.b32.xlu0 %v843, 120
      %v1262 = vpop.permute.xlu0 %1261
      %1263 = vrot.lane.b32.xlu0 %v844, 120
      %v1264 = vpop.permute.xlu0 %1263
      %1265 = vrot.lane.b32.xlu0 %v845, 120
      %v1266 = vpop.permute.xlu0 %1265
      %1267 = vrot.lane.b32.xlu0 %v813, 104
      %v1268 = vpop.permute.xlu0 %1267
      %1269 = vrot.lane.b32.xlu0 %v816, 104
      %v1270 = vpop.permute.xlu0 %1269
      %1271 = vrot.lane.b32.xlu0 %v819, 104
      %v1272 = vpop.permute.xlu0 %1271
      %1273 = vrot.lane.b32.xlu0 %v822, 104
      %v1274 = vpop.permute.xlu0 %1273
      %1275 = vrot.lane.b32.xlu0 %v825, 104
      %v1276 = vpop.permute.xlu0 %1275
      %1277 = vrot.lane.b32.xlu0 %v828, 104
      %v1278 = vpop.permute.xlu0 %1277
      %1279 = vrot.lane.b32.xlu0 %v831, 104
      %v1280 = vpop.permute.xlu0 %1279
      %1281 = vrot.lane.b32.xlu0 %v834, 104
      %v1282 = vpop.permute.xlu0 %1281
      %v1283 = vsel %vm878, %v1252, 0
      %v1285 = vsel %vm878, %v1254, 0
      %v1287 = vsel %vm878, %v1256, 0
      %v1289 = vsel %vm878, %v1258, 0
      %v1291 = vsel %vm878, %v1260, 0
      %v1293 = vsel %vm878, %v1262, 0
      %v1295 = vsel %vm878, %v1264, 0
      %v1297 = vsel %vm878, %v1266, 0
      %v1299 = vsel %vm878, %v1268, 0
      %v1301 = vsel %vm878, %v1270, 0
      %v1303 = vsel %vm878, %v1272, 0
      %v1305 = vsel %vm878, %v1274, 0
      %v1307 = vsel %vm878, %v1276, 0
      %v1309 = vsel %vm878, %v1278, 0
      %v1311 = vsel %vm878, %v1280, 0
      %v1313 = vsel %vm878, %v1282, 0
      %1315 = vmatpush.xpose.msra.mxu0 0.0
      %1316 = vmatpush.xpose.msra.mxu0 0.0
      %1317 = vmatpush.xpose.msra.mxu0 0.0
      %1318 = vmatpush.xpose.msra.mxu0 0.0
      %1319 = vmatpush.xpose.msra.mxu0 0.0
      %1320 = vmatpush.xpose.msra.mxu0 0.0
      %1321 = vmatpush.xpose.msra.mxu0 0.0
      %1322 = vmatpush.xpose.msra.mxu0 0.0
      %1323 = vmatpush.xpose.msra.mxu0 %v1313
      %1324 = vmatpush.xpose.msra.mxu0 %v1311
      %1325 = vmatpush.xpose.msra.mxu0 %v1309
      %1326 = vmatpush.xpose.msra.mxu0 %v1307
      %1327 = vmatpush.xpose.msra.mxu0 %v1305
      %1328 = vmatpush.xpose.msra.mxu0 %v1303
      %1329 = vmatpush.xpose.msra.mxu0 %v1301
      %1330 = vmatpush.xpose.msra.mxu0 %v1299
      %1331 = vmatmul.f32.gmra.mxu0 %v1283
      %v1332 = vpop.f32.mrf.mxu0
      %v1333 = vadd.f32 %v1243, %v1332
      %1334 = vmatmul.f32.gmra.mxu0 %v1285
      %v1335 = vpop.f32.mrf.mxu0
      %v1336 = vadd.f32 %v1244, %v1335
      %1337 = vmatmul.f32.gmra.mxu0 %v1287
      %v1338 = vpop.f32.mrf.mxu0
      %v1339 = vadd.f32 %v1245, %v1338
      %1340 = vmatmul.f32.gmra.mxu0 %v1289
      %v1341 = vpop.f32.mrf.mxu0
      %v1342 = vadd.f32 %v1246, %v1341
      %1343 = vmatmul.f32.gmra.mxu0 %v1291
      %v1344 = vpop.f32.mrf.mxu0
      %v1345 = vadd.f32 %v1247, %v1344
      %1346 = vmatmul.f32.gmra.mxu0 %v1293
      %v1347 = vpop.f32.mrf.mxu0
      %v1348 = vadd.f32 %v1248, %v1347
      %1349 = vmatmul.f32.gmra.mxu0 %v1295
      %v1350 = vpop.f32.mrf.mxu0
      %v1351 = vadd.f32 %v1249, %v1350
      %1352 = vmatmul.f32.gmra.mxu0 %v1297
      %v1353 = vpop.f32.mrf.mxu0
      %v1354 = vadd.f32 %v1250, %v1353
      %1355 = vdwg.mxu0
      %v1356 = vsel %vm960, %v1333, -inf
      %1357 = vmax.xlane.f32.xlu0 %v1356
      %v1358 = vpop.xlane.xlu0 %1357
      %v1359 = vsel %vm960, %v1336, -inf
      %1360 = vmax.xlane.f32.xlu0 %v1359
      %v1361 = vpop.xlane.xlu0 %1360
      %v1362 = vsel %vm960, %v1339, -inf
      %1363 = vmax.xlane.f32.xlu0 %v1362
      %v1364 = vpop.xlane.xlu0 %1363
      %v1365 = vsel %vm960, %v1342, -inf
      %1366 = vmax.xlane.f32.xlu0 %v1365
      %v1367 = vpop.xlane.xlu0 %1366
      %v1368 = vsel %vm960, %v1345, -inf
      %1369 = vmax.xlane.f32.xlu0 %v1368
      %v1370 = vpop.xlane.xlu0 %1369
      %v1371 = vsel %vm960, %v1348, -inf
      %1372 = vmax.xlane.f32.xlu0 %v1371
      %v1373 = vpop.xlane.xlu0 %1372
      %v1374 = vsel %vm960, %v1351, -inf
      %1375 = vmax.xlane.f32.xlu0 %v1374
      %v1376 = vpop.xlane.xlu0 %1375
      %v1377 = vsel %vm960, %v1354, -inf
      %1378 = vmax.xlane.f32.xlu0 %v1377
      %v1379 = vpop.xlane.xlu0 %1378
      %v1380 = vsub.f32 %v1333, %v1358
      %v1381 = vsub.f32 %v1336, %v1361
      %v1382 = vsub.f32 %v1339, %v1364
      %v1383 = vsub.f32 %v1342, %v1367
      %v1384 = vsub.f32 %v1345, %v1370
      %v1385 = vsub.f32 %v1348, %v1373
      %v1386 = vsub.f32 %v1351, %v1376
      %v1387 = vsub.f32 %v1354, %v1379
      %v1388 = vmul.f32 %v1380, 1.442695
      %v1389 = vpow.pop %v1388
      %v1390 = vmul.f32 %v1381, 1.442695
      %v1391 = vpow.pop %v1390
      %v1392 = vmul.f32 %v1382, 1.442695
      %v1393 = vpow.pop %v1392
      %v1394 = vmul.f32 %v1383, 1.442695
      %v1395 = vpow.pop %v1394
      %v1396 = vmul.f32 %v1384, 1.442695
      %v1397 = vpow.pop %v1396
      %v1398 = vmul.f32 %v1385, 1.442695
      %v1399 = vpow.pop %v1398
      %v1400 = vmul.f32 %v1386, 1.442695
      %v1401 = vpow.pop %v1400
      %v1402 = vmul.f32 %v1387, 1.442695
      %v1403 = vpow.pop %v1402
      %v1404 = vsel %vm960, %v1389, 0.0
      %1405 = vadd.xlane.f32.xlu0 %v1404
      %v1406 = vpop.xlane.xlu0 %1405
      %v1407 = vsel %vm960, %v1391, 0.0
      %1408 = vadd.xlane.f32.xlu0 %v1407
      %v1409 = vpop.xlane.xlu0 %1408
      %v1410 = vsel %vm960, %v1393, 0.0
      %1411 = vadd.xlane.f32.xlu0 %v1410
      %v1412 = vpop.xlane.xlu0 %1411
      %v1413 = vsel %vm960, %v1395, 0.0
      %1414 = vadd.xlane.f32.xlu0 %v1413
      %v1415 = vpop.xlane.xlu0 %1414
      %v1416 = vsel %vm960, %v1397, 0.0
      %1417 = vadd.xlane.f32.xlu0 %v1416
      %v1418 = vpop.xlane.xlu0 %1417
      %v1419 = vsel %vm960, %v1399, 0.0
      %1420 = vadd.xlane.f32.xlu0 %v1419
      %v1421 = vpop.xlane.xlu0 %1420
      %v1422 = vsel %vm960, %v1401, 0.0
      %1423 = vadd.xlane.f32.xlu0 %v1422
      %v1424 = vpop.xlane.xlu0 %1423
      %v1425 = vsel %vm960, %v1403, 0.0
      %1426 = vadd.xlane.f32.xlu0 %v1425
      %v1427 = vpop.xlane.xlu0 %1426
      %v1428 = vrcp.pop %v1406
      %v1429 = vmul.f32 %v1406, %v1428
      %v1430 = vsub.f32 1.0, %v1429
      %v1431 = vmul.f32 %v1428, %v1430
      %v1432 = vadd.f32 %v1428, %v1431
      %vm1433 = vweird.f32 %v1406
      %vm1434 = vweird.f32 %v1428
      %vm1435 = vmor %vm1433, %vm1434
      %v1436 = vsel %vm1435, %v1428, %v1432
      %v1437 = vand.u32 2147483647, %v1406
      %vm1438 = vcmp.eq.f32.partialorder %v1437, 8.507059e+37
      %v1439 = vand.u32 %v1406, 2147483648
      %v1440 = vor.u32 1.1754944e-38, %v1439
      %v1441 = vsel %vm1438, %v1440, %v1436
      %v1442 = vmul.f32 %v1389, %v1441
      %v1443 = vrcp.pop %v1409
      %v1444 = vmul.f32 %v1409, %v1443
      %v1445 = vsub.f32 1.0, %v1444
      %v1446 = vmul.f32 %v1443, %v1445
      %v1447 = vadd.f32 %v1443, %v1446
      %vm1448 = vweird.f32 %v1409
      %vm1449 = vweird.f32 %v1443
      %vm1450 = vmor %vm1448, %vm1449
      %v1451 = vsel %vm1450, %v1443, %v1447
      %v1452 = vand.u32 2147483647, %v1409
      %vm1453 = vcmp.eq.f32.partialorder %v1452, 8.507059e+37
      %v1454 = vand.u32 %v1409, 2147483648
      %v1455 = vor.u32 1.1754944e-38, %v1454
      %v1456 = vsel %vm1453, %v1455, %v1451
      %v1457 = vmul.f32 %v1391, %v1456
      %v1458 = vrcp.pop %v1412
      %v1459 = vmul.f32 %v1412, %v1458
      %v1460 = vsub.f32 1.0, %v1459
      %v1461 = vmul.f32 %v1458, %v1460
      %v1462 = vadd.f32 %v1458, %v1461
      %vm1463 = vweird.f32 %v1412
      %vm1464 = vweird.f32 %v1458
      %vm1465 = vmor %vm1463, %vm1464
      %v1466 = vsel %vm1465, %v1458, %v1462
      %v1467 = vand.u32 2147483647, %v1412
      %vm1468 = vcmp.eq.f32.partialorder %v1467, 8.507059e+37
      %v1469 = vand.u32 %v1412, 2147483648
      %v1470 = vor.u32 1.1754944e-38, %v1469
      %v1471 = vsel %vm1468, %v1470, %v1466
      %v1472 = vmul.f32 %v1393, %v1471
      %v1473 = vrcp.pop %v1415
      %v1474 = vmul.f32 %v1415, %v1473
      %v1475 = vsub.f32 1.0, %v1474
      %v1476 = vmul.f32 %v1473, %v1475
      %v1477 = vadd.f32 %v1473, %v1476
      %vm1478 = vweird.f32 %v1415
      %vm1479 = vweird.f32 %v1473
      %vm1480 = vmor %vm1478, %vm1479
      %v1481 = vsel %vm1480, %v1473, %v1477
      %v1482 = vand.u32 2147483647, %v1415
      %vm1483 = vcmp.eq.f32.partialorder %v1482, 8.507059e+37
      %v1484 = vand.u32 %v1415, 2147483648
      %v1485 = vor.u32 1.1754944e-38, %v1484
      %v1486 = vsel %vm1483, %v1485, %v1481
      %v1487 = vmul.f32 %v1395, %v1486
      %v1488 = vrcp.pop %v1418
      %v1489 = vmul.f32 %v1418, %v1488
      %v1490 = vsub.f32 1.0, %v1489
      %v1491 = vmul.f32 %v1488, %v1490
      %v1492 = vadd.f32 %v1488, %v1491
      %vm1493 = vweird.f32 %v1418
      %vm1494 = vweird.f32 %v1488
      %vm1495 = vmor %vm1493, %vm1494
      %v1496 = vsel %vm1495, %v1488, %v1492
      %v1497 = vand.u32 2147483647, %v1418
      %vm1498 = vcmp.eq.f32.partialorder %v1497, 8.507059e+37
      %v1499 = vand.u32 %v1418, 2147483648
      %v1500 = vor.u32 1.1754944e-38, %v1499
      %v1501 = vsel %vm1498, %v1500, %v1496
      %v1502 = vmul.f32 %v1397, %v1501
      %v1503 = vrcp.pop %v1421
      %v1504 = vmul.f32 %v1421, %v1503
      %v1505 = vsub.f32 1.0, %v1504
      %v1506 = vmul.f32 %v1503, %v1505
      %v1507 = vadd.f32 %v1503, %v1506
      %vm1508 = vweird.f32 %v1421
      %vm1509 = vweird.f32 %v1503
      %vm1510 = vmor %vm1508, %vm1509
      %v1511 = vsel %vm1510, %v1503, %v1507
      %v1512 = vand.u32 2147483647, %v1421
      %vm1513 = vcmp.eq.f32.partialorder %v1512, 8.507059e+37
      %v1514 = vand.u32 %v1421, 2147483648
      %v1515 = vor.u32 1.1754944e-38, %v1514
      %v1516 = vsel %vm1513, %v1515, %v1511
      %v1517 = vmul.f32 %v1399, %v1516
      %v1518 = vrcp.pop %v1424
      %v1519 = vmul.f32 %v1424, %v1518
      %v1520 = vsub.f32 1.0, %v1519
      %v1521 = vmul.f32 %v1518, %v1520
      %v1522 = vadd.f32 %v1518, %v1521
      %vm1523 = vweird.f32 %v1424
      %vm1524 = vweird.f32 %v1518
      %vm1525 = vmor %vm1523, %vm1524
      %v1526 = vsel %vm1525, %v1518, %v1522
      %v1527 = vand.u32 2147483647, %v1424
      %vm1528 = vcmp.eq.f32.partialorder %v1527, 8.507059e+37
      %v1529 = vand.u32 %v1424, 2147483648
      %v1530 = vor.u32 1.1754944e-38, %v1529
      %v1531 = vsel %vm1528, %v1530, %v1526
      %v1532 = vmul.f32 %v1401, %v1531
      %v1533 = vrcp.pop %v1427
      %v1534 = vmul.f32 %v1427, %v1533
      %v1535 = vsub.f32 1.0, %v1534
      %v1536 = vmul.f32 %v1533, %v1535
      %v1537 = vadd.f32 %v1533, %v1536
      %vm1538 = vweird.f32 %v1427
      %vm1539 = vweird.f32 %v1533
      %vm1540 = vmor %vm1538, %vm1539
      %v1541 = vsel %vm1540, %v1533, %v1537
      %v1542 = vand.u32 2147483647, %v1427
      %vm1543 = vcmp.eq.f32.partialorder %v1542, 8.507059e+37
      %v1544 = vand.u32 %v1427, 2147483648
      %v1545 = vor.u32 1.1754944e-38, %v1544
      %v1546 = vsel %vm1543, %v1545, %v1541
      %v1547 = vmul.f32 %v1403, %v1546
      %1548 = vrot.lane.b32.xlu0 %v813, 88
      %v1549 = vpop.permute.xlu0 %1548
      %1550 = vrot.lane.b32.xlu0 %v816, 88
      %v1551 = vpop.permute.xlu0 %1550
      %1552 = vrot.lane.b32.xlu0 %v819, 88
      %v1553 = vpop.permute.xlu0 %1552
      %1554 = vrot.lane.b32.xlu0 %v822, 88
      %v1555 = vpop.permute.xlu0 %1554
      %1556 = vrot.lane.b32.xlu0 %v825, 88
      %v1557 = vpop.permute.xlu0 %1556
      %1558 = vrot.lane.b32.xlu0 %v828, 88
      %v1559 = vpop.permute.xlu0 %1558
      %1560 = vrot.lane.b32.xlu0 %v831, 88
      %v1561 = vpop.permute.xlu0 %1560
      %1562 = vrot.lane.b32.xlu0 %v834, 88
      %v1563 = vpop.permute.xlu0 %1562
      %v1573 = vsel %vm960, %v1442, 0
      %v1576 = vsel %vm960, %v1457, 0
      %v1579 = vsel %vm960, %v1472, 0
      %v1582 = vsel %vm960, %v1487, 0
      %v1585 = vsel %vm960, %v1502, 0
      %v1588 = vsel %vm960, %v1517, 0
      %v1591 = vsel %vm960, %v1532, 0
      %v1594 = vsel %vm960, %v1547, 0
      %1596 = vmatpush.msra.mxu0 0.0
      %1597 = vmatpush.msra.mxu0 0.0
      %1598 = vmatpush.msra.mxu0 0.0
      %1599 = vmatpush.msra.mxu0 0.0
      %1600 = vmatpush.msra.mxu0 0.0
      %1601 = vmatpush.msra.mxu0 0.0
      %1602 = vmatpush.msra.mxu0 0.0
      %1603 = vmatpush.msra.mxu0 0.0
      %1604 = vmatpush.msra.mxu0 %v1563
      %1605 = vmatpush.msra.mxu0 %v1561
      %1606 = vmatpush.msra.mxu0 %v1559
      %1607 = vmatpush.msra.mxu0 %v1557
      %1608 = vmatpush.msra.mxu0 %v1555
      %1609 = vmatpush.msra.mxu0 %v1553
      %1610 = vmatpush.msra.mxu0 %v1551
      %1611 = vmatpush.msra.mxu0 %v1549
      %1612 = vmatmul.f32.gmra.mxu0 %v1573
      %v1613 = vpop.f32.mrf.mxu0
      %v1614 = vadd.f32 0.0, %v1613
      %1615 = vmatmul.f32.gmra.mxu0 %v1576
      %v1616 = vpop.f32.mrf.mxu0
      %v1617 = vadd.f32 0.0, %v1616
      %1618 = vmatmul.f32.gmra.mxu0 %v1579
      %v1619 = vpop.f32.mrf.mxu0
      %v1620 = vadd.f32 0.0, %v1619
      %1621 = vmatmul.f32.gmra.mxu0 %v1582
      %v1622 = vpop.f32.mrf.mxu0
      %v1623 = vadd.f32 0.0, %v1622
      %1624 = vmatmul.f32.gmra.mxu0 %v1585
      %v1625 = vpop.f32.mrf.mxu0
      %v1626 = vadd.f32 0.0, %v1625
      %1627 = vmatmul.f32.gmra.mxu0 %v1588
      %v1628 = vpop.f32.mrf.mxu0
      %v1629 = vadd.f32 0.0, %v1628
      %1630 = vmatmul.f32.gmra.mxu0 %v1591
      %v1631 = vpop.f32.mrf.mxu0
      %v1632 = vadd.f32 0.0, %v1631
      %1633 = vmatmul.f32.gmra.mxu0 %v1594
      %v1634 = vpop.f32.mrf.mxu0
      %v1635 = vadd.f32 0.0, %v1634
      %1636 = vdwg.mxu0
      %v1638 = vsel %vm878, %v1614, 0
      %v1641 = vsel %vm878, %v1617, 0
      %v1644 = vsel %vm878, %v1620, 0
      %v1647 = vsel %vm878, %v1623, 0
      %v1650 = vsel %vm878, %v1626, 0
      %v1653 = vsel %vm878, %v1629, 0
      %v1656 = vsel %vm878, %v1632, 0
      %v1659 = vsel %vm878, %v1635, 0
      %1661 = vmatpush.msra.mxu0 0.0
      %1662 = vmatpush.msra.mxu0 0.0
      %1663 = vmatpush.msra.mxu0 0.0
      %1664 = vmatpush.msra.mxu0 0.0
      %1665 = vmatpush.msra.mxu0 0.0
      %1666 = vmatpush.msra.mxu0 0.0
      %1667 = vmatpush.msra.mxu0 0.0
      %1668 = vmatpush.msra.mxu0 0.0
      %1669 = vmatpush.msra.mxu0 0.0
      %1670 = vmatpush.msra.mxu0 0.0
      %1671 = vmatpush.msra.mxu0 0.0
      %1672 = vmatpush.msra.mxu0 0.0
      %1673 = vmatpush.msra.mxu0 0.0
      %1674 = vmatpush.msra.mxu0 0.0
      %1675 = vmatpush.msra.mxu0 0.0
      %1676 = vmatpush.msra.mxu0 %v837
      %1677 = vmatmul.f32.gmra.mxu0 %v1638
      %v1678 = vpop.f32.mrf.mxu0
      %v1679 = vadd.f32 0.0, %v1678
      %1680 = vmatmul.f32.gmra.mxu0 %v1641
      %v1681 = vpop.f32.mrf.mxu0
      %v1682 = vadd.f32 0.0, %v1681
      %1683 = vmatmul.f32.gmra.mxu0 %v1644
      %v1684 = vpop.f32.mrf.mxu0
      %v1685 = vadd.f32 0.0, %v1684
      %1686 = vmatmul.f32.gmra.mxu0 %v1647
      %v1687 = vpop.f32.mrf.mxu0
      %v1688 = vadd.f32 0.0, %v1687
      %1689 = vmatmul.f32.gmra.mxu0 %v1650
      %v1690 = vpop.f32.mrf.mxu0
      %v1691 = vadd.f32 0.0, %v1690
      %1692 = vmatmul.f32.gmra.mxu0 %v1653
      %v1693 = vpop.f32.mrf.mxu0
      %v1694 = vadd.f32 0.0, %v1693
      %1695 = vmatmul.f32.gmra.mxu0 %v1656
      %v1696 = vpop.f32.mrf.mxu0
      %v1697 = vadd.f32 0.0, %v1696
      %1698 = vmatmul.f32.gmra.mxu0 %v1659
      %v1699 = vpop.f32.mrf.mxu0
      %v1700 = vadd.f32 0.0, %v1699
      %1701 = vdwg.mxu0
      %v1703 = vsel %vm878, %v1219, 0
      %v1706 = vsel %vm878, %v1222, 0
      %v1709 = vsel %vm878, %v1225, 0
      %v1712 = vsel %vm878, %v1228, 0
      %v1715 = vsel %vm878, %v1231, 0
      %v1718 = vsel %vm878, %v1234, 0
      %v1721 = vsel %vm878, %v1237, 0
      %v1724 = vsel %vm878, %v1240, 0
      %1726 = vmatpush.msra.mxu0 0.0
      %1727 = vmatpush.msra.mxu0 0.0
      %1728 = vmatpush.msra.mxu0 0.0
      %1729 = vmatpush.msra.mxu0 0.0
      %1730 = vmatpush.msra.mxu0 0.0
      %1731 = vmatpush.msra.mxu0 0.0
      %1732 = vmatpush.msra.mxu0 0.0
      %1733 = vmatpush.msra.mxu0 0.0
      %1734 = vmatpush.msra.mxu0 0.0
      %1735 = vmatpush.msra.mxu0 0.0
      %1736 = vmatpush.msra.mxu0 0.0
      %1737 = vmatpush.msra.mxu0 0.0
      %1738 = vmatpush.msra.mxu0 0.0
      %1739 = vmatpush.msra.mxu0 0.0
      %1740 = vmatpush.msra.mxu0 0.0
      %1741 = vmatpush.msra.mxu0 %v836
      %1742 = vmatmul.f32.gmra.mxu0 %v1703
      %v1743 = vpop.f32.mrf.mxu0
      %v1744 = vadd.f32 %v1679, %v1743
      %1745 = vmatmul.f32.gmra.mxu0 %v1706
      %v1746 = vpop.f32.mrf.mxu0
      %v1747 = vadd.f32 %v1682, %v1746
      %1748 = vmatmul.f32.gmra.mxu0 %v1709
      %v1749 = vpop.f32.mrf.mxu0
      %v1750 = vadd.f32 %v1685, %v1749
      %1751 = vmatmul.f32.gmra.mxu0 %v1712
      %v1752 = vpop.f32.mrf.mxu0
      %v1753 = vadd.f32 %v1688, %v1752
      %1754 = vmatmul.f32.gmra.mxu0 %v1715
      %v1755 = vpop.f32.mrf.mxu0
      %v1756 = vadd.f32 %v1691, %v1755
      %1757 = vmatmul.f32.gmra.mxu0 %v1718
      %v1758 = vpop.f32.mrf.mxu0
      %v1759 = vadd.f32 %v1694, %v1758
      %1760 = vmatmul.f32.gmra.mxu0 %v1721
      %v1761 = vpop.f32.mrf.mxu0
      %v1762 = vadd.f32 %v1697, %v1761
      %1763 = vmatmul.f32.gmra.mxu0 %v1724
      %v1764 = vpop.f32.mrf.mxu0
      %v1765 = vadd.f32 %v1700, %v1764
      %1766 = vdwg.mxu0
      %v1767 = vadd.f32 %v549, %v1744
      %v1768 = vadd.f32 %v550, %v1747
      %v1769 = vadd.f32 %v551, %v1750
      %v1770 = vadd.f32 %v552, %v1753
      %v1771 = vadd.f32 %v553, %v1756
      %v1772 = vadd.f32 %v554, %v1759
      %v1773 = vadd.f32 %v555, %v1762
      %v1774 = vadd.f32 %v556, %v1765
      %v1775 = vld [vmem:[%s7] sm:$0x1]
      %v1777 = vperm.slane %v1775, 0
      %v1779 = vadd.f32 %v1767, %v1777
      %v1780 = vadd.f32 %v1768, %v1777
      %v1781 = vadd.f32 %v1769, %v1777
      %v1782 = vadd.f32 %v1770, %v1777
      %v1783 = vadd.f32 %v1771, %v1777
      %v1784 = vadd.f32 %v1772, %v1777
      %v1785 = vadd.f32 %v1773, %v1777
      %v1786 = vadd.f32 %v1774, %v1777
      %v1787 = vld [vmem:[%s8] sm:$0x1]
      %v1788 = vld [vmem:[%s9] sm:$0x1]
      %v1789 = vsel %vm559, %v1779, 0.0
      %1790 = vadd.xlane.f32.xlu0 %v1789
      %v1791 = vpop.xlane.xlu0 %1790
      %v1792 = vsel %vm559, %v1780, 0.0
      %1793 = vadd.xlane.f32.xlu0 %v1792
      %v1794 = vpop.xlane.xlu0 %1793
      %v1795 = vsel %vm559, %v1781, 0.0
      %1796 = vadd.xlane.f32.xlu0 %v1795
      %v1797 = vpop.xlane.xlu0 %1796
      %v1798 = vsel %vm559, %v1782, 0.0
      %1799 = vadd.xlane.f32.xlu0 %v1798
      %v1800 = vpop.xlane.xlu0 %1799
      %v1801 = vsel %vm559, %v1783, 0.0
      %1802 = vadd.xlane.f32.xlu0 %v1801
      %v1803 = vpop.xlane.xlu0 %1802
      %v1804 = vsel %vm559, %v1784, 0.0
      %1805 = vadd.xlane.f32.xlu0 %v1804
      %v1806 = vpop.xlane.xlu0 %1805
      %v1807 = vsel %vm559, %v1785, 0.0
      %1808 = vadd.xlane.f32.xlu0 %v1807
      %v1809 = vpop.xlane.xlu0 %1808
      %v1810 = vsel %vm559, %v1786, 0.0
      %1811 = vadd.xlane.f32.xlu0 %v1810
      %v1812 = vpop.xlane.xlu0 %1811
      %v1813 = vmul.f32 %v1791, %v590
      %v1814 = vmul.f32 %v1794, %v590
      %v1815 = vmul.f32 %v1797, %v590
      %v1816 = vmul.f32 %v1800, %v590
      %v1817 = vmul.f32 %v1803, %v590
      %v1818 = vmul.f32 %v1806, %v590
      %v1819 = vmul.f32 %v1809, %v590
      %v1820 = vmul.f32 %v1812, %v590
      %v1821 = vsub.f32 %v1779, %v1813
      %v1822 = vsub.f32 %v1780, %v1814
      %v1823 = vsub.f32 %v1781, %v1815
      %v1824 = vsub.f32 %v1782, %v1816
      %v1825 = vsub.f32 %v1783, %v1817
      %v1826 = vsub.f32 %v1784, %v1818
      %v1827 = vsub.f32 %v1785, %v1819
      %v1828 = vsub.f32 %v1786, %v1820
      %v1829 = vmul.f32 %v1821, %v1821
      %v1830 = vmul.f32 %v1822, %v1822
      %v1831 = vmul.f32 %v1823, %v1823
      %v1832 = vmul.f32 %v1824, %v1824
      %v1833 = vmul.f32 %v1825, %v1825
      %v1834 = vmul.f32 %v1826, %v1826
      %v1835 = vmul.f32 %v1827, %v1827
      %v1836 = vmul.f32 %v1828, %v1828
      %v1837 = vsel %vm559, %v1829, 0.0
      %1838 = vadd.xlane.f32.xlu0 %v1837
      %v1839 = vpop.xlane.xlu0 %1838
      %v1840 = vsel %vm559, %v1830, 0.0
      %1841 = vadd.xlane.f32.xlu0 %v1840
      %v1842 = vpop.xlane.xlu0 %1841
      %v1843 = vsel %vm559, %v1831, 0.0
      %1844 = vadd.xlane.f32.xlu0 %v1843
      %v1845 = vpop.xlane.xlu0 %1844
      %v1846 = vsel %vm559, %v1832, 0.0
      %1847 = vadd.xlane.f32.xlu0 %v1846
      %v1848 = vpop.xlane.xlu0 %1847
      %v1849 = vsel %vm559, %v1833, 0.0
      %1850 = vadd.xlane.f32.xlu0 %v1849
      %v1851 = vpop.xlane.xlu0 %1850
      %v1852 = vsel %vm559, %v1834, 0.0
      %1853 = vadd.xlane.f32.xlu0 %v1852
      %v1854 = vpop.xlane.xlu0 %1853
      %v1855 = vsel %vm559, %v1835, 0.0
      %1856 = vadd.xlane.f32.xlu0 %v1855
      %v1857 = vpop.xlane.xlu0 %1856
      %v1858 = vsel %vm559, %v1836, 0.0
      %1859 = vadd.xlane.f32.xlu0 %v1858
      %v1860 = vpop.xlane.xlu0 %1859
      %v1861 = vmul.f32 %v1839, %v590
      %v1862 = vmul.f32 %v1842, %v590
      %v1863 = vmul.f32 %v1845, %v590
      %v1864 = vmul.f32 %v1848, %v590
      %v1865 = vmul.f32 %v1851, %v590
      %v1866 = vmul.f32 %v1854, %v590
      %v1867 = vmul.f32 %v1857, %v590
      %v1868 = vmul.f32 %v1860, %v590
      %v1869 = vadd.f32 %v1861, 1e-05
      %v1870 = vadd.f32 %v1862, 1e-05
      %v1871 = vadd.f32 %v1863, 1e-05
      %v1872 = vadd.f32 %v1864, 1e-05
      %v1873 = vadd.f32 %v1865, 1e-05
      %v1874 = vadd.f32 %v1866, 1e-05
      %v1875 = vadd.f32 %v1867, 1e-05
      %v1876 = vadd.f32 %v1868, 1e-05
      %v1877 = vrsqrt.pop %v1869
      %v1878 = vmul.f32 %v1877, %v1869
      %v1879 = vmul.f32 %v1878, %v1877
      %v1880 = vmul.f32 0.5, %v1879
      %v1881 = vsub.f32 1.5, %v1880
      %v1882 = vmul.f32 %v1877, %v1881
      %vm1883 = vweird.f32 %v1869
      %vm1884 = vweird.f32 %v1877
      %vm1885 = vmor %vm1883, %vm1884
      %v1886 = vsel %vm1885, %v1877, %v1882
      %v1887 = vrsqrt.pop %v1870
      %v1888 = vmul.f32 %v1887, %v1870
      %v1889 = vmul.f32 %v1888, %v1887
      %v1890 = vmul.f32 0.5, %v1889
      %v1891 = vsub.f32 1.5, %v1890
      %v1892 = vmul.f32 %v1887, %v1891
      %vm1893 = vweird.f32 %v1870
      %vm1894 = vweird.f32 %v1887
      %vm1895 = vmor %vm1893, %vm1894
      %v1896 = vsel %vm1895, %v1887, %v1892
      %v1897 = vrsqrt.pop %v1871
      %v1898 = vmul.f32 %v1897, %v1871
      %v1899 = vmul.f32 %v1898, %v1897
      %v1900 = vmul.f32 0.5, %v1899
      %v1901 = vsub.f32 1.5, %v1900
      %v1902 = vmul.f32 %v1897, %v1901
      %vm1903 = vweird.f32 %v1871
      %vm1904 = vweird.f32 %v1897
      %vm1905 = vmor %vm1903, %vm1904
      %v1906 = vsel %vm1905, %v1897, %v1902
      %v1907 = vrsqrt.pop %v1872
      %v1908 = vmul.f32 %v1907, %v1872
      %v1909 = vmul.f32 %v1908, %v1907
      %v1910 = vmul.f32 0.5, %v1909
      %v1911 = vsub.f32 1.5, %v1910
      %v1912 = vmul.f32 %v1907, %v1911
      %vm1913 = vweird.f32 %v1872
      %vm1914 = vweird.f32 %v1907
      %vm1915 = vmor %vm1913, %vm1914
      %v1916 = vsel %vm1915, %v1907, %v1912
      %v1917 = vrsqrt.pop %v1873
      %v1918 = vmul.f32 %v1917, %v1873
      %v1919 = vmul.f32 %v1918, %v1917
      %v1920 = vmul.f32 0.5, %v1919
      %v1921 = vsub.f32 1.5, %v1920
      %v1922 = vmul.f32 %v1917, %v1921
      %vm1923 = vweird.f32 %v1873
      %vm1924 = vweird.f32 %v1917
      %vm1925 = vmor %vm1923, %vm1924
      %v1926 = vsel %vm1925, %v1917, %v1922
      %v1927 = vrsqrt.pop %v1874
      %v1928 = vmul.f32 %v1927, %v1874
      %v1929 = vmul.f32 %v1928, %v1927
      %v1930 = vmul.f32 0.5, %v1929
      %v1931 = vsub.f32 1.5, %v1930
      %v1932 = vmul.f32 %v1927, %v1931
      %vm1933 = vweird.f32 %v1874
      %vm1934 = vweird.f32 %v1927
      %vm1935 = vmor %vm1933, %vm1934
      %v1936 = vsel %vm1935, %v1927, %v1932
      %v1937 = vrsqrt.pop %v1875
      %v1938 = vmul.f32 %v1937, %v1875
      %v1939 = vmul.f32 %v1938, %v1937
      %v1940 = vmul.f32 0.5, %v1939
      %v1941 = vsub.f32 1.5, %v1940
      %v1942 = vmul.f32 %v1937, %v1941
      %vm1943 = vweird.f32 %v1875
      %vm1944 = vweird.f32 %v1937
      %vm1945 = vmor %vm1943, %vm1944
      %v1946 = vsel %vm1945, %v1937, %v1942
      %v1947 = vrsqrt.pop %v1876
      %v1948 = vmul.f32 %v1947, %v1876
      %v1949 = vmul.f32 %v1948, %v1947
      %v1950 = vmul.f32 0.5, %v1949
      %v1951 = vsub.f32 1.5, %v1950
      %v1952 = vmul.f32 %v1947, %v1951
      %vm1953 = vweird.f32 %v1876
      %vm1954 = vweird.f32 %v1947
      %vm1955 = vmor %vm1953, %vm1954
      %v1956 = vsel %vm1955, %v1947, %v1952
      %v1957 = vmul.f32 %v1821, %v1886
      %v1958 = vmul.f32 %v1822, %v1896
      %v1959 = vmul.f32 %v1823, %v1906
      %v1960 = vmul.f32 %v1824, %v1916
      %v1961 = vmul.f32 %v1825, %v1926
      %v1962 = vmul.f32 %v1826, %v1936
      %v1963 = vmul.f32 %v1827, %v1946
      %v1964 = vmul.f32 %v1828, %v1956
      %v1966 = vperm.slane %v1787, 0
      %v1968 = vmul.f32 %v1957, %v1966
      %v1969 = vmul.f32 %v1958, %v1966
      %v1970 = vmul.f32 %v1959, %v1966
      %v1971 = vmul.f32 %v1960, %v1966
      %v1972 = vmul.f32 %v1961, %v1966
      %v1973 = vmul.f32 %v1962, %v1966
      %v1974 = vmul.f32 %v1963, %v1966
      %v1975 = vmul.f32 %v1964, %v1966
      %v1977 = vperm.slane %v1788, 0
      %v1979 = vadd.f32 %v1968, %v1977
      %v1980 = vadd.f32 %v1969, %v1977
      %v1981 = vadd.f32 %v1970, %v1977
      %v1982 = vadd.f32 %v1971, %v1977
      %v1983 = vadd.f32 %v1972, %v1977
      %v1984 = vadd.f32 %v1973, %v1977
      %v1985 = vadd.f32 %v1974, %v1977
      %v1986 = vadd.f32 %v1975, %v1977
      %v1987 = vld [vmem:[%s10] sm:$0xff]
      %v1988 = vld [vmem:[%s10 + $0x8] sm:$0xff]
      %v1989 = vld [vmem:[%s11] sm:$0x1]
      %v1991 = vperm.slane %v1989, 0
      %v1994 = vsel %vm559, %v1979, 0
      %v1997 = vsel %vm559, %v1980, 0
      %v2000 = vsel %vm559, %v1981, 0
      %v2003 = vsel %vm559, %v1982, 0
      %v2006 = vsel %vm559, %v1983, 0
      %v2009 = vsel %vm559, %v1984, 0
      %v2012 = vsel %vm559, %v1985, 0
      %v2015 = vsel %vm559, %v1986, 0
      %2017 = vmatpush.msra.mxu0 0.0
      %2018 = vmatpush.msra.mxu0 0.0
      %2019 = vmatpush.msra.mxu0 0.0
      %2020 = vmatpush.msra.mxu0 0.0
      %2021 = vmatpush.msra.mxu0 0.0
      %2022 = vmatpush.msra.mxu0 0.0
      %2023 = vmatpush.msra.mxu0 0.0
      %2024 = vmatpush.msra.mxu0 0.0
      %2025 = vmatpush.msra.mxu0 0.0
      %2026 = vmatpush.msra.mxu0 0.0
      %2027 = vmatpush.msra.mxu0 0.0
      %2028 = vmatpush.msra.mxu0 0.0
      %2029 = vmatpush.msra.mxu0 0.0
      %2030 = vmatpush.msra.mxu0 0.0
      %2031 = vmatpush.msra.mxu0 %v1988
      %2032 = vmatpush.msra.mxu0 %v1987
      %2033 = vmatmul.f32.gmra.mxu0 %v1994
      %v2034 = vpop.f32.mrf.mxu0
      %v2035 = vadd.f32 %v1991, %v2034
      %2036 = vmatmul.f32.gmra.mxu0 %v1997
      %v2037 = vpop.f32.mrf.mxu0
      %v2038 = vadd.f32 %v1991, %v2037
      %2039 = vmatmul.f32.gmra.mxu0 %v2000
      %v2040 = vpop.f32.mrf.mxu0
      %v2041 = vadd.f32 %v1991, %v2040
      %2042 = vmatmul.f32.gmra.mxu0 %v2003
      %v2043 = vpop.f32.mrf.mxu0
      %v2044 = vadd.f32 %v1991, %v2043
      %2045 = vmatmul.f32.gmra.mxu0 %v2006
      %v2046 = vpop.f32.mrf.mxu0
      %v2047 = vadd.f32 %v1991, %v2046
      %2048 = vmatmul.f32.gmra.mxu0 %v2009
      %v2049 = vpop.f32.mrf.mxu0
      %v2050 = vadd.f32 %v1991, %v2049
      %2051 = vmatmul.f32.gmra.mxu0 %v2012
      %v2052 = vpop.f32.mrf.mxu0
      %v2053 = vadd.f32 %v1991, %v2052
      %2054 = vmatmul.f32.gmra.mxu0 %v2015
      %v2055 = vpop.f32.mrf.mxu0
      %v2056 = vadd.f32 %v1991, %v2055
      %2057 = vdwg.mxu0
      %v2058 = vmul.f32 %v2035, 0.5
      %v2059 = vmul.f32 %v2038, 0.5
      %v2060 = vmul.f32 %v2041, 0.5
      %v2061 = vmul.f32 %v2044, 0.5
      %v2062 = vmul.f32 %v2047, 0.5
      %v2063 = vmul.f32 %v2050, 0.5
      %v2064 = vmul.f32 %v2053, 0.5
      %v2065 = vmul.f32 %v2056, 0.5
      %v2066 = vmul.f32 %v2035, 0.70710677
      %v2067 = vmul.f32 %v2038, 0.70710677
      %v2068 = vmul.f32 %v2041, 0.70710677
      %v2069 = vmul.f32 %v2044, 0.70710677
      %v2070 = vmul.f32 %v2047, 0.70710677
      %v2071 = vmul.f32 %v2050, 0.70710677
      %v2072 = vmul.f32 %v2053, 0.70710677
      %v2073 = vmul.f32 %v2056, 0.70710677
      %v2074 = vmul.f32 %v2066, %v2066
      %v2075 = vmin.f32 16.0, %v2074
      %v2076 = vmul.f32 %v2075, 2.1237322e-06
      %v2077 = vadd.f32 %v2076, 0.00028619796
      %v2078 = vmul.f32 %v2075, %v2077
      %v2079 = vadd.f32 %v2078, 0.0036580483
      %v2080 = vmul.f32 %v2075, %v2079
      %v2081 = vadd.f32 %v2080, 0.05243302
      %v2082 = vmul.f32 %v2075, %v2081
      %v2083 = vadd.f32 %v2082, 0.18741608
      %v2084 = vmul.f32 %v2075, %v2083
      %v2085 = vadd.f32 %v2084, 1.1283791
      %v2086 = vmul.f32 %v2066, %v2085
      %v2087 = vmul.f32 %v2075, 3.8918573e-05
      %v2088 = vadd.f32 %v2087, 0.001143296
      %v2089 = vmul.f32 %v2075, %v2088
      %v2090 = vadd.f32 %v2089, 0.014752088
      %v2091 = vmul.f32 %v2075, %v2090
      %v2092 = vadd.f32 %v2091, 0.112945676
      %v2093 = vmul.f32 %v2075, %v2092
      %v2094 = vadd.f32 %v2093, 0.4994258
      %v2095 = vmul.f32 %v2075, %v2094
      %v2096 = vadd.f32 %v2095, 1.0
      %v2097 = vrcp.pop %v2096
      %v2098 = vmul.f32 %v2096, %v2097
      %v2099 = vsub.f32 1.0, %v2098
      %v2100 = vmul.f32 %v2097, %v2099
      %v2101 = vadd.f32 %v2097, %v2100
      %vm2102 = vweird.f32 %v2096
      %vm2103 = vweird.f32 %v2097
      %vm2104 = vmor %vm2102, %vm2103
      %v2105 = vsel %vm2104, %v2097, %v2101
      %v2106 = vand.u32 2147483647, %v2096
      %vm2107 = vcmp.eq.f32.partialorder %v2106, 8.507059e+37
      %v2108 = vand.u32 %v2096, 2147483648
      %v2109 = vor.u32 1.1754944e-38, %v2108
      %v2110 = vsel %vm2107, %v2109, %v2105
      %v2111 = vmul.f32 %v2086, %v2110
      %v2112 = vmin.f32 %v2111, 1.0
      %v2113 = vmax.f32 %v2112, -1.0
      %v2114 = vmul.f32 %v2067, %v2067
      %v2115 = vmin.f32 16.0, %v2114
      %v2116 = vmul.f32 %v2115, 2.1237322e-06
      %v2117 = vadd.f32 %v2116, 0.00028619796
      %v2118 = vmul.f32 %v2115, %v2117
      %v2119 = vadd.f32 %v2118, 0.0036580483
      %v2120 = vmul.f32 %v2115, %v2119
      %v2121 = vadd.f32 %v2120, 0.05243302
      %v2122 = vmul.f32 %v2115, %v2121
      %v2123 = vadd.f32 %v2122, 0.18741608
      %v2124 = vmul.f32 %v2115, %v2123
      %v2125 = vadd.f32 %v2124, 1.1283791
      %v2126 = vmul.f32 %v2067, %v2125
      %v2127 = vmul.f32 %v2115, 3.8918573e-05
      %v2128 = vadd.f32 %v2127, 0.001143296
      %v2129 = vmul.f32 %v2115, %v2128
      %v2130 = vadd.f32 %v2129, 0.014752088
      %v2131 = vmul.f32 %v2115, %v2130
      %v2132 = vadd.f32 %v2131, 0.112945676
      %v2133 = vmul.f32 %v2115, %v2132
      %v2134 = vadd.f32 %v2133, 0.4994258
      %v2135 = vmul.f32 %v2115, %v2134
      %v2136 = vadd.f32 %v2135, 1.0
      %v2137 = vrcp.pop %v2136
      %v2138 = vmul.f32 %v2136, %v2137
      %v2139 = vsub.f32 1.0, %v2138
      %v2140 = vmul.f32 %v2137, %v2139
      %v2141 = vadd.f32 %v2137, %v2140
      %vm2142 = vweird.f32 %v2136
      %vm2143 = vweird.f32 %v2137
      %vm2144 = vmor %vm2142, %vm2143
      %v2145 = vsel %vm2144, %v2137, %v2141
      %v2146 = vand.u32 2147483647, %v2136
      %vm2147 = vcmp.eq.f32.partialorder %v2146, 8.507059e+37
      %v2148 = vand.u32 %v2136, 2147483648
      %v2149 = vor.u32 1.1754944e-38, %v2148
      %v2150 = vsel %vm2147, %v2149, %v2145
      %v2151 = vmul.f32 %v2126, %v2150
      %v2152 = vmin.f32 %v2151, 1.0
      %v2153 = vmax.f32 %v2152, -1.0
      %v2154 = vmul.f32 %v2068, %v2068
      %v2155 = vmin.f32 16.0, %v2154
      %v2156 = vmul.f32 %v2155, 2.1237322e-06
      %v2157 = vadd.f32 %v2156, 0.00028619796
      %v2158 = vmul.f32 %v2155, %v2157
      %v2159 = vadd.f32 %v2158, 0.0036580483
      %v2160 = vmul.f32 %v2155, %v2159
      %v2161 = vadd.f32 %v2160, 0.05243302
      %v2162 = vmul.f32 %v2155, %v2161
      %v2163 = vadd.f32 %v2162, 0.18741608
      %v2164 = vmul.f32 %v2155, %v2163
      %v2165 = vadd.f32 %v2164, 1.1283791
      %v2166 = vmul.f32 %v2068, %v2165
      %v2167 = vmul.f32 %v2155, 3.8918573e-05
      %v2168 = vadd.f32 %v2167, 0.001143296
      %v2169 = vmul.f32 %v2155, %v2168
      %v2170 = vadd.f32 %v2169, 0.014752088
      %v2171 = vmul.f32 %v2155, %v2170
      %v2172 = vadd.f32 %v2171, 0.112945676
      %v2173 = vmul.f32 %v2155, %v2172
      %v2174 = vadd.f32 %v2173, 0.4994258
      %v2175 = vmul.f32 %v2155, %v2174
      %v2176 = vadd.f32 %v2175, 1.0
      %v2177 = vrcp.pop %v2176
      %v2178 = vmul.f32 %v2176, %v2177
      %v2179 = vsub.f32 1.0, %v2178
      %v2180 = vmul.f32 %v2177, %v2179
      %v2181 = vadd.f32 %v2177, %v2180
      %vm2182 = vweird.f32 %v2176
      %vm2183 = vweird.f32 %v2177
      %vm2184 = vmor %vm2182, %vm2183
      %v2185 = vsel %vm2184, %v2177, %v2181
      %v2186 = vand.u32 2147483647, %v2176
      %vm2187 = vcmp.eq.f32.partialorder %v2186, 8.507059e+37
      %v2188 = vand.u32 %v2176, 2147483648
      %v2189 = vor.u32 1.1754944e-38, %v2188
      %v2190 = vsel %vm2187, %v2189, %v2185
      %v2191 = vmul.f32 %v2166, %v2190
      %v2192 = vmin.f32 %v2191, 1.0
      %v2193 = vmax.f32 %v2192, -1.0
      %v2194 = vmul.f32 %v2069, %v2069
      %v2195 = vmin.f32 16.0, %v2194
      %v2196 = vmul.f32 %v2195, 2.1237322e-06
      %v2197 = vadd.f32 %v2196, 0.00028619796
      %v2198 = vmul.f32 %v2195, %v2197
      %v2199 = vadd.f32 %v2198, 0.0036580483
      %v2200 = vmul.f32 %v2195, %v2199
      %v2201 = vadd.f32 %v2200, 0.05243302
      %v2202 = vmul.f32 %v2195, %v2201
      %v2203 = vadd.f32 %v2202, 0.18741608
      %v2204 = vmul.f32 %v2195, %v2203
      %v2205 = vadd.f32 %v2204, 1.1283791
      %v2206 = vmul.f32 %v2069, %v2205
      %v2207 = vmul.f32 %v2195, 3.8918573e-05
      %v2208 = vadd.f32 %v2207, 0.001143296
      %v2209 = vmul.f32 %v2195, %v2208
      %v2210 = vadd.f32 %v2209, 0.014752088
      %v2211 = vmul.f32 %v2195, %v2210
      %v2212 = vadd.f32 %v2211, 0.112945676
      %v2213 = vmul.f32 %v2195, %v2212
      %v2214 = vadd.f32 %v2213, 0.4994258
      %v2215 = vmul.f32 %v2195, %v2214
      %v2216 = vadd.f32 %v2215, 1.0
      %v2217 = vrcp.pop %v2216
      %v2218 = vmul.f32 %v2216, %v2217
      %v2219 = vsub.f32 1.0, %v2218
      %v2220 = vmul.f32 %v2217, %v2219
      %v2221 = vadd.f32 %v2217, %v2220
      %vm2222 = vweird.f32 %v2216
      %vm2223 = vweird.f32 %v2217
      %vm2224 = vmor %vm2222, %vm2223
      %v2225 = vsel %vm2224, %v2217, %v2221
      %v2226 = vand.u32 2147483647, %v2216
      %vm2227 = vcmp.eq.f32.partialorder %v2226, 8.507059e+37
      %v2228 = vand.u32 %v2216, 2147483648
      %v2229 = vor.u32 1.1754944e-38, %v2228
      %v2230 = vsel %vm2227, %v2229, %v2225
      %v2231 = vmul.f32 %v2206, %v2230
      %v2232 = vmin.f32 %v2231, 1.0
      %v2233 = vmax.f32 %v2232, -1.0
      %v2234 = vmul.f32 %v2070, %v2070
      %v2235 = vmin.f32 16.0, %v2234
      %v2236 = vmul.f32 %v2235, 2.1237322e-06
      %v2237 = vadd.f32 %v2236, 0.00028619796
      %v2238 = vmul.f32 %v2235, %v2237
      %v2239 = vadd.f32 %v2238, 0.0036580483
      %v2240 = vmul.f32 %v2235, %v2239
      %v2241 = vadd.f32 %v2240, 0.05243302
      %v2242 = vmul.f32 %v2235, %v2241
      %v2243 = vadd.f32 %v2242, 0.18741608
      %v2244 = vmul.f32 %v2235, %v2243
      %v2245 = vadd.f32 %v2244, 1.1283791
      %v2246 = vmul.f32 %v2070, %v2245
      %v2247 = vmul.f32 %v2235, 3.8918573e-05
      %v2248 = vadd.f32 %v2247, 0.001143296
      %v2249 = vmul.f32 %v2235, %v2248
      %v2250 = vadd.f32 %v2249, 0.014752088
      %v2251 = vmul.f32 %v2235, %v2250
      %v2252 = vadd.f32 %v2251, 0.112945676
      %v2253 = vmul.f32 %v2235, %v2252
      %v2254 = vadd.f32 %v2253, 0.4994258
      %v2255 = vmul.f32 %v2235, %v2254
      %v2256 = vadd.f32 %v2255, 1.0
      %v2257 = vrcp.pop %v2256
      %v2258 = vmul.f32 %v2256, %v2257
      %v2259 = vsub.f32 1.0, %v2258
      %v2260 = vmul.f32 %v2257, %v2259
      %v2261 = vadd.f32 %v2257, %v2260
      %vm2262 = vweird.f32 %v2256
      %vm2263 = vweird.f32 %v2257
      %vm2264 = vmor %vm2262, %vm2263
      %v2265 = vsel %vm2264, %v2257, %v2261
      %v2266 = vand.u32 2147483647, %v2256
      %vm2267 = vcmp.eq.f32.partialorder %v2266, 8.507059e+37
      %v2268 = vand.u32 %v2256, 2147483648
      %v2269 = vor.u32 1.1754944e-38, %v2268
      %v2270 = vsel %vm2267, %v2269, %v2265
      %v2271 = vmul.f32 %v2246, %v2270
      %v2272 = vmin.f32 %v2271, 1.0
      %v2273 = vmax.f32 %v2272, -1.0
      %v2274 = vmul.f32 %v2071, %v2071
      %v2275 = vmin.f32 16.0, %v2274
      %v2276 = vmul.f32 %v2275, 2.1237322e-06
      %v2277 = vadd.f32 %v2276, 0.00028619796
      %v2278 = vmul.f32 %v2275, %v2277
      %v2279 = vadd.f32 %v2278, 0.0036580483
      %v2280 = vmul.f32 %v2275, %v2279
      %v2281 = vadd.f32 %v2280, 0.05243302
      %v2282 = vmul.f32 %v2275, %v2281
      %v2283 = vadd.f32 %v2282, 0.18741608
      %v2284 = vmul.f32 %v2275, %v2283
      %v2285 = vadd.f32 %v2284, 1.1283791
      %v2286 = vmul.f32 %v2071, %v2285
      %v2287 = vmul.f32 %v2275, 3.8918573e-05
      %v2288 = vadd.f32 %v2287, 0.001143296
      %v2289 = vmul.f32 %v2275, %v2288
      %v2290 = vadd.f32 %v2289, 0.014752088
      %v2291 = vmul.f32 %v2275, %v2290
      %v2292 = vadd.f32 %v2291, 0.112945676
      %v2293 = vmul.f32 %v2275, %v2292
      %v2294 = vadd.f32 %v2293, 0.4994258
      %v2295 = vmul.f32 %v2275, %v2294
      %v2296 = vadd.f32 %v2295, 1.0
      %v2297 = vrcp.pop %v2296
      %v2298 = vmul.f32 %v2296, %v2297
      %v2299 = vsub.f32 1.0, %v2298
      %v2300 = vmul.f32 %v2297, %v2299
      %v2301 = vadd.f32 %v2297, %v2300
      %vm2302 = vweird.f32 %v2296
      %vm2303 = vweird.f32 %v2297
      %vm2304 = vmor %vm2302, %vm2303
      %v2305 = vsel %vm2304, %v2297, %v2301
      %v2306 = vand.u32 2147483647, %v2296
      %vm2307 = vcmp.eq.f32.partialorder %v2306, 8.507059e+37
      %v2308 = vand.u32 %v2296, 2147483648
      %v2309 = vor.u32 1.1754944e-38, %v2308
      %v2310 = vsel %vm2307, %v2309, %v2305
      %v2311 = vmul.f32 %v2286, %v2310
      %v2312 = vmin.f32 %v2311, 1.0
      %v2313 = vmax.f32 %v2312, -1.0
      %v2314 = vmul.f32 %v2072, %v2072
      %v2315 = vmin.f32 16.0, %v2314
      %v2316 = vmul.f32 %v2315, 2.1237322e-06
      %v2317 = vadd.f32 %v2316, 0.00028619796
      %v2318 = vmul.f32 %v2315, %v2317
      %v2319 = vadd.f32 %v2318, 0.0036580483
      %v2320 = vmul.f32 %v2315, %v2319
      %v2321 = vadd.f32 %v2320, 0.05243302
      %v2322 = vmul.f32 %v2315, %v2321
      %v2323 = vadd.f32 %v2322, 0.18741608
      %v2324 = vmul.f32 %v2315, %v2323
      %v2325 = vadd.f32 %v2324, 1.1283791
      %v2326 = vmul.f32 %v2072, %v2325
      %v2327 = vmul.f32 %v2315, 3.8918573e-05
      %v2328 = vadd.f32 %v2327, 0.001143296
      %v2329 = vmul.f32 %v2315, %v2328
      %v2330 = vadd.f32 %v2329, 0.014752088
      %v2331 = vmul.f32 %v2315, %v2330
      %v2332 = vadd.f32 %v2331, 0.112945676
      %v2333 = vmul.f32 %v2315, %v2332
      %v2334 = vadd.f32 %v2333, 0.4994258
      %v2335 = vmul.f32 %v2315, %v2334
      %v2336 = vadd.f32 %v2335, 1.0
      %v2337 = vrcp.pop %v2336
      %v2338 = vmul.f32 %v2336, %v2337
      %v2339 = vsub.f32 1.0, %v2338
      %v2340 = vmul.f32 %v2337, %v2339
      %v2341 = vadd.f32 %v2337, %v2340
      %vm2342 = vweird.f32 %v2336
      %vm2343 = vweird.f32 %v2337
      %vm2344 = vmor %vm2342, %vm2343
      %v2345 = vsel %vm2344, %v2337, %v2341
      %v2346 = vand.u32 2147483647, %v2336
      %vm2347 = vcmp.eq.f32.partialorder %v2346, 8.507059e+37
      %v2348 = vand.u32 %v2336, 2147483648
      %v2349 = vor.u32 1.1754944e-38, %v2348
      %v2350 = vsel %vm2347, %v2349, %v2345
      %v2351 = vmul.f32 %v2326, %v2350
      %v2352 = vmin.f32 %v2351, 1.0
      %v2353 = vmax.f32 %v2352, -1.0
      %v2354 = vmul.f32 %v2073, %v2073
      %v2355 = vmin.f32 16.0, %v2354
      %v2356 = vmul.f32 %v2355, 2.1237322e-06
      %v2357 = vadd.f32 %v2356, 0.00028619796
      %v2358 = vmul.f32 %v2355, %v2357
      %v2359 = vadd.f32 %v2358, 0.0036580483
      %v2360 = vmul.f32 %v2355, %v2359
      %v2361 = vadd.f32 %v2360, 0.05243302
      %v2362 = vmul.f32 %v2355, %v2361
      %v2363 = vadd.f32 %v2362, 0.18741608
      %v2364 = vmul.f32 %v2355, %v2363
      %v2365 = vadd.f32 %v2364, 1.1283791
      %v2366 = vmul.f32 %v2073, %v2365
      %v2367 = vmul.f32 %v2355, 3.8918573e-05
      %v2368 = vadd.f32 %v2367, 0.001143296
      %v2369 = vmul.f32 %v2355, %v2368
      %v2370 = vadd.f32 %v2369, 0.014752088
      %v2371 = vmul.f32 %v2355, %v2370
      %v2372 = vadd.f32 %v2371, 0.112945676
      %v2373 = vmul.f32 %v2355, %v2372
      %v2374 = vadd.f32 %v2373, 0.4994258
      %v2375 = vmul.f32 %v2355, %v2374
      %v2376 = vadd.f32 %v2375, 1.0
      %v2377 = vrcp.pop %v2376
      %v2378 = vmul.f32 %v2376, %v2377
      %v2379 = vsub.f32 1.0, %v2378
      %v2380 = vmul.f32 %v2377, %v2379
      %v2381 = vadd.f32 %v2377, %v2380
      %vm2382 = vweird.f32 %v2376
      %vm2383 = vweird.f32 %v2377
      %vm2384 = vmor %vm2382, %vm2383
      %v2385 = vsel %vm2384, %v2377, %v2381
      %v2386 = vand.u32 2147483647, %v2376
      %vm2387 = vcmp.eq.f32.partialorder %v2386, 8.507059e+37
      %v2388 = vand.u32 %v2376, 2147483648
      %v2389 = vor.u32 1.1754944e-38, %v2388
      %v2390 = vsel %vm2387, %v2389, %v2385
      %v2391 = vmul.f32 %v2366, %v2390
      %v2392 = vmin.f32 %v2391, 1.0
      %v2393 = vmax.f32 %v2392, -1.0
      %v2394 = vadd.f32 %v2113, 1.0
      %v2395 = vadd.f32 %v2153, 1.0
      %v2396 = vadd.f32 %v2193, 1.0
      %v2397 = vadd.f32 %v2233, 1.0
      %v2398 = vadd.f32 %v2273, 1.0
      %v2399 = vadd.f32 %v2313, 1.0
      %v2400 = vadd.f32 %v2353, 1.0
      %v2401 = vadd.f32 %v2393, 1.0
      %v2402 = vmul.f32 %v2058, %v2394
      %v2403 = vmul.f32 %v2059, %v2395
      %v2404 = vmul.f32 %v2060, %v2396
      %v2405 = vmul.f32 %v2061, %v2397
      %v2406 = vmul.f32 %v2062, %v2398
      %v2407 = vmul.f32 %v2063, %v2399
      %v2408 = vmul.f32 %v2064, %v2400
      %v2409 = vmul.f32 %v2065, %v2401
      %v2410 = vld [vmem:[%s12] sm:$0xff]
      %v2411 = vld [vmem:[%s12 + $0x8] sm:$0xff]
      %v2412 = vld [vmem:[%s12 + $0x10] sm:$0xff]
      %v2413 = vld [vmem:[%s12 + $0x18] sm:$0xff]
      %v2414 = vld [vmem:[%s12 + $0x20] sm:$0xff]
      %v2415 = vld [vmem:[%s12 + $0x28] sm:$0xff]
      %v2416 = vld [vmem:[%s12 + $0x30] sm:$0xff]
      %v2417 = vld [vmem:[%s12 + $0x38] sm:$0xff]
      %v2418 = vld [vmem:[%s12 + $0x40] sm:$0xff]
      %v2419 = vld [vmem:[%s12 + $0x48] sm:$0xff]
      %v2420 = vld [vmem:[%s12 + $0x50] sm:$0xff]
      %v2421 = vld [vmem:[%s12 + $0x58] sm:$0xff]
      %v2422 = vld [vmem:[%s12 + $0x60] sm:$0xff]
      %v2423 = vld [vmem:[%s12 + $0x68] sm:$0xff]
      %v2424 = vld [vmem:[%s12 + $0x70] sm:$0xff]
      %v2425 = vld [vmem:[%s12 + $0x78] sm:$0xff]
      %v2426 = vld [vmem:[%s12 + $0x80] sm:$0xff]
      %v2427 = vld [vmem:[%s12 + $0x88] sm:$0xff]
      %v2428 = vld [vmem:[%s12 + $0x90] sm:$0xff]
      %v2429 = vld [vmem:[%s12 + $0x98] sm:$0xff]
      %v2430 = vld [vmem:[%s12 + $0xa0] sm:$0xff]
      %v2431 = vld [vmem:[%s12 + $0xa8] sm:$0xff]
      %v2432 = vld [vmem:[%s12 + $0xb0] sm:$0xff]
      %v2433 = vld [vmem:[%s12 + $0xb8] sm:$0xff]
      %v2434 = vld [vmem:[%s12 + $0xc0] sm:$0xff]
      %v2435 = vld [vmem:[%s12 + $0xc8] sm:$0xff]
      %v2436 = vld [vmem:[%s12 + $0xd0] sm:$0xff]
      %v2437 = vld [vmem:[%s12 + $0xd8] sm:$0xff]
      %v2438 = vld [vmem:[%s12 + $0xe0] sm:$0xff]
      %v2439 = vld [vmem:[%s12 + $0xe8] sm:$0xff]
      %v2440 = vld [vmem:[%s12 + $0xf0] sm:$0xff]
      %v2441 = vld [vmem:[%s12 + $0xf8] sm:$0xff]
      %v2442 = vld [vmem:[%s12 + $0x100] sm:$0xff]
      %v2443 = vld [vmem:[%s12 + $0x108] sm:$0xff]
      %v2444 = vld [vmem:[%s12 + $0x110] sm:$0xff]
      %v2445 = vld [vmem:[%s12 + $0x118] sm:$0xff]
      %v2446 = vld [vmem:[%s12 + $0x120] sm:$0xff]
      %v2447 = vld [vmem:[%s12 + $0x128] sm:$0xff]
      %v2448 = vld [vmem:[%s12 + $0x130] sm:$0xff]
      %v2449 = vld [vmem:[%s12 + $0x138] sm:$0xff]
      %v2451 = vsel %vm960, %v2410, 0
      %v2454 = vsel %vm960, %v2411, 0
      %v2457 = vsel %vm960, %v2412, 0
      %v2460 = vsel %vm960, %v2413, 0
      %v2463 = vsel %vm960, %v2414, 0
      %v2466 = vsel %vm960, %v2415, 0
      %v2469 = vsel %vm960, %v2416, 0
      %v2472 = vsel %vm960, %v2417, 0
      %v2475 = vsel %vm960, %v2418, 0
      %v2478 = vsel %vm960, %v2419, 0
      %v2481 = vsel %vm960, %v2420, 0
      %v2484 = vsel %vm960, %v2421, 0
      %v2487 = vsel %vm960, %v2422, 0
      %v2490 = vsel %vm960, %v2423, 0
      %v2493 = vsel %vm960, %v2424, 0
      %v2496 = vsel %vm960, %v2425, 0
      %v2499 = vsel %vm960, %v2426, 0
      %v2502 = vsel %vm960, %v2427, 0
      %v2505 = vsel %vm960, %v2428, 0
      %v2508 = vsel %vm960, %v2429, 0
      %v2511 = vsel %vm960, %v2430, 0
      %v2514 = vsel %vm960, %v2431, 0
      %v2517 = vsel %vm960, %v2432, 0
      %v2520 = vsel %vm960, %v2433, 0
      %v2523 = vsel %vm960, %v2434, 0
      %v2526 = vsel %vm960, %v2435, 0
      %v2529 = vsel %vm960, %v2436, 0
      %v2532 = vsel %vm960, %v2437, 0
      %v2535 = vsel %vm960, %v2438, 0
      %v2538 = vsel %vm960, %v2439, 0
      %v2541 = vsel %vm960, %v2440, 0
      %v2544 = vsel %vm960, %v2441, 0
      %v2547 = vsel %vm960, %v2442, 0
      %v2550 = vsel %vm960, %v2443, 0
      %v2553 = vsel %vm960, %v2444, 0
      %v2556 = vsel %vm960, %v2445, 0
      %v2559 = vsel %vm960, %v2446, 0
      %v2562 = vsel %vm960, %v2447, 0
      %v2565 = vsel %vm960, %v2448, 0
      %v2568 = vsel %vm960, %v2449, 0
      %2570 = vmatpush.msra.mxu0 0.0
      %2571 = vmatpush.msra.mxu0 0.0
      %2572 = vmatpush.msra.mxu0 0.0
      %2573 = vmatpush.msra.mxu0 0.0
      %2574 = vmatpush.msra.mxu0 0.0
      %2575 = vmatpush.msra.mxu0 0.0
      %2576 = vmatpush.msra.mxu0 0.0
      %2577 = vmatpush.msra.mxu0 0.0
      %2578 = vmatpush.msra.mxu0 %v2409
      %2579 = vmatpush.msra.mxu0 %v2408
      %2580 = vmatpush.msra.mxu0 %v2407
      %2581 = vmatpush.msra.mxu0 %v2406
      %2582 = vmatpush.msra.mxu0 %v2405
      %2583 = vmatpush.msra.mxu0 %v2404
      %2584 = vmatpush.msra.mxu0 %v2403
      %2585 = vmatpush.msra.mxu0 %v2402
      %2586 = vmatmul.f32.gmra.mxu0 %v2451
      %v2587 = vpop.f32.mrf.mxu0
      %v2588 = vadd.f32 0.0, %v2587
      %2589 = vmatmul.f32.gmra.mxu0 %v2454
      %v2590 = vpop.f32.mrf.mxu0
      %v2591 = vadd.f32 0.0, %v2590
      %2592 = vmatmul.f32.gmra.mxu0 %v2457
      %v2593 = vpop.f32.mrf.mxu0
      %v2594 = vadd.f32 0.0, %v2593
      %2595 = vmatmul.f32.gmra.mxu0 %v2460
      %v2596 = vpop.f32.mrf.mxu0
      %v2597 = vadd.f32 0.0, %v2596
      %2598 = vmatmul.f32.gmra.mxu0 %v2463
      %v2599 = vpop.f32.mrf.mxu0
      %v2600 = vadd.f32 0.0, %v2599
      %2601 = vmatmul.f32.gmra.mxu0 %v2466
      %v2602 = vpop.f32.mrf.mxu0
      %v2603 = vadd.f32 0.0, %v2602
      %2604 = vmatmul.f32.gmra.mxu0 %v2469
      %v2605 = vpop.f32.mrf.mxu0
      %v2606 = vadd.f32 0.0, %v2605
      %2607 = vmatmul.f32.gmra.mxu0 %v2472
      %v2608 = vpop.f32.mrf.mxu0
      %v2609 = vadd.f32 0.0, %v2608
      %2610 = vmatmul.f32.gmra.mxu0 %v2475
      %v2611 = vpop.f32.mrf.mxu0
      %v2612 = vadd.f32 0.0, %v2611
      %2613 = vmatmul.f32.gmra.mxu0 %v2478
      %v2614 = vpop.f32.mrf.mxu0
      %v2615 = vadd.f32 0.0, %v2614
      %2616 = vmatmul.f32.gmra.mxu0 %v2481
      %v2617 = vpop.f32.mrf.mxu0
      %v2618 = vadd.f32 0.0, %v2617
      %2619 = vmatmul.f32.gmra.mxu0 %v2484
      %v2620 = vpop.f32.mrf.mxu0
      %v2621 = vadd.f32 0.0, %v2620
      %2622 = vmatmul.f32.gmra.mxu0 %v2487
      %v2623 = vpop.f32.mrf.mxu0
      %v2624 = vadd.f32 0.0, %v2623
      %2625 = vmatmul.f32.gmra.mxu0 %v2490
      %v2626 = vpop.f32.mrf.mxu0
      %v2627 = vadd.f32 0.0, %v2626
      %2628 = vmatmul.f32.gmra.mxu0 %v2493
      %v2629 = vpop.f32.mrf.mxu0
      %v2630 = vadd.f32 0.0, %v2629
      %2631 = vmatmul.f32.gmra.mxu0 %v2496
      %v2632 = vpop.f32.mrf.mxu0
      %v2633 = vadd.f32 0.0, %v2632
      %2634 = vmatmul.f32.gmra.mxu0 %v2499
      %v2635 = vpop.f32.mrf.mxu0
      %v2636 = vadd.f32 0.0, %v2635
      %2637 = vmatmul.f32.gmra.mxu0 %v2502
      %v2638 = vpop.f32.mrf.mxu0
      %v2639 = vadd.f32 0.0, %v2638
      %2640 = vmatmul.f32.gmra.mxu0 %v2505
      %v2641 = vpop.f32.mrf.mxu0
      %v2642 = vadd.f32 0.0, %v2641
      %2643 = vmatmul.f32.gmra.mxu0 %v2508
      %v2644 = vpop.f32.mrf.mxu0
      %v2645 = vadd.f32 0.0, %v2644
      %2646 = vmatmul.f32.gmra.mxu0 %v2511
      %v2647 = vpop.f32.mrf.mxu0
      %v2648 = vadd.f32 0.0, %v2647
      %2649 = vmatmul.f32.gmra.mxu0 %v2514
      %v2650 = vpop.f32.mrf.mxu0
      %v2651 = vadd.f32 0.0, %v2650
      %2652 = vmatmul.f32.gmra.mxu0 %v2517
      %v2653 = vpop.f32.mrf.mxu0
      %v2654 = vadd.f32 0.0, %v2653
      %2655 = vmatmul.f32.gmra.mxu0 %v2520
      %v2656 = vpop.f32.mrf.mxu0
      %v2657 = vadd.f32 0.0, %v2656
      %2658 = vmatmul.f32.gmra.mxu0 %v2523
      %v2659 = vpop.f32.mrf.mxu0
      %v2660 = vadd.f32 0.0, %v2659
      %2661 = vmatmul.f32.gmra.mxu0 %v2526
      %v2662 = vpop.f32.mrf.mxu0
      %v2663 = vadd.f32 0.0, %v2662
      %2664 = vmatmul.f32.gmra.mxu0 %v2529
      %v2665 = vpop.f32.mrf.mxu0
      %v2666 = vadd.f32 0.0, %v2665
      %2667 = vmatmul.f32.gmra.mxu0 %v2532
      %v2668 = vpop.f32.mrf.mxu0
      %v2669 = vadd.f32 0.0, %v2668
      %2670 = vmatmul.f32.gmra.mxu0 %v2535
      %v2671 = vpop.f32.mrf.mxu0
      %v2672 = vadd.f32 0.0, %v2671
      %2673 = vmatmul.f32.gmra.mxu0 %v2538
      %v2674 = vpop.f32.mrf.mxu0
      %v2675 = vadd.f32 0.0, %v2674
      %2676 = vmatmul.f32.gmra.mxu0 %v2541
      %v2677 = vpop.f32.mrf.mxu0
      %v2678 = vadd.f32 0.0, %v2677
      %2679 = vmatmul.f32.gmra.mxu0 %v2544
      %v2680 = vpop.f32.mrf.mxu0
      %v2681 = vadd.f32 0.0, %v2680
      %2682 = vmatmul.f32.gmra.mxu0 %v2547
      %v2683 = vpop.f32.mrf.mxu0
      %v2684 = vadd.f32 0.0, %v2683
      %2685 = vmatmul.f32.gmra.mxu0 %v2550
      %v2686 = vpop.f32.mrf.mxu0
      %v2687 = vadd.f32 0.0, %v2686
      %2688 = vmatmul.f32.gmra.mxu0 %v2553
      %v2689 = vpop.f32.mrf.mxu0
      %v2690 = vadd.f32 0.0, %v2689
      %2691 = vmatmul.f32.gmra.mxu0 %v2556
      %v2692 = vpop.f32.mrf.mxu0
      %v2693 = vadd.f32 0.0, %v2692
      %2694 = vmatmul.f32.gmra.mxu0 %v2559
      %v2695 = vpop.f32.mrf.mxu0
      %v2696 = vadd.f32 0.0, %v2695
      %2697 = vmatmul.f32.gmra.mxu0 %v2562
      %v2698 = vpop.f32.mrf.mxu0
      %v2699 = vadd.f32 0.0, %v2698
      %2700 = vmatmul.f32.gmra.mxu0 %v2565
      %v2701 = vpop.f32.mrf.mxu0
      %v2702 = vadd.f32 0.0, %v2701
      %2703 = vmatmul.f32.gmra.mxu0 %v2568
      %v2704 = vpop.f32.mrf.mxu0
      %v2705 = vadd.f32 0.0, %v2704
      %2706 = vdwg.mxu0
      %v2707 = vld [vmem:[%s13] sm:$0xff]
      %v2708 = vld [vmem:[%s13 + $0x8] sm:$0xff]
      %v2709 = vld [vmem:[%s13 + $0x10] sm:$0xff]
      %v2710 = vld [vmem:[%s13 + $0x18] sm:$0x1]
      %v2711 = vperm.slane %v2707, 0
      %v2712 = vmul.f32 %v2588, %v2711
      %v2713 = vmul.f32 %v2591, %v2711
      %v2714 = vmul.f32 %v2594, %v2711
      %v2715 = vmul.f32 %v2597, %v2711
      %v2716 = vmul.f32 %v2600, %v2711
      %v2717 = vmul.f32 %v2603, %v2711
      %v2718 = vadd.f32 %v2712, 0.0
      %v2719 = vadd.f32 %v2713, 0.0
      %v2720 = vadd.f32 %v2714, 0.0
      %v2721 = vadd.f32 %v2715, 0.0
      %v2722 = vadd.f32 %v2716, 0.0
      %v2723 = vadd.f32 %v2717, 0.0
      %v2724 = vperm.slane %v2707, 1
      %v2725 = vmul.f32 %v2612, %v2724
      %v2726 = vmul.f32 %v2615, %v2724
      %v2727 = vmul.f32 %v2618, %v2724
      %v2728 = vmul.f32 %v2621, %v2724
      %v2729 = vmul.f32 %v2624, %v2724
      %v2730 = vmul.f32 %v2627, %v2724
      %v2731 = vadd.f32 %v2718, %v2725
      %v2732 = vadd.f32 %v2719, %v2726
      %v2733 = vadd.f32 %v2720, %v2727
      %v2734 = vadd.f32 %v2721, %v2728
      %v2735 = vadd.f32 %v2722, %v2729
      %v2736 = vadd.f32 %v2723, %v2730
      %v2737 = vperm.slane %v2707, 2
      %v2738 = vmul.f32 %v2636, %v2737
      %v2739 = vmul.f32 %v2639, %v2737
      %v2740 = vmul.f32 %v2642, %v2737
      %v2741 = vmul.f32 %v2645, %v2737
      %v2742 = vmul.f32 %v2648, %v2737
      %v2743 = vmul.f32 %v2651, %v2737
      %v2744 = vadd.f32 %v2731, %v2738
      %v2745 = vadd.f32 %v2732, %v2739
      %v2746 = vadd.f32 %v2733, %v2740
      %v2747 = vadd.f32 %v2734, %v2741
      %v2748 = vadd.f32 %v2735, %v2742
      %v2749 = vadd.f32 %v2736, %v2743
      %v2750 = vperm.slane %v2707, 3
      %v2751 = vmul.f32 %v2660, %v2750
      %v2752 = vmul.f32 %v2663, %v2750
      %v2753 = vmul.f32 %v2666, %v2750
      %v2754 = vmul.f32 %v2669, %v2750
      %v2755 = vmul.f32 %v2672, %v2750
      %v2756 = vmul.f32 %v2675, %v2750
      %v2757 = vadd.f32 %v2744, %v2751
      %v2758 = vadd.f32 %v2745, %v2752
      %v2759 = vadd.f32 %v2746, %v2753
      %v2760 = vadd.f32 %v2747, %v2754
      %v2761 = vadd.f32 %v2748, %v2755
      %v2762 = vadd.f32 %v2749, %v2756
      %v2763 = vperm.slane %v2707, 4
      %v2764 = vmul.f32 %v2684, %v2763
      %v2765 = vmul.f32 %v2687, %v2763
      %v2766 = vmul.f32 %v2690, %v2763
      %v2767 = vmul.f32 %v2693, %v2763
      %v2768 = vmul.f32 %v2696, %v2763
      %v2769 = vmul.f32 %v2699, %v2763
      %v2770 = vadd.f32 %v2757, %v2764
      %v2771 = vadd.f32 %v2758, %v2765
      %v2772 = vadd.f32 %v2759, %v2766
      %v2773 = vadd.f32 %v2760, %v2767
      %v2774 = vadd.f32 %v2761, %v2768
      %v2775 = vadd.f32 %v2762, %v2769
      %v2776 = vadd.f32 %v2770, 0.0
      %v2777 = vadd.f32 %v2771, 0.0
      %v2778 = vadd.f32 %v2772, 0.0
      %v2779 = vadd.f32 %v2773, 0.0
      %v2780 = vadd.f32 %v2774, 0.0
      %v2781 = vadd.f32 %v2775, 0.0
      %v2782 = vperm.slane %v2707, 5
      %v2783 = vmul.f32 %v2588, %v2782
      %v2784 = vmul.f32 %v2591, %v2782
      %v2785 = vmul.f32 %v2594, %v2782
      %v2786 = vmul.f32 %v2597, %v2782
      %v2787 = vmul.f32 %v2600, %v2782
      %v2788 = vmul.f32 %v2603, %v2782
      %v2789 = vmul.f32 %v2606, %v2782
      %v2790 = vadd.f32 %v2783, 0.0
      %v2791 = vadd.f32 %v2784, 0.0
      %v2792 = vadd.f32 %v2785, 0.0
      %v2793 = vadd.f32 %v2786, 0.0
      %v2794 = vadd.f32 %v2787, 0.0
      %v2795 = vadd.f32 %v2788, 0.0
      %v2796 = vadd.f32 %v2789, 0.0
      %v2797 = vperm.slane %v2707, 6
      %v2798 = vmul.f32 %v2612, %v2797
      %v2799 = vmul.f32 %v2615, %v2797
      %v2800 = vmul.f32 %v2618, %v2797
      %v2801 = vmul.f32 %v2621, %v2797
      %v2802 = vmul.f32 %v2624, %v2797
      %v2803 = vmul.f32 %v2627, %v2797
      %v2804 = vmul.f32 %v2630, %v2797
      %v2805 = vadd.f32 %v2790, %v2798
      %v2806 = vadd.f32 %v2791, %v2799
      %v2807 = vadd.f32 %v2792, %v2800
      %v2808 = vadd.f32 %v2793, %v2801
      %v2809 = vadd.f32 %v2794, %v2802
      %v2810 = vadd.f32 %v2795, %v2803
      %v2811 = vadd.f32 %v2796, %v2804
      %v2812 = vperm.slane %v2707, 7
      %v2813 = vmul.f32 %v2636, %v2812
      %v2814 = vmul.f32 %v2639, %v2812
      %v2815 = vmul.f32 %v2642, %v2812
      %v2816 = vmul.f32 %v2645, %v2812
      %v2817 = vmul.f32 %v2648, %v2812
      %v2818 = vmul.f32 %v2651, %v2812
      %v2819 = vmul.f32 %v2654, %v2812
      %v2820 = vadd.f32 %v2805, %v2813
      %v2821 = vadd.f32 %v2806, %v2814
      %v2822 = vadd.f32 %v2807, %v2815
      %v2823 = vadd.f32 %v2808, %v2816
      %v2824 = vadd.f32 %v2809, %v2817
      %v2825 = vadd.f32 %v2810, %v2818
      %v2826 = vadd.f32 %v2811, %v2819
      %v2827 = vperm.slane %v2708, 0
      %v2828 = vmul.f32 %v2660, %v2827
      %v2829 = vmul.f32 %v2663, %v2827
      %v2830 = vmul.f32 %v2666, %v2827
      %v2831 = vmul.f32 %v2669, %v2827
      %v2832 = vmul.f32 %v2672, %v2827
      %v2833 = vmul.f32 %v2675, %v2827
      %v2834 = vmul.f32 %v2678, %v2827
      %v2835 = vadd.f32 %v2820, %v2828
      %v2836 = vadd.f32 %v2821, %v2829
      %v2837 = vadd.f32 %v2822, %v2830
      %v2838 = vadd.f32 %v2823, %v2831
      %v2839 = vadd.f32 %v2824, %v2832
      %v2840 = vadd.f32 %v2825, %v2833
      %v2841 = vadd.f32 %v2826, %v2834
      %v2842 = vperm.slane %v2708, 1
      %v2843 = vmul.f32 %v2684, %v2842
      %v2844 = vmul.f32 %v2687, %v2842
      %v2845 = vmul.f32 %v2690, %v2842
      %v2846 = vmul.f32 %v2693, %v2842
      %v2847 = vmul.f32 %v2696, %v2842
      %v2848 = vmul.f32 %v2699, %v2842
      %v2849 = vmul.f32 %v2702, %v2842
      %v2850 = vadd.f32 %v2835, %v2843
      %v2851 = vadd.f32 %v2836, %v2844
      %v2852 = vadd.f32 %v2837, %v2845
      %v2853 = vadd.f32 %v2838, %v2846
      %v2854 = vadd.f32 %v2839, %v2847
      %v2855 = vadd.f32 %v2840, %v2848
      %v2856 = vadd.f32 %v2841, %v2849
      %v2857 = vadd.f32 %v2850, 0.0
      %v2858 = vadd.f32 %v2776, %v2851
      %v2859 = vadd.f32 %v2777, %v2852
      %v2860 = vadd.f32 %v2778, %v2853
      %v2861 = vadd.f32 %v2779, %v2854
      %v2862 = vadd.f32 %v2780, %v2855
      %v2863 = vadd.f32 %v2781, %v2856
      %v2864 = vperm.slane %v2708, 2
      %v2865 = vmul.f32 %v2588, %v2864
      %v2866 = vmul.f32 %v2591, %v2864
      %v2867 = vmul.f32 %v2594, %v2864
      %v2868 = vmul.f32 %v2597, %v2864
      %v2869 = vmul.f32 %v2600, %v2864
      %v2870 = vmul.f32 %v2603, %v2864
      %v2871 = vmul.f32 %v2606, %v2864
      %v2872 = vmul.f32 %v2609, %v2864
      %v2873 = vadd.f32 %v2865, 0.0
      %v2874 = vadd.f32 %v2866, 0.0
      %v2875 = vadd.f32 %v2867, 0.0
      %v2876 = vadd.f32 %v2868, 0.0
      %v2877 = vadd.f32 %v2869, 0.0
      %v2878 = vadd.f32 %v2870, 0.0
      %v2879 = vadd.f32 %v2871, 0.0
      %v2880 = vadd.f32 %v2872, 0.0
      %v2881 = vperm.slane %v2708, 3
      %v2882 = vmul.f32 %v2612, %v2881
      %v2883 = vmul.f32 %v2615, %v2881
      %v2884 = vmul.f32 %v2618, %v2881
      %v2885 = vmul.f32 %v2621, %v2881
      %v2886 = vmul.f32 %v2624, %v2881
      %v2887 = vmul.f32 %v2627, %v2881
      %v2888 = vmul.f32 %v2630, %v2881
      %v2889 = vmul.f32 %v2633, %v2881
      %v2890 = vadd.f32 %v2873, %v2882
      %v2891 = vadd.f32 %v2874, %v2883
      %v2892 = vadd.f32 %v2875, %v2884
      %v2893 = vadd.f32 %v2876, %v2885
      %v2894 = vadd.f32 %v2877, %v2886
      %v2895 = vadd.f32 %v2878, %v2887
      %v2896 = vadd.f32 %v2879, %v2888
      %v2897 = vadd.f32 %v2880, %v2889
      %v2898 = vperm.slane %v2708, 4
      %v2899 = vmul.f32 %v2636, %v2898
      %v2900 = vmul.f32 %v2639, %v2898
      %v2901 = vmul.f32 %v2642, %v2898
      %v2902 = vmul.f32 %v2645, %v2898
      %v2903 = vmul.f32 %v2648, %v2898
      %v2904 = vmul.f32 %v2651, %v2898
      %v2905 = vmul.f32 %v2654, %v2898
      %v2906 = vmul.f32 %v2657, %v2898
      %v2907 = vadd.f32 %v2890, %v2899
      %v2908 = vadd.f32 %v2891, %v2900
      %v2909 = vadd.f32 %v2892, %v2901
      %v2910 = vadd.f32 %v2893, %v2902
      %v2911 = vadd.f32 %v2894, %v2903
      %v2912 = vadd.f32 %v2895, %v2904
      %v2913 = vadd.f32 %v2896, %v2905
      %v2914 = vadd.f32 %v2897, %v2906
      %v2915 = vperm.slane %v2708, 5
      %v2916 = vmul.f32 %v2660, %v2915
      %v2917 = vmul.f32 %v2663, %v2915
      %v2918 = vmul.f32 %v2666, %v2915
      %v2919 = vmul.f32 %v2669, %v2915
      %v2920 = vmul.f32 %v2672, %v2915
      %v2921 = vmul.f32 %v2675, %v2915
      %v2922 = vmul.f32 %v2678, %v2915
      %v2923 = vmul.f32 %v2681, %v2915
      %v2924 = vadd.f32 %v2907, %v2916
      %v2925 = vadd.f32 %v2908, %v2917
      %v2926 = vadd.f32 %v2909, %v2918
      %v2927 = vadd.f32 %v2910, %v2919
      %v2928 = vadd.f32 %v2911, %v2920
      %v2929 = vadd.f32 %v2912, %v2921
      %v2930 = vadd.f32 %v2913, %v2922
      %v2931 = vadd.f32 %v2914, %v2923
      %v2932 = vperm.slane %v2708, 6
      %v2933 = vmul.f32 %v2684, %v2932
      %v2934 = vmul.f32 %v2687, %v2932
      %v2935 = vmul.f32 %v2690, %v2932
      %v2936 = vmul.f32 %v2693, %v2932
      %v2937 = vmul.f32 %v2696, %v2932
      %v2938 = vmul.f32 %v2699, %v2932
      %v2939 = vmul.f32 %v2702, %v2932
      %v2940 = vmul.f32 %v2705, %v2932
      %v2941 = vadd.f32 %v2924, %v2933
      %v2942 = vadd.f32 %v2925, %v2934
      %v2943 = vadd.f32 %v2926, %v2935
      %v2944 = vadd.f32 %v2927, %v2936
      %v2945 = vadd.f32 %v2928, %v2937
      %v2946 = vadd.f32 %v2929, %v2938
      %v2947 = vadd.f32 %v2930, %v2939
      %v2948 = vadd.f32 %v2931, %v2940
      %v2949 = vadd.f32 %v2941, 0.0
      %v2950 = vadd.f32 %v2857, %v2942
      %v2951 = vadd.f32 %v2858, %v2943
      %v2952 = vadd.f32 %v2859, %v2944
      %v2953 = vadd.f32 %v2860, %v2945
      %v2954 = vadd.f32 %v2861, %v2946
      %v2955 = vadd.f32 %v2862, %v2947
      %v2956 = vadd.f32 %v2863, %v2948
      %v2957 = vperm.slane %v2708, 7
      %v2958 = vmul.f32 %v2591, %v2957
      %v2959 = vmul.f32 %v2594, %v2957
      %v2960 = vmul.f32 %v2597, %v2957
      %v2961 = vmul.f32 %v2600, %v2957
      %v2962 = vmul.f32 %v2603, %v2957
      %v2963 = vmul.f32 %v2606, %v2957
      %v2964 = vmul.f32 %v2609, %v2957
      %v2965 = vadd.f32 %v2958, 0.0
      %v2966 = vadd.f32 %v2959, 0.0
      %v2967 = vadd.f32 %v2960, 0.0
      %v2968 = vadd.f32 %v2961, 0.0
      %v2969 = vadd.f32 %v2962, 0.0
      %v2970 = vadd.f32 %v2963, 0.0
      %v2971 = vadd.f32 %v2964, 0.0
      %v2972 = vperm.slane %v2709, 0
      %v2973 = vmul.f32 %v2615, %v2972
      %v2974 = vmul.f32 %v2618, %v2972
      %v2975 = vmul.f32 %v2621, %v2972
      %v2976 = vmul.f32 %v2624, %v2972
      %v2977 = vmul.f32 %v2627, %v2972
      %v2978 = vmul.f32 %v2630, %v2972
      %v2979 = vmul.f32 %v2633, %v2972
      %v2980 = vadd.f32 %v2965, %v2973
      %v2981 = vadd.f32 %v2966, %v2974
      %v2982 = vadd.f32 %v2967, %v2975
      %v2983 = vadd.f32 %v2968, %v2976
      %v2984 = vadd.f32 %v2969, %v2977
      %v2985 = vadd.f32 %v2970, %v2978
      %v2986 = vadd.f32 %v2971, %v2979
      %v2987 = vperm.slane %v2709, 1
      %v2988 = vmul.f32 %v2639, %v2987
      %v2989 = vmul.f32 %v2642, %v2987
      %v2990 = vmul.f32 %v2645, %v2987
      %v2991 = vmul.f32 %v2648, %v2987
      %v2992 = vmul.f32 %v2651, %v2987
      %v2993 = vmul.f32 %v2654, %v2987
      %v2994 = vmul.f32 %v2657, %v2987
      %v2995 = vadd.f32 %v2980, %v2988
      %v2996 = vadd.f32 %v2981, %v2989
      %v2997 = vadd.f32 %v2982, %v2990
      %v2998 = vadd.f32 %v2983, %v2991
      %v2999 = vadd.f32 %v2984, %v2992
      %v3000 = vadd.f32 %v2985, %v2993
      %v3001 = vadd.f32 %v2986, %v2994
      %v3002 = vperm.slane %v2709, 2
      %v3003 = vmul.f32 %v2663, %v3002
      %v3004 = vmul.f32 %v2666, %v3002
      %v3005 = vmul.f32 %v2669, %v3002
      %v3006 = vmul.f32 %v2672, %v3002
      %v3007 = vmul.f32 %v2675, %v3002
      %v3008 = vmul.f32 %v2678, %v3002
      %v3009 = vmul.f32 %v2681, %v3002
      %v3010 = vadd.f32 %v2995, %v3003
      %v3011 = vadd.f32 %v2996, %v3004
      %v3012 = vadd.f32 %v2997, %v3005
      %v3013 = vadd.f32 %v2998, %v3006
      %v3014 = vadd.f32 %v2999, %v3007
      %v3015 = vadd.f32 %v3000, %v3008
      %v3016 = vadd.f32 %v3001, %v3009
      %v3017 = vperm.slane %v2709, 3
      %v3018 = vmul.f32 %v2687, %v3017
      %v3019 = vmul.f32 %v2690, %v3017
      %v3020 = vmul.f32 %v2693, %v3017
      %v3021 = vmul.f32 %v2696, %v3017
      %v3022 = vmul.f32 %v2699, %v3017
      %v3023 = vmul.f32 %v2702, %v3017
      %v3024 = vmul.f32 %v2705, %v3017
      %v3025 = vadd.f32 %v3010, %v3018
      %v3026 = vadd.f32 %v3011, %v3019
      %v3027 = vadd.f32 %v3012, %v3020
      %v3028 = vadd.f32 %v3013, %v3021
      %v3029 = vadd.f32 %v3014, %v3022
      %v3030 = vadd.f32 %v3015, %v3023
      %v3031 = vadd.f32 %v3016, %v3024
      %v3032 = vadd.f32 %v2949, %v3025
      %v3033 = vadd.f32 %v2950, %v3026
      %v3034 = vadd.f32 %v2951, %v3027
      %v3035 = vadd.f32 %v2952, %v3028
      %v3036 = vadd.f32 %v2953, %v3029
      %v3037 = vadd.f32 %v2954, %v3030
      %v3038 = vadd.f32 %v2955, %v3031
      %v3039 = vadd.f32 %v2956, 0.0
      %v3040 = vperm.slane %v2709, 4
      %v3041 = vmul.f32 %v2594, %v3040
      %v3042 = vmul.f32 %v2597, %v3040
      %v3043 = vmul.f32 %v2600, %v3040
      %v3044 = vmul.f32 %v2603, %v3040
      %v3045 = vmul.f32 %v2606, %v3040
      %v3046 = vmul.f32 %v2609, %v3040
      %v3047 = vadd.f32 %v3041, 0.0
      %v3048 = vadd.f32 %v3042, 0.0
      %v3049 = vadd.f32 %v3043, 0.0
      %v3050 = vadd.f32 %v3044, 0.0
      %v3051 = vadd.f32 %v3045, 0.0
      %v3052 = vadd.f32 %v3046, 0.0
      %v3053 = vperm.slane %v2709, 5
      %v3054 = vmul.f32 %v2618, %v3053
      %v3055 = vmul.f32 %v2621, %v3053
      %v3056 = vmul.f32 %v2624, %v3053
      %v3057 = vmul.f32 %v2627, %v3053
      %v3058 = vmul.f32 %v2630, %v3053
      %v3059 = vmul.f32 %v2633, %v3053
      %v3060 = vadd.f32 %v3047, %v3054
      %v3061 = vadd.f32 %v3048, %v3055
      %v3062 = vadd.f32 %v3049, %v3056
      %v3063 = vadd.f32 %v3050, %v3057
      %v3064 = vadd.f32 %v3051, %v3058
      %v3065 = vadd.f32 %v3052, %v3059
      %v3066 = vperm.slane %v2709, 6
      %v3067 = vmul.f32 %v2642, %v3066
      %v3068 = vmul.f32 %v2645, %v3066
      %v3069 = vmul.f32 %v2648, %v3066
      %v3070 = vmul.f32 %v2651, %v3066
      %v3071 = vmul.f32 %v2654, %v3066
      %v3072 = vmul.f32 %v2657, %v3066
      %v3073 = vadd.f32 %v3060, %v3067
      %v3074 = vadd.f32 %v3061, %v3068
      %v3075 = vadd.f32 %v3062, %v3069
      %v3076 = vadd.f32 %v3063, %v3070
      %v3077 = vadd.f32 %v3064, %v3071
      %v3078 = vadd.f32 %v3065, %v3072
      %v3079 = vperm.slane %v2709, 7
      %v3080 = vmul.f32 %v2666, %v3079
      %v3081 = vmul.f32 %v2669, %v3079
      %v3082 = vmul.f32 %v2672, %v3079
      %v3083 = vmul.f32 %v2675, %v3079
      %v3084 = vmul.f32 %v2678, %v3079
      %v3085 = vmul.f32 %v2681, %v3079
      %v3086 = vadd.f32 %v3073, %v3080
      %v3087 = vadd.f32 %v3074, %v3081
      %v3088 = vadd.f32 %v3075, %v3082
      %v3089 = vadd.f32 %v3076, %v3083
      %v3090 = vadd.f32 %v3077, %v3084
      %v3091 = vadd.f32 %v3078, %v3085
      %v3092 = vperm.slane %v2710, 0
      %v3093 = vmul.f32 %v2690, %v3092
      %v3094 = vmul.f32 %v2693, %v3092
      %v3095 = vmul.f32 %v2696, %v3092
      %v3096 = vmul.f32 %v2699, %v3092
      %v3097 = vmul.f32 %v2702, %v3092
      %v3098 = vmul.f32 %v2705, %v3092
      %v3099 = vadd.f32 %v3086, %v3093
      %v3100 = vadd.f32 %v3087, %v3094
      %v3101 = vadd.f32 %v3088, %v3095
      %v3102 = vadd.f32 %v3089, %v3096
      %v3103 = vadd.f32 %v3090, %v3097
      %v3104 = vadd.f32 %v3091, %v3098
      %v3105 = vadd.f32 %v3032, %v3099
      %v3106 = vadd.f32 %v3033, %v3100
      %v3107 = vadd.f32 %v3034, %v3101
      %v3108 = vadd.f32 %v3035, %v3102
      %v3109 = vadd.f32 %v3036, %v3103
      %v3110 = vadd.f32 %v3037, %v3104
      %v3111 = vadd.f32 %v3038, 0.0
      %v3112 = vadd.f32 %v3039, 0.0
      %v3113 = vld [vmem:[%s14] sm:$0x1]
      %v3115 = vperm.slane %v3113, 0
      %v3117 = vadd.f32 %v3105, %v3115
      %v3118 = vadd.f32 %v3106, %v3115
      %v3119 = vadd.f32 %v3107, %v3115
      %v3120 = vadd.f32 %v3108, %v3115
      %v3121 = vadd.f32 %v3109, %v3115
      %v3122 = vadd.f32 %v3110, %v3115
      %v3123 = vadd.f32 %v3111, %v3115
      %v3124 = vadd.f32 %v3112, %v3115
      %v3125 = vmul.f32 %v3117, 0.5
      %v3126 = vmul.f32 %v3118, 0.5
      %v3127 = vmul.f32 %v3119, 0.5
      %v3128 = vmul.f32 %v3120, 0.5
      %v3129 = vmul.f32 %v3121, 0.5
      %v3130 = vmul.f32 %v3122, 0.5
      %v3131 = vmul.f32 %v3123, 0.5
      %v3132 = vmul.f32 %v3124, 0.5
      %v3133 = vmul.f32 %v3117, 0.70710677
      %v3134 = vmul.f32 %v3118, 0.70710677
      %v3135 = vmul.f32 %v3119, 0.70710677
      %v3136 = vmul.f32 %v3120, 0.70710677
      %v3137 = vmul.f32 %v3121, 0.70710677
      %v3138 = vmul.f32 %v3122, 0.70710677
      %v3139 = vmul.f32 %v3123, 0.70710677
      %v3140 = vmul.f32 %v3124, 0.70710677
      %v3141 = vmul.f32 %v3133, %v3133
      %v3142 = vmin.f32 16.0, %v3141
      %v3143 = vmul.f32 %v3142, 2.1237322e-06
      %v3144 = vadd.f32 %v3143, 0.00028619796
      %v3145 = vmul.f32 %v3142, %v3144
      %v3146 = vadd.f32 %v3145, 0.0036580483
      %v3147 = vmul.f32 %v3142, %v3146
      %v3148 = vadd.f32 %v3147, 0.05243302
      %v3149 = vmul.f32 %v3142, %v3148
      %v3150 = vadd.f32 %v3149, 0.18741608
      %v3151 = vmul.f32 %v3142, %v3150
      %v3152 = vadd.f32 %v3151, 1.1283791
      %v3153 = vmul.f32 %v3133, %v3152
      %v3154 = vmul.f32 %v3142, 3.8918573e-05
      %v3155 = vadd.f32 %v3154, 0.001143296
      %v3156 = vmul.f32 %v3142, %v3155
      %v3157 = vadd.f32 %v3156, 0.014752088
      %v3158 = vmul.f32 %v3142, %v3157
      %v3159 = vadd.f32 %v3158, 0.112945676
      %v3160 = vmul.f32 %v3142, %v3159
      %v3161 = vadd.f32 %v3160, 0.4994258
      %v3162 = vmul.f32 %v3142, %v3161
      %v3163 = vadd.f32 %v3162, 1.0
      %v3164 = vrcp.pop %v3163
      %v3165 = vmul.f32 %v3163, %v3164
      %v3166 = vsub.f32 1.0, %v3165
      %v3167 = vmul.f32 %v3164, %v3166
      %v3168 = vadd.f32 %v3164, %v3167
      %vm3169 = vweird.f32 %v3163
      %vm3170 = vweird.f32 %v3164
      %vm3171 = vmor %vm3169, %vm3170
      %v3172 = vsel %vm3171, %v3164, %v3168
      %v3173 = vand.u32 2147483647, %v3163
      %vm3174 = vcmp.eq.f32.partialorder %v3173, 8.507059e+37
      %v3175 = vand.u32 %v3163, 2147483648
      %v3176 = vor.u32 1.1754944e-38, %v3175
      %v3177 = vsel %vm3174, %v3176, %v3172
      %v3178 = vmul.f32 %v3153, %v3177
      %v3179 = vmin.f32 %v3178, 1.0
      %v3180 = vmax.f32 %v3179, -1.0
      %v3181 = vmul.f32 %v3134, %v3134
      %v3182 = vmin.f32 16.0, %v3181
      %v3183 = vmul.f32 %v3182, 2.1237322e-06
      %v3184 = vadd.f32 %v3183, 0.00028619796
      %v3185 = vmul.f32 %v3182, %v3184
      %v3186 = vadd.f32 %v3185, 0.0036580483
      %v3187 = vmul.f32 %v3182, %v3186
      %v3188 = vadd.f32 %v3187, 0.05243302
      %v3189 = vmul.f32 %v3182, %v3188
      %v3190 = vadd.f32 %v3189, 0.18741608
      %v3191 = vmul.f32 %v3182, %v3190
      %v3192 = vadd.f32 %v3191, 1.1283791
      %v3193 = vmul.f32 %v3134, %v3192
      %v3194 = vmul.f32 %v3182, 3.8918573e-05
      %v3195 = vadd.f32 %v3194, 0.001143296
      %v3196 = vmul.f32 %v3182, %v3195
      %v3197 = vadd.f32 %v3196, 0.014752088
      %v3198 = vmul.f32 %v3182, %v3197
      %v3199 = vadd.f32 %v3198, 0.112945676
      %v3200 = vmul.f32 %v3182, %v3199
      %v3201 = vadd.f32 %v3200, 0.4994258
      %v3202 = vmul.f32 %v3182, %v3201
      %v3203 = vadd.f32 %v3202, 1.0
      %v3204 = vrcp.pop %v3203
      %v3205 = vmul.f32 %v3203, %v3204
      %v3206 = vsub.f32 1.0, %v3205
      %v3207 = vmul.f32 %v3204, %v3206
      %v3208 = vadd.f32 %v3204, %v3207
      %vm3209 = vweird.f32 %v3203
      %vm3210 = vweird.f32 %v3204
      %vm3211 = vmor %vm3209, %vm3210
      %v3212 = vsel %vm3211, %v3204, %v3208
      %v3213 = vand.u32 2147483647, %v3203
      %vm3214 = vcmp.eq.f32.partialorder %v3213, 8.507059e+37
      %v3215 = vand.u32 %v3203, 2147483648
      %v3216 = vor.u32 1.1754944e-38, %v3215
      %v3217 = vsel %vm3214, %v3216, %v3212
      %v3218 = vmul.f32 %v3193, %v3217
      %v3219 = vmin.f32 %v3218, 1.0
      %v3220 = vmax.f32 %v3219, -1.0
      %v3221 = vmul.f32 %v3135, %v3135
      %v3222 = vmin.f32 16.0, %v3221
      %v3223 = vmul.f32 %v3222, 2.1237322e-06
      %v3224 = vadd.f32 %v3223, 0.00028619796
      %v3225 = vmul.f32 %v3222, %v3224
      %v3226 = vadd.f32 %v3225, 0.0036580483
      %v3227 = vmul.f32 %v3222, %v3226
      %v3228 = vadd.f32 %v3227, 0.05243302
      %v3229 = vmul.f32 %v3222, %v3228
      %v3230 = vadd.f32 %v3229, 0.18741608
      %v3231 = vmul.f32 %v3222, %v3230
      %v3232 = vadd.f32 %v3231, 1.1283791
      %v3233 = vmul.f32 %v3135, %v3232
      %v3234 = vmul.f32 %v3222, 3.8918573e-05
      %v3235 = vadd.f32 %v3234, 0.001143296
      %v3236 = vmul.f32 %v3222, %v3235
      %v3237 = vadd.f32 %v3236, 0.014752088
      %v3238 = vmul.f32 %v3222, %v3237
      %v3239 = vadd.f32 %v3238, 0.112945676
      %v3240 = vmul.f32 %v3222, %v3239
      %v3241 = vadd.f32 %v3240, 0.4994258
      %v3242 = vmul.f32 %v3222, %v3241
      %v3243 = vadd.f32 %v3242, 1.0
      %v3244 = vrcp.pop %v3243
      %v3245 = vmul.f32 %v3243, %v3244
      %v3246 = vsub.f32 1.0, %v3245
      %v3247 = vmul.f32 %v3244, %v3246
      %v3248 = vadd.f32 %v3244, %v3247
      %vm3249 = vweird.f32 %v3243
      %vm3250 = vweird.f32 %v3244
      %vm3251 = vmor %vm3249, %vm3250
      %v3252 = vsel %vm3251, %v3244, %v3248
      %v3253 = vand.u32 2147483647, %v3243
      %vm3254 = vcmp.eq.f32.partialorder %v3253, 8.507059e+37
      %v3255 = vand.u32 %v3243, 2147483648
      %v3256 = vor.u32 1.1754944e-38, %v3255
      %v3257 = vsel %vm3254, %v3256, %v3252
      %v3258 = vmul.f32 %v3233, %v3257
      %v3259 = vmin.f32 %v3258, 1.0
      %v3260 = vmax.f32 %v3259, -1.0
      %v3261 = vmul.f32 %v3136, %v3136
      %v3262 = vmin.f32 16.0, %v3261
      %v3263 = vmul.f32 %v3262, 2.1237322e-06
      %v3264 = vadd.f32 %v3263, 0.00028619796
      %v3265 = vmul.f32 %v3262, %v3264
      %v3266 = vadd.f32 %v3265, 0.0036580483
      %v3267 = vmul.f32 %v3262, %v3266
      %v3268 = vadd.f32 %v3267, 0.05243302
      %v3269 = vmul.f32 %v3262, %v3268
      %v3270 = vadd.f32 %v3269, 0.18741608
      %v3271 = vmul.f32 %v3262, %v3270
      %v3272 = vadd.f32 %v3271, 1.1283791
      %v3273 = vmul.f32 %v3136, %v3272
      %v3274 = vmul.f32 %v3262, 3.8918573e-05
      %v3275 = vadd.f32 %v3274, 0.001143296
      %v3276 = vmul.f32 %v3262, %v3275
      %v3277 = vadd.f32 %v3276, 0.014752088
      %v3278 = vmul.f32 %v3262, %v3277
      %v3279 = vadd.f32 %v3278, 0.112945676
      %v3280 = vmul.f32 %v3262, %v3279
      %v3281 = vadd.f32 %v3280, 0.4994258
      %v3282 = vmul.f32 %v3262, %v3281
      %v3283 = vadd.f32 %v3282, 1.0
      %v3284 = vrcp.pop %v3283
      %v3285 = vmul.f32 %v3283, %v3284
      %v3286 = vsub.f32 1.0, %v3285
      %v3287 = vmul.f32 %v3284, %v3286
      %v3288 = vadd.f32 %v3284, %v3287
      %vm3289 = vweird.f32 %v3283
      %vm3290 = vweird.f32 %v3284
      %vm3291 = vmor %vm3289, %vm3290
      %v3292 = vsel %vm3291, %v3284, %v3288
      %v3293 = vand.u32 2147483647, %v3283
      %vm3294 = vcmp.eq.f32.partialorder %v3293, 8.507059e+37
      %v3295 = vand.u32 %v3283, 2147483648
      %v3296 = vor.u32 1.1754944e-38, %v3295
      %v3297 = vsel %vm3294, %v3296, %v3292
      %v3298 = vmul.f32 %v3273, %v3297
      %v3299 = vmin.f32 %v3298, 1.0
      %v3300 = vmax.f32 %v3299, -1.0
      %v3301 = vmul.f32 %v3137, %v3137
      %v3302 = vmin.f32 16.0, %v3301
      %v3303 = vmul.f32 %v3302, 2.1237322e-06
      %v3304 = vadd.f32 %v3303, 0.00028619796
      %v3305 = vmul.f32 %v3302, %v3304
      %v3306 = vadd.f32 %v3305, 0.0036580483
      %v3307 = vmul.f32 %v3302, %v3306
      %v3308 = vadd.f32 %v3307, 0.05243302
      %v3309 = vmul.f32 %v3302, %v3308
      %v3310 = vadd.f32 %v3309, 0.18741608
      %v3311 = vmul.f32 %v3302, %v3310
      %v3312 = vadd.f32 %v3311, 1.1283791
      %v3313 = vmul.f32 %v3137, %v3312
      %v3314 = vmul.f32 %v3302, 3.8918573e-05
      %v3315 = vadd.f32 %v3314, 0.001143296
      %v3316 = vmul.f32 %v3302, %v3315
      %v3317 = vadd.f32 %v3316, 0.014752088
      %v3318 = vmul.f32 %v3302, %v3317
      %v3319 = vadd.f32 %v3318, 0.112945676
      %v3320 = vmul.f32 %v3302, %v3319
      %v3321 = vadd.f32 %v3320, 0.4994258
      %v3322 = vmul.f32 %v3302, %v3321
      %v3323 = vadd.f32 %v3322, 1.0
      %v3324 = vrcp.pop %v3323
      %v3325 = vmul.f32 %v3323, %v3324
      %v3326 = vsub.f32 1.0, %v3325
      %v3327 = vmul.f32 %v3324, %v3326
      %v3328 = vadd.f32 %v3324, %v3327
      %vm3329 = vweird.f32 %v3323
      %vm3330 = vweird.f32 %v3324
      %vm3331 = vmor %vm3329, %vm3330
      %v3332 = vsel %vm3331, %v3324, %v3328
      %v3333 = vand.u32 2147483647, %v3323
      %vm3334 = vcmp.eq.f32.partialorder %v3333, 8.507059e+37
      %v3335 = vand.u32 %v3323, 2147483648
      %v3336 = vor.u32 1.1754944e-38, %v3335
      %v3337 = vsel %vm3334, %v3336, %v3332
      %v3338 = vmul.f32 %v3313, %v3337
      %v3339 = vmin.f32 %v3338, 1.0
      %v3340 = vmax.f32 %v3339, -1.0
      %v3341 = vmul.f32 %v3138, %v3138
      %v3342 = vmin.f32 16.0, %v3341
      %v3343 = vmul.f32 %v3342, 2.1237322e-06
      %v3344 = vadd.f32 %v3343, 0.00028619796
      %v3345 = vmul.f32 %v3342, %v3344
      %v3346 = vadd.f32 %v3345, 0.0036580483
      %v3347 = vmul.f32 %v3342, %v3346
      %v3348 = vadd.f32 %v3347, 0.05243302
      %v3349 = vmul.f32 %v3342, %v3348
      %v3350 = vadd.f32 %v3349, 0.18741608
      %v3351 = vmul.f32 %v3342, %v3350
      %v3352 = vadd.f32 %v3351, 1.1283791
      %v3353 = vmul.f32 %v3138, %v3352
      %v3354 = vmul.f32 %v3342, 3.8918573e-05
      %v3355 = vadd.f32 %v3354, 0.001143296
      %v3356 = vmul.f32 %v3342, %v3355
      %v3357 = vadd.f32 %v3356, 0.014752088
      %v3358 = vmul.f32 %v3342, %v3357
      %v3359 = vadd.f32 %v3358, 0.112945676
      %v3360 = vmul.f32 %v3342, %v3359
      %v3361 = vadd.f32 %v3360, 0.4994258
      %v3362 = vmul.f32 %v3342, %v3361
      %v3363 = vadd.f32 %v3362, 1.0
      %v3364 = vrcp.pop %v3363
      %v3365 = vmul.f32 %v3363, %v3364
      %v3366 = vsub.f32 1.0, %v3365
      %v3367 = vmul.f32 %v3364, %v3366
      %v3368 = vadd.f32 %v3364, %v3367
      %vm3369 = vweird.f32 %v3363
      %vm3370 = vweird.f32 %v3364
      %vm3371 = vmor %vm3369, %vm3370
      %v3372 = vsel %vm3371, %v3364, %v3368
      %v3373 = vand.u32 2147483647, %v3363
      %vm3374 = vcmp.eq.f32.partialorder %v3373, 8.507059e+37
      %v3375 = vand.u32 %v3363, 2147483648
      %v3376 = vor.u32 1.1754944e-38, %v3375
      %v3377 = vsel %vm3374, %v3376, %v3372
      %v3378 = vmul.f32 %v3353, %v3377
      %v3379 = vmin.f32 %v3378, 1.0
      %v3380 = vmax.f32 %v3379, -1.0
      %v3381 = vmul.f32 %v3139, %v3139
      %v3382 = vmin.f32 16.0, %v3381
      %v3383 = vmul.f32 %v3382, 2.1237322e-06
      %v3384 = vadd.f32 %v3383, 0.00028619796
      %v3385 = vmul.f32 %v3382, %v3384
      %v3386 = vadd.f32 %v3385, 0.0036580483
      %v3387 = vmul.f32 %v3382, %v3386
      %v3388 = vadd.f32 %v3387, 0.05243302
      %v3389 = vmul.f32 %v3382, %v3388
      %v3390 = vadd.f32 %v3389, 0.18741608
      %v3391 = vmul.f32 %v3382, %v3390
      %v3392 = vadd.f32 %v3391, 1.1283791
      %v3393 = vmul.f32 %v3139, %v3392
      %v3394 = vmul.f32 %v3382, 3.8918573e-05
      %v3395 = vadd.f32 %v3394, 0.001143296
      %v3396 = vmul.f32 %v3382, %v3395
      %v3397 = vadd.f32 %v3396, 0.014752088
      %v3398 = vmul.f32 %v3382, %v3397
      %v3399 = vadd.f32 %v3398, 0.112945676
      %v3400 = vmul.f32 %v3382, %v3399
      %v3401 = vadd.f32 %v3400, 0.4994258
      %v3402 = vmul.f32 %v3382, %v3401
      %v3403 = vadd.f32 %v3402, 1.0
      %v3404 = vrcp.pop %v3403
      %v3405 = vmul.f32 %v3403, %v3404
      %v3406 = vsub.f32 1.0, %v3405
      %v3407 = vmul.f32 %v3404, %v3406
      %v3408 = vadd.f32 %v3404, %v3407
      %vm3409 = vweird.f32 %v3403
      %vm3410 = vweird.f32 %v3404
      %vm3411 = vmor %vm3409, %vm3410
      %v3412 = vsel %vm3411, %v3404, %v3408
      %v3413 = vand.u32 2147483647, %v3403
      %vm3414 = vcmp.eq.f32.partialorder %v3413, 8.507059e+37
      %v3415 = vand.u32 %v3403, 2147483648
      %v3416 = vor.u32 1.1754944e-38, %v3415
      %v3417 = vsel %vm3414, %v3416, %v3412
      %v3418 = vmul.f32 %v3393, %v3417
      %v3419 = vmin.f32 %v3418, 1.0
      %v3420 = vmax.f32 %v3419, -1.0
      %v3421 = vmul.f32 %v3140, %v3140
      %v3422 = vmin.f32 16.0, %v3421
      %v3423 = vmul.f32 %v3422, 2.1237322e-06
      %v3424 = vadd.f32 %v3423, 0.00028619796
      %v3425 = vmul.f32 %v3422, %v3424
      %v3426 = vadd.f32 %v3425, 0.0036580483
      %v3427 = vmul.f32 %v3422, %v3426
      %v3428 = vadd.f32 %v3427, 0.05243302
      %v3429 = vmul.f32 %v3422, %v3428
      %v3430 = vadd.f32 %v3429, 0.18741608
      %v3431 = vmul.f32 %v3422, %v3430
      %v3432 = vadd.f32 %v3431, 1.1283791
      %v3433 = vmul.f32 %v3140, %v3432
      %v3434 = vmul.f32 %v3422, 3.8918573e-05
      %v3435 = vadd.f32 %v3434, 0.001143296
      %v3436 = vmul.f32 %v3422, %v3435
      %v3437 = vadd.f32 %v3436, 0.014752088
      %v3438 = vmul.f32 %v3422, %v3437
      %v3439 = vadd.f32 %v3438, 0.112945676
      %v3440 = vmul.f32 %v3422, %v3439
      %v3441 = vadd.f32 %v3440, 0.4994258
      %v3442 = vmul.f32 %v3422, %v3441
      %v3443 = vadd.f32 %v3442, 1.0
      %v3444 = vrcp.pop %v3443
      %v3445 = vmul.f32 %v3443, %v3444
      %v3446 = vsub.f32 1.0, %v3445
      %v3447 = vmul.f32 %v3444, %v3446
      %v3448 = vadd.f32 %v3444, %v3447
      %vm3449 = vweird.f32 %v3443
      %vm3450 = vweird.f32 %v3444
      %vm3451 = vmor %vm3449, %vm3450
      %v3452 = vsel %vm3451, %v3444, %v3448
      %v3453 = vand.u32 2147483647, %v3443
      %vm3454 = vcmp.eq.f32.partialorder %v3453, 8.507059e+37
      %v3455 = vand.u32 %v3443, 2147483648
      %v3456 = vor.u32 1.1754944e-38, %v3455
      %v3457 = vsel %vm3454, %v3456, %v3452
      %v3458 = vmul.f32 %v3433, %v3457
      %v3459 = vmin.f32 %v3458, 1.0
      %v3460 = vmax.f32 %v3459, -1.0
      %v3461 = vadd.f32 %v3180, 1.0
      %v3462 = vadd.f32 %v3220, 1.0
      %v3463 = vadd.f32 %v3260, 1.0
      %v3464 = vadd.f32 %v3300, 1.0
      %v3465 = vadd.f32 %v3340, 1.0
      %v3466 = vadd.f32 %v3380, 1.0
      %v3467 = vadd.f32 %v3420, 1.0
      %v3468 = vadd.f32 %v3460, 1.0
      %v3469 = vmul.f32 %v3125, %v3461
      %v3470 = vmul.f32 %v3126, %v3462
      %v3471 = vmul.f32 %v3127, %v3463
      %v3472 = vmul.f32 %v3128, %v3464
      %v3473 = vmul.f32 %v3129, %v3465
      %v3474 = vmul.f32 %v3130, %v3466
      %v3475 = vmul.f32 %v3131, %v3467
      %v3476 = vmul.f32 %v3132, %v3468
      %v3477 = vadd.f32 %v2402, %v3469
      %v3478 = vadd.f32 %v2403, %v3470
      %v3479 = vadd.f32 %v2404, %v3471
      %v3480 = vadd.f32 %v2405, %v3472
      %v3481 = vadd.f32 %v2406, %v3473
      %v3482 = vadd.f32 %v2407, %v3474
      %v3483 = vadd.f32 %v2408, %v3475
      %v3484 = vadd.f32 %v2409, %v3476
      %v3485 = vld [vmem:[%s15] sm:$0xff]
      %v3486 = vld [vmem:[%s15 + $0x8] sm:$0xff]
      %v3487 = vld [vmem:[%s15 + $0x10] sm:$0xff]
      %v3488 = vld [vmem:[%s15 + $0x18] sm:$0xff]
      %v3489 = vld [vmem:[%s16] sm:$0x1]
      %v3491 = vperm.slane %v3489, 0
      %vm3493 = vcmask 261120
      %v3495 = vsel %vm3493, %v3477, 0
      %v3498 = vsel %vm3493, %v3478, 0
      %v3501 = vsel %vm3493, %v3479, 0
      %v3504 = vsel %vm3493, %v3480, 0
      %v3507 = vsel %vm3493, %v3481, 0
      %v3510 = vsel %vm3493, %v3482, 0
      %v3513 = vsel %vm3493, %v3483, 0
      %v3516 = vsel %vm3493, %v3484, 0
      %3518 = vmatpush.msra.mxu0 0.0
      %3519 = vmatpush.msra.mxu0 0.0
      %3520 = vmatpush.msra.mxu0 0.0
      %3521 = vmatpush.msra.mxu0 0.0
      %3522 = vmatpush.msra.mxu0 0.0
      %3523 = vmatpush.msra.mxu0 0.0
      %3524 = vmatpush.msra.mxu0 0.0
      %3525 = vmatpush.msra.mxu0 0.0
      %3526 = vmatpush.msra.mxu0 0.0
      %3527 = vmatpush.msra.mxu0 0.0
      %3528 = vmatpush.msra.mxu0 0.0
      %3529 = vmatpush.msra.mxu0 0.0
      %3530 = vmatpush.msra.mxu0 %v3488
      %3531 = vmatpush.msra.mxu0 %v3487
      %3532 = vmatpush.msra.mxu0 %v3486
      %3533 = vmatpush.msra.mxu0 %v3485
      %3534 = vmatmul.f32.gmra.mxu0 %v3495
      %v3535 = vpop.f32.mrf.mxu0
      %v3536 = vadd.f32 %v3491, %v3535
      %3537 = vmatmul.f32.gmra.mxu0 %v3498
      %v3538 = vpop.f32.mrf.mxu0
      %v3539 = vadd.f32 %v3491, %v3538
      %3540 = vmatmul.f32.gmra.mxu0 %v3501
      %v3541 = vpop.f32.mrf.mxu0
      %v3542 = vadd.f32 %v3491, %v3541
      %3543 = vmatmul.f32.gmra.mxu0 %v3504
      %v3544 = vpop.f32.mrf.mxu0
      %v3545 = vadd.f32 %v3491, %v3544
      %3546 = vmatmul.f32.gmra.mxu0 %v3507
      %v3547 = vpop.f32.mrf.mxu0
      %v3548 = vadd.f32 %v3491, %v3547
      %3549 = vmatmul.f32.gmra.mxu0 %v3510
      %v3550 = vpop.f32.mrf.mxu0
      %v3551 = vadd.f32 %v3491, %v3550
      %3552 = vmatmul.f32.gmra.mxu0 %v3513
      %v3553 = vpop.f32.mrf.mxu0
      %v3554 = vadd.f32 %v3491, %v3553
      %3555 = vmatmul.f32.gmra.mxu0 %v3516
      %v3556 = vpop.f32.mrf.mxu0
      %v3557 = vadd.f32 %v3491, %v3556
      %3558 = vdwg.mxu0
      %v3559 = vadd.f32 %v1779, %v3536
      %v3560 = vadd.f32 %v1780, %v3539
      %v3561 = vadd.f32 %v1781, %v3542
      %v3562 = vadd.f32 %v1782, %v3545
      %v3563 = vadd.f32 %v1783, %v3548
      %v3564 = vadd.f32 %v1784, %v3551
      %v3565 = vadd.f32 %v1785, %v3554
      %v3566 = vadd.f32 %v1786, %v3557
      %3567 = vst.msk [vmem:[%s548] sm:$0xff] %vm559, %v3559
      %3568 = vst.msk [vmem:[%s548 + $0x8] sm:$0xff] %vm559, %v3560
      %3569 = vst.msk [vmem:[%s548 + $0x10] sm:$0xff] %vm559, %v3561
      %3570 = vst.msk [vmem:[%s548 + $0x18] sm:$0xff] %vm559, %v3562
      %3571 = vst.msk [vmem:[%s548 + $0x20] sm:$0xff] %vm559, %v3563
      %3572 = vst.msk [vmem:[%s548 + $0x28] sm:$0xff] %vm559, %v3564
      %3573 = vst.msk [vmem:[%s548 + $0x30] sm:$0xff] %vm559, %v3565
      %3574 = vst.msk [vmem:[%s548 + $0x38] sm:$0xff] %vm559, %v3566
      %p3575 = scmp.lt.s32.totalorder %s28, 1
      %s3576 = scalar_select %p3575, %s28, 1
      %s3577 = smul.addr %s3576, 8
      %s3578 = smul.addr %s3577, 8
      %s3579 = scalar_lea.vmem %s17, %s3578
      // Predicated region
      $region89: #{symwb_forward.1} parent=87 // pred_check
        %p3580 = pneg %p408
      $region90: #{symwb_forward.1} parent=87 // pred_check_branch
        %3582 = sbr.rel (%p3580) target = $region92
      $region91: #{symwb_forward.1} parent=87 // pred_region
        _
      $region92: #{symwb_forward.1} parent=87 // pred_fallthru
        _
    $region88: #{symwb_forward.1} parent=5 // pred_fallthru
      _
    %p3583 = scmp.le.s32.totalorder 2, %s23
    // Predicated region
    $region93: #{symwb_forward.1} parent=5 // pred_check
      %p3584 = pneg %p3583
    $region94: #{symwb_forward.1} parent=5 // pred_check_branch
      %3586 = sbr.rel (%p3584) target = $region96
    $region95: #{symwb_forward.1} parent=5 // pred_region
      %s3587 = ssub.s32 %s23, 2
      // Predicated region
      $region97: #{symwb_forward.1} parent=95 // pred_check
        %p3588 = pneg %p414
      $region98: #{symwb_forward.1} parent=95 // pred_check_branch
        %3590 = sbr.rel (%p3588) target = $region100
      $region99: #{symwb_forward.1} parent=95 // pred_region
        %p3591 = scmp.lt.s32.totalorder %s29, 1
        %s3592 = scalar_select %p3591, %s29, 1
        %s3593 = smul.addr %s3592, 8
        %s3594 = smul.addr %s3593, 8
        %s3595 = scalar_lea.vmem %s17, %s3594
      $region100: #{symwb_forward.1} parent=95 // pred_fallthru
        _
    $region96: #{symwb_forward.1} parent=5 // pred_fallthru
      _
  $region6: #{symwb_forward.1} parent=0 // loop_footer
    %s27 = sadd.s32 1, %s23
  $region7: #{symwb_forward.1} parent=0 // loop_footer_branch
    %22 = sbr.rel target = $region3
  $region8: #{symwb_forward.1} parent=0 // loop_exit
    _

</llo_original>
